<compile_context>
chip_gen: v7x
topology: tpu7x:2x2x1
jax: 0.10.0
libtpu: 0.0.40
codegen_flags: <defaults>
</compile_context>

<pallas_src>
import functools

import jax
import jax.numpy as jnp
from jax.experimental import pallas as pl
from jax.experimental.pallas import tpu as pltpu

EPS = 1e-5
CPAD = 8  # sublane/lane padding for tiny channel dims (3 or 2 -> 8)


# ----------------------------------------------------------------------------
# In-kernel helpers (values, not refs)
# ----------------------------------------------------------------------------

def _mm(h, w_bf16, b_f32):
    """bf16 MXU matmul with f32 accumulation, + bias. h:(M,K) w:(K,N) b:(1,N)."""
    return jnp.dot(h.astype(jnp.bfloat16), w_bf16,
                   preferred_element_type=jnp.float32) + b_f32


def _bn_train(h, gamma, beta, relu, out_dtype=jnp.bfloat16, eps=EPS):
    """Training-mode BatchNorm1d, biased batch stats over rows, f32 math.
    Two-pass (mean-shifted) variance; centered term reused for normalization.
    gamma/beta: (1, C). Returns out_dtype (bf16 between layers)."""
    m = h.shape[0]
    inv_m = 1.0 / m
    mean = jnp.sum(h, axis=0, keepdims=True) * inv_m
    d = h - mean
    var = jnp.sum(d * d, axis=0, keepdims=True) * inv_m
    y = d * jax.lax.rsqrt(var + eps) * gamma + beta
    if relu:
        y = jnp.maximum(y, 0.0)
    return y.astype(out_dtype)


# ----------------------------------------------------------------------------
# Fused PointNet encoder kernel
# ----------------------------------------------------------------------------

def _encoder_kernel(x_ref,
                    w1, b1, g1, be1,
                    w2, b2, g2, be2,
                    w3, b3, g3, be3,
                    w4, b4, g4, be4,
                    w5, b5, g5, be5,
                    out_ref, *, batch, npts):
    # x: (B*Npts, 8) channels-last, lane-padded (pad cols match zero weight rows)
    h = _mm(x_ref[...], w1[...], b1[...])
    h = _bn_train(h, g1[...], be1[...], relu=True)           # conv1 + bn1 + relu
    h = _mm(h, w2[...], b2[...])
    h = _bn_train(h, g2[...], be2[...], relu=True)           # conv2 + bn2 + relu
    h = _mm(h, w3[...], b3[...])
    h = _bn_train(h, g3[...], be3[...], relu=False)          # conv3 + bn3 (no relu)
    nlat = h.shape[-1]
    # PointNet max-pool over points -> (B, nlat). npts % 8 == 0 so the reshape
    # is a free view.  TODO(synk): pad points + -inf mask for general npts.
    g = jnp.max(h.reshape(batch, npts, nlat), axis=1)
    g = _mm(g, w4[...], b4[...])
    g = _bn_train(g, g4[...], be4[...], relu=True)           # lin1 + bn4 + relu
    g = _mm(g, w5[...], b5[...])
    g = _bn_train(g, g5[...], be5[...], relu=True,
                  out_dtype=jnp.float32)                     # lin2 + bn5 + relu
    out_ref[...] = g


def pointnet_encoder(x, p):
    """x: (B, 3, Npts) NCL -> latent (B, nlatent). One Pallas kernel."""
    B, cin, npts = x.shape
    assert npts % 8 == 0, "npts must be a multiple of 8 (free max-pool reshape)"
    M = B * npts
    # NCL -> channels-last rows, lane-padded cin->8 (single fused XLA copy).
    # TODO(synk): ingest (B,3,Npts) directly (in-kernel TN dot_general for
    # conv1) to drop this HBM pass at real point counts.
    xf = jnp.transpose(x, (0, 2, 1)).reshape(M, cin).astype(jnp.float32)
    xf = jnp.pad(xf, ((0, 0), (0, CPAD - cin)))
    nlat = p["conv3_w"].shape[1]

    def full(arr):
        nd = arr.ndim
        # TODO(synk): pl.Buffered(1) on these invariant params once the
        # encoder gets a real (M- or channel-tiled) grid.
        return pl.BlockSpec(arr.shape, lambda i, nd=nd: (0,) * nd)

    args = [
        xf,
        p["conv1_w"], p["conv1_b"], p["bn1_g"], p["bn1_b"],
        p["conv2_w"], p["conv2_b"], p["bn2_g"], p["bn2_b"],
        p["conv3_w"], p["conv3_b"], p["bn3_g"], p["bn3_b"],
        p["lin1_w"], p["lin1_b"], p["bn4_g"], p["bn4_b"],
        p["lin2_w"], p["lin2_b"], p["bn5_g"], p["bn5_b"],
    ]
    # TODO(synk): at real AtlasNet sizes, M-tile this grid with cross-tile BN
    # accumulators (+ vmem_limit_bytes) and mark the tile axis "parallel" so
    # v7x's second TensorCore is used; single block targets the test shapes.
    return pl.pallas_call(
        functools.partial(_encoder_kernel, batch=B, npts=npts),
        out_shape=jax.ShapeDtypeStruct((B, nlat), jnp.float32),
        grid=(1,),
        in_specs=[full(a) for a in args],
        out_specs=full(jnp.zeros((B, nlat))),
        compiler_params=pltpu.CompilerParams(
            dimension_semantics=("arbitrary",)),
    )(*args)


# ----------------------------------------------------------------------------
# Fused Atlasnet decoder kernel (grid over primitive chunks)
# ----------------------------------------------------------------------------

def _decoder_kernel(pts_ref, lat_ref,
                    w1, b1, g1, be1,
                    w2, b2, g2, be2,
                    wl, bl, gl, bel,
                    wlast, blast,
                    out_ref, *, batch, npts, num_layers, prims_per_step):
    lat = lat_ref[...]                                        # (B, bneck) f32
    for j in range(prims_per_step):                           # static unroll
        h0 = _mm(pts_ref[j], w1[j], b1[j])                    # (Np, bneck) f32
        # conv1(points) + latent, broadcast over batch and points
        h = (h0[None, :, :] + lat[:, None, :]).reshape(batch * npts, -1)
        h = _bn_train(h, g1[j], be1[j], relu=True)            # bn1 + relu
        h = _mm(h, w2[j], b2[j])
        h = _bn_train(h, g2[j], be2[j], relu=True)            # conv2 + bn2 + relu
        for l in range(num_layers):                           # hidden layers
            h = _mm(h, wl[j, l], bl[j, l])
            h = _bn_train(h, gl[j, l], bel[j, l], relu=True)
        # last conv as NT dot_general -> (8, B*Np): lane-dense store and the
        # result is already in (coord, point) order (no minor-dim transpose
        # needed in the wrapper).
        out = jax.lax.dot_general(
            wlast[j], h.astype(jnp.bfloat16),
            dimension_numbers=(((1,), (1,)), ((), ())),
            preferred_element_type=jnp.float32) + blast[j]
        out_ref[j] = out


def atlasnet_decoder(latent, dp, templates, *, num_layers, prims_per_step=1):
    """latent: (B, bneck); templates: (P, Np, dim); stacked params dp
    -> (B, P, 3, Np). One Pallas kernel, grid over primitive chunks."""
    P, npts, tdim = templates.shape
    B = latent.shape[0]
    assert P % prims_per_step == 0
    M = B * npts
    C = prims_per_step
    # pad template coord dim to 8 lanes (zero rows in conv1_w keep this exact)
    templates = jnp.pad(templates.astype(jnp.float32),
                        ((0, 0), (0, 0), (0, CPAD - tdim)))

    def per_prim(arr):
        blk = (C,) + arr.shape[1:]
        nd = arr.ndim
        return pl.BlockSpec(blk, lambda i, nd=nd: (i,) + (0,) * (nd - 1))

    def shared(arr):
        nd = arr.ndim
        return pl.BlockSpec(arr.shape, lambda i, nd=nd: (0,) * nd)

    args = [templates, latent,
            dp["conv1_w"], dp["conv1_b"], dp["bn1_g"], dp["bn1_b"],
            dp["conv2_w"], dp["conv2_b"], dp["bn2_g"], dp["bn2_b"],
            dp["convl_w"], dp["convl_b"], dp["bnl_g"], dp["bnl_b"],
            dp["last_w"], dp["last_b"]]
    in_specs = [per_prim(templates), shared(latent)] + \
               [per_prim(a) for a in args[2:]]

    out = pl.pallas_call(
        functools.partial(_decoder_kernel, batch=B, npts=npts,
                          num_layers=num_layers, prims_per_step=C),
        out_shape=jax.ShapeDtypeStruct((P, 8, M), jnp.float32),
        grid=(P // C,),
        in_specs=in_specs,
        out_specs=pl.BlockSpec((C, 8, M), lambda i: (i, 0, 0)),
        compiler_params=pltpu.CompilerParams(
            dimension_semantics=("parallel",)),
    )(*args)

    # (P, 8, B*Np) -> drop sublane padding, split points, reorder MAJOR dims
    # only (last dim untouched -> cheap relayout).
    out = out[:, :3, :].reshape(P, 3, B, npts)
    return jnp.transpose(out, (2, 0, 1, 3))                   # (B, P, 3, Np)


# ----------------------------------------------------------------------------
# Parameter initialization (deterministic, in-script; mirrors weights_init)
# ----------------------------------------------------------------------------

def _dense_init(key, fan_in, fan_out):
    # PyTorch Conv1d/Linear default: U(-1/sqrt(fan_in), 1/sqrt(fan_in))
    kw, kb = jax.random.split(key)
    bound = 1.0 / jnp.sqrt(jnp.float32(fan_in))
    w = jax.random.uniform(kw, (fan_in, fan_out), jnp.float32, -bound, bound)
    b = jax.random.uniform(kb, (fan_out,), jnp.float32, -bound, bound)
    return w, b


def _bn_init(key, c):
    # weights_init: BatchNorm weight ~ N(1, 0.02), bias = 0
    g = 1.0 + 0.02 * jax.random.normal(key, (c,), jnp.float32)
    b = jnp.zeros((c,), jnp.float32)
    return g, b


def init_encoder_params(key, nlatent):
    ks = jax.random.split(key, 10)

    def dense(k, fi, fo, pad_rows_to=None):
        w, b = _dense_init(k, fi, fo)
        if pad_rows_to is not None and pad_rows_to > fi:
            w = jnp.pad(w, ((0, pad_rows_to - fi), (0, 0)))   # zero rows: exact
        return w.astype(jnp.bfloat16), b.reshape(1, fo)

    def bn(k, c):
        g, b = _bn_init(k, c)
        return g.reshape(1, c), b.reshape(1, c)

    p = {}
    p["conv1_w"], p["conv1_b"] = dense(ks[0], 3, 64, pad_rows_to=CPAD)
    p["conv2_w"], p["conv2_b"] = dense(ks[1], 64, 128)
    p["conv3_w"], p["conv3_b"] = dense(ks[2], 128, nlatent)
    p["lin1_w"], p["lin1_b"] = dense(ks[3], nlatent, nlatent)
    p["lin2_w"], p["lin2_b"] = dense(ks[4], nlatent, nlatent)
    p["bn1_g"], p["bn1_b"] = bn(ks[5], 64)
    p["bn2_g"], p["bn2_b"] = bn(ks[6], 128)
    p["bn3_g"], p["bn3_b"] = bn(ks[7], nlatent)
    p["bn4_g"], p["bn4_b"] = bn(ks[8], nlatent)
    p["bn5_g"], p["bn5_b"] = bn(ks[9], nlatent)
    return p


def init_decoder_params(key, nb_primitives, dim_template, bottleneck, hidden,
                        num_layers):
    """Per-primitive Mapping2Dto3D params, stacked with a leading P axis."""
    per = []
    for k in jax.random.split(key, nb_primitives):
        ks = jax.random.split(k, 5 + 2 * num_layers)
        d = {}
        w, b = _dense_init(ks[0], dim_template, bottleneck)
        d["conv1_w"] = jnp.pad(w, ((0, CPAD - dim_template), (0, 0)))  # (8, bneck)
        d["conv1_b"] = b
        d["conv2_w"], d["conv2_b"] = _dense_init(ks[1], bottleneck, hidden)
        lw, lb = _dense_init(ks[2], hidden, 3)
        # last layer stored pre-transposed + zero-padded 3->8: (8, hidden), (8, 1)
        d["last_w"] = jnp.pad(lw.T, ((0, CPAD - 3), (0, 0)))
        d["last_b"] = jnp.pad(lb.reshape(3, 1), ((0, CPAD - 3), (0, 0)))
        d["bn1_g"], d["bn1_b"] = _bn_init(ks[3], bottleneck)
        d["bn2_g"], d["bn2_b"] = _bn_init(ks[4], hidden)
        wl, bl, gl, bel = [], [], [], []
        for i in range(num_layers):
            w, b = _dense_init(ks[5 + 2 * i], hidden, hidden)
            g, bb = _bn_init(ks[6 + 2 * i], hidden)
            wl.append(w); bl.append(b); gl.append(g); bel.append(bb)
        d["convl_w"] = jnp.stack(wl); d["convl_b"] = jnp.stack(bl)
        d["bnl_g"] = jnp.stack(gl); d["bnl_b"] = jnp.stack(bel)
        per.append(d)

    P = nb_primitives
    st = lambda name: jnp.stack([d[name] for d in per])
    dp = {}
    dp["conv1_w"] = st("conv1_w").astype(jnp.bfloat16)                 # (P, 8, bneck)
    dp["conv1_b"] = st("conv1_b").reshape(P, 1, bottleneck)
    dp["bn1_g"] = st("bn1_g").reshape(P, 1, bottleneck)
    dp["bn1_b"] = st("bn1_b").reshape(P, 1, bottleneck)
    dp["conv2_w"] = st("conv2_w").astype(jnp.bfloat16)                 # (P, bneck, hid)
    dp["conv2_b"] = st("conv2_b").reshape(P, 1, hidden)
    dp["bn2_g"] = st("bn2_g").reshape(P, 1, hidden)
    dp["bn2_b"] = st("bn2_b").reshape(P, 1, hidden)
    dp["convl_w"] = st("convl_w").astype(jnp.bfloat16)                 # (P, L, hid, hid)
    dp["convl_b"] = st("convl_b").reshape(P, num_layers, 1, hidden)
    dp["bnl_g"] = st("bnl_g").reshape(P, num_layers, 1, hidden)
    dp["bnl_b"] = st("bnl_b").reshape(P, num_layers, 1, hidden)
    dp["last_w"] = st("last_w").astype(jnp.bfloat16)                   # (P, 8, hidden)
    dp["last_b"] = st("last_b")                                        # (P, 8, 1)
    return dp


# ----------------------------------------------------------------------------
# Full forward:  decoder(encoder(x), train=True)
# ----------------------------------------------------------------------------

def encoder_decoder_forward(x, params, rng, *, nb_primitives, pts_per_prim,
                            dim_template, num_layers, prims_per_step,
                            train=True):
    """EncoderDecoder.forward(x, train=True) ->
       (B, nb_primitives, 3, pts_per_prim)."""
    assert train, "only train=True path implemented"
    latent = pointnet_encoder(x, params["encoder"])           # (B, nlatent)
    # SQUARE template, train mode: uniform [0,1) 2-D points per primitive,
    # shared across the batch (torch RNG replaced by jax.random).
    templates = jax.random.uniform(
        rng, (nb_primitives, pts_per_prim, dim_template), jnp.float32)
    # TODO(synk): cross-call prefetch of decoder weights during the encoder.
    return atlasnet_decoder(latent, params["decoder"], templates,
                            num_layers=num_layers,
                            prims_per_step=prims_per_step)


# ----------------------------------------------------------------------------
# Main
# ----------------------------------------------------------------------------

if __name__ == "__main__":
    # Small "opt" consistent with the module
    BATCH = 2
    NPTS_IN = 64            # input point-cloud size
    BOTTLENECK = 32         # opt.bottleneck_size
    HIDDEN = 32             # opt.hidden_neurons
    NUM_LAYERS = 2          # opt.num_layers
    NB_PRIMITIVES = 4       # opt.nb_primitives
    NUMBER_POINTS = 64      # opt.number_points
    PTS_PER_PRIM = NUMBER_POINTS // NB_PRIMITIVES
    DIM_TEMPLATE = 2        # SQUARE template
    PRIMS_PER_STEP = 2      # fold 2 primitives per decoder grid step

    root = jax.random.PRNGKey(0)
    k_enc, k_dec, k_x, k_pts = jax.random.split(root, 4)

    params = {
        "encoder": init_encoder_params(k_enc, BOTTLENECK),
        "decoder": init_decoder_params(k_dec, NB_PRIMITIVES, DIM_TEMPLATE,
                                       BOTTLENECK, HIDDEN, NUM_LAYERS),
    }

    # Input point cloud, NCL layout: (batch, 3, num_points)
    x = jax.random.normal(k_x, (BATCH, 3, NPTS_IN), jnp.float32)

    fwd = jax.jit(functools.partial(
        encoder_decoder_forward,
        nb_primitives=NB_PRIMITIVES, pts_per_prim=PTS_PER_PRIM,
        dim_template=DIM_TEMPLATE, num_layers=NUM_LAYERS,
        prims_per_step=PRIMS_PER_STEP, train=True))

    out = jax.block_until_ready(fwd(x, params, k_pts))

    assert out.shape == (BATCH, NB_PRIMITIVES, 3, PTS_PER_PRIM), out.shape
    assert bool(jnp.all(jnp.isfinite(out)))
    # TODO(synk): generate_mesh / generate_ply (regular-grid templates + mesh
    # export) and the eval (train=False) path using running BN stats are
    # host-side / non-kernel utilities and are not implemented here.
    print("KERNEL_OK")
</pallas_src>

<mosaic_0001>
module attributes {stable_mosaic.version = 11 : i64} {
  func.func @_encoder_kernel(%arg0: i32, %arg1: memref<128x8xf32, #tpu.memory_space<vmem>>, %arg2: memref<8x64xbf16, #tpu.memory_space<vmem>>, %arg3: memref<1x64xf32, #tpu.memory_space<vmem>>, %arg4: memref<1x64xf32, #tpu.memory_space<vmem>>, %arg5: memref<1x64xf32, #tpu.memory_space<vmem>>, %arg6: memref<64x128xbf16, #tpu.memory_space<vmem>>, %arg7: memref<1x128xf32, #tpu.memory_space<vmem>>, %arg8: memref<1x128xf32, #tpu.memory_space<vmem>>, %arg9: memref<1x128xf32, #tpu.memory_space<vmem>>, %arg10: memref<128x32xbf16, #tpu.memory_space<vmem>>, %arg11: memref<1x32xf32, #tpu.memory_space<vmem>>, %arg12: memref<1x32xf32, #tpu.memory_space<vmem>>, %arg13: memref<1x32xf32, #tpu.memory_space<vmem>>, %arg14: memref<32x32xbf16, #tpu.memory_space<vmem>>, %arg15: memref<1x32xf32, #tpu.memory_space<vmem>>, %arg16: memref<1x32xf32, #tpu.memory_space<vmem>>, %arg17: memref<1x32xf32, #tpu.memory_space<vmem>>, %arg18: memref<32x32xbf16, #tpu.memory_space<vmem>>, %arg19: memref<1x32xf32, #tpu.memory_space<vmem>>, %arg20: memref<1x32xf32, #tpu.memory_space<vmem>>, %arg21: memref<1x32xf32, #tpu.memory_space<vmem>>, %arg22: memref<2x32xf32, #tpu.memory_space<vmem>>) attributes {dimension_semantics = [#tpu.dimension_semantics<arbitrary>], iteration_bounds = array<i64: 1>, scalar_prefetch = 0 : i64, scratch_operands = 0 : i64, tpu.core_type = #tpu.core_type<tc>, window_params = [{pipeline_mode = #tpu.pipeline_mode<synchronous>, transform_indices = @transform_0, window_bounds = array<i64: 128, 8>}, {pipeline_mode = #tpu.pipeline_mode<synchronous>, transform_indices = @transform_1, window_bounds = array<i64: 8, 64>}, {pipeline_mode = #tpu.pipeline_mode<synchronous>, transform_indices = @transform_2, window_bounds = array<i64: 1, 64>}, {pipeline_mode = #tpu.pipeline_mode<synchronous>, transform_indices = @transform_3, window_bounds = array<i64: 1, 64>}, {pipeline_mode = #tpu.pipeline_mode<synchronous>, transform_indices = @transform_4, window_bounds = array<i64: 1, 64>}, {pipeline_mode = #tpu.pipeline_mode<synchronous>, transform_indices = @transform_5, window_bounds = array<i64: 64, 128>}, {pipeline_mode = #tpu.pipeline_mode<synchronous>, transform_indices = @transform_6, window_bounds = array<i64: 1, 128>}, {pipeline_mode = #tpu.pipeline_mode<synchronous>, transform_indices = @transform_7, window_bounds = array<i64: 1, 128>}, {pipeline_mode = #tpu.pipeline_mode<synchronous>, transform_indices = @transform_8, window_bounds = array<i64: 1, 128>}, {pipeline_mode = #tpu.pipeline_mode<synchronous>, transform_indices = @transform_9, window_bounds = array<i64: 128, 32>}, {pipeline_mode = #tpu.pipeline_mode<synchronous>, transform_indices = @transform_10, window_bounds = array<i64: 1, 32>}, {pipeline_mode = #tpu.pipeline_mode<synchronous>, transform_indices = @transform_11, window_bounds = array<i64: 1, 32>}, {pipeline_mode = #tpu.pipeline_mode<synchronous>, transform_indices = @transform_12, window_bounds = array<i64: 1, 32>}, {pipeline_mode = #tpu.pipeline_mode<synchronous>, transform_indices = @transform_13, window_bounds = array<i64: 32, 32>}, {pipeline_mode = #tpu.pipeline_mode<synchronous>, transform_indices = @transform_14, window_bounds = array<i64: 1, 32>}, {pipeline_mode = #tpu.pipeline_mode<synchronous>, transform_indices = @transform_15, window_bounds = array<i64: 1, 32>}, {pipeline_mode = #tpu.pipeline_mode<synchronous>, transform_indices = @transform_16, window_bounds = array<i64: 1, 32>}, {pipeline_mode = #tpu.pipeline_mode<synchronous>, transform_indices = @transform_17, window_bounds = array<i64: 32, 32>}, {pipeline_mode = #tpu.pipeline_mode<synchronous>, transform_indices = @transform_18, window_bounds = array<i64: 1, 32>}, {pipeline_mode = #tpu.pipeline_mode<synchronous>, transform_indices = @transform_19, window_bounds = array<i64: 1, 32>}, {pipeline_mode = #tpu.pipeline_mode<synchronous>, transform_indices = @transform_20, window_bounds = array<i64: 1, 32>}, {pipeline_mode = #tpu.pipeline_mode<synchronous>, transform_indices = @transform_21, window_bounds = array<i64: 2, 32>}]} {
    %c0 = arith.constant 0 : index
    %c0_0 = arith.constant 0 : index
    %0 = vector.load %arg1[%c0, %c0_0] : memref<128x8xf32, #tpu.memory_space<vmem>>, vector<128x8xf32>
    %c0_1 = arith.constant 0 : index
    %c0_2 = arith.constant 0 : index
    %1 = vector.load %arg2[%c0_1, %c0_2] : memref<8x64xbf16, #tpu.memory_space<vmem>>, vector<8x64xbf16>
    %c0_3 = arith.constant 0 : index
    %c0_4 = arith.constant 0 : index
    %2 = vector.load %arg3[%c0_3, %c0_4] : memref<1x64xf32, #tpu.memory_space<vmem>>, vector<1x64xf32>
    %3 = arith.truncf %0 : vector<128x8xf32> to vector<128x8xbf16>
    %cst = arith.constant dense<0.000000e+00> : vector<128x64xf32>
    %4 = tpu.matmul %3, %1, %cst {dimension_numbers = #tpu.dot_dimension_numbers<[1], [0], [0], [1], [0, 0, 1, 1], [], []>} : vector<128x8xbf16>, vector<8x64xbf16>, vector<128x64xf32> -> vector<128x64xf32>
    %5 = vector.broadcast %2 : vector<1x64xf32> to vector<128x64xf32>
    %6 = arith.addf %4, %5 : vector<128x64xf32>
    %c0_5 = arith.constant 0 : index
    %c0_6 = arith.constant 0 : index
    %7 = vector.load %arg4[%c0_5, %c0_6] : memref<1x64xf32, #tpu.memory_space<vmem>>, vector<1x64xf32>
    %c0_7 = arith.constant 0 : index
    %c0_8 = arith.constant 0 : index
    %8 = vector.load %arg5[%c0_7, %c0_8] : memref<1x64xf32, #tpu.memory_space<vmem>>, vector<1x64xf32>
    %cst_9 = arith.constant dense<0.000000e+00> : vector<64xf32>
    %9 = vector.multi_reduction <add>, %6, %cst_9 [0] : vector<128x64xf32> to vector<64xf32>
    %10 = vector.shape_cast %9 : vector<64xf32> to vector<1x64xf32>
    %cst_10 = arith.constant 7.812500e-03 : f32
    %11 = vector.broadcast %cst_10 : f32 to vector<1x64xf32>
    %12 = arith.mulf %10, %11 : vector<1x64xf32>
    %13 = vector.broadcast %12 : vector<1x64xf32> to vector<128x64xf32>
    %14 = arith.subf %6, %13 : vector<128x64xf32>
    %15 = arith.mulf %14, %14 : vector<128x64xf32>
    %cst_11 = arith.constant dense<0.000000e+00> : vector<64xf32>
    %16 = vector.multi_reduction <add>, %15, %cst_11 [0] : vector<128x64xf32> to vector<64xf32>
    %17 = vector.shape_cast %16 : vector<64xf32> to vector<1x64xf32>
    %cst_12 = arith.constant 7.812500e-03 : f32
    %18 = vector.broadcast %cst_12 : f32 to vector<1x64xf32>
    %19 = arith.mulf %17, %18 : vector<1x64xf32>
    %cst_13 = arith.constant 9.99999974E-6 : f32
    %20 = vector.broadcast %cst_13 : f32 to vector<1x64xf32>
    %21 = arith.addf %19, %20 : vector<1x64xf32>
    %22 = math.rsqrt %21 : vector<1x64xf32>
    %23 = vector.broadcast %22 : vector<1x64xf32> to vector<128x64xf32>
    %24 = arith.mulf %14, %23 : vector<128x64xf32>
    %25 = vector.broadcast %7 : vector<1x64xf32> to vector<128x64xf32>
    %26 = arith.mulf %24, %25 : vector<128x64xf32>
    %27 = vector.broadcast %8 : vector<1x64xf32> to vector<128x64xf32>
    %28 = arith.addf %26, %27 : vector<128x64xf32>
    %cst_14 = arith.constant 0.000000e+00 : f32
    %29 = vector.broadcast %cst_14 : f32 to vector<128x64xf32>
    %30 = arith.maximumf %28, %29 : vector<128x64xf32>
    %31 = arith.truncf %30 : vector<128x64xf32> to vector<128x64xbf16>
    %c0_15 = arith.constant 0 : index
    %c0_16 = arith.constant 0 : index
    %32 = vector.load %arg6[%c0_15, %c0_16] : memref<64x128xbf16, #tpu.memory_space<vmem>>, vector<64x128xbf16>
    %c0_17 = arith.constant 0 : index
    %c0_18 = arith.constant 0 : index
    %33 = vector.load %arg7[%c0_17, %c0_18] : memref<1x128xf32, #tpu.memory_space<vmem>>, vector<1x128xf32>
    %cst_19 = arith.constant dense<0.000000e+00> : vector<128x128xf32>
    %34 = tpu.matmul %31, %32, %cst_19 {dimension_numbers = #tpu.dot_dimension_numbers<[1], [0], [0], [1], [0, 0, 1, 1], [], []>} : vector<128x64xbf16>, vector<64x128xbf16>, vector<128x128xf32> -> vector<128x128xf32>
    %35 = vector.broadcast %33 : vector<1x128xf32> to vector<128x128xf32>
    %36 = arith.addf %34, %35 : vector<128x128xf32>
    %c0_20 = arith.constant 0 : index
    %c0_21 = arith.constant 0 : index
    %37 = vector.load %arg8[%c0_20, %c0_21] : memref<1x128xf32, #tpu.memory_space<vmem>>, vector<1x128xf32>
    %c0_22 = arith.constant 0 : index
    %c0_23 = arith.constant 0 : index
    %38 = vector.load %arg9[%c0_22, %c0_23] : memref<1x128xf32, #tpu.memory_space<vmem>>, vector<1x128xf32>
    %cst_24 = arith.constant dense<0.000000e+00> : vector<128xf32>
    %39 = vector.multi_reduction <add>, %36, %cst_24 [0] : vector<128x128xf32> to vector<128xf32>
    %40 = vector.shape_cast %39 : vector<128xf32> to vector<1x128xf32>
    %cst_25 = arith.constant 7.812500e-03 : f32
    %41 = vector.broadcast %cst_25 : f32 to vector<1x128xf32>
    %42 = arith.mulf %40, %41 : vector<1x128xf32>
    %43 = vector.broadcast %42 : vector<1x128xf32> to vector<128x128xf32>
    %44 = arith.subf %36, %43 : vector<128x128xf32>
    %45 = arith.mulf %44, %44 : vector<128x128xf32>
    %cst_26 = arith.constant dense<0.000000e+00> : vector<128xf32>
    %46 = vector.multi_reduction <add>, %45, %cst_26 [0] : vector<128x128xf32> to vector<128xf32>
    %47 = vector.shape_cast %46 : vector<128xf32> to vector<1x128xf32>
    %cst_27 = arith.constant 7.812500e-03 : f32
    %48 = vector.broadcast %cst_27 : f32 to vector<1x128xf32>
    %49 = arith.mulf %47, %48 : vector<1x128xf32>
    %cst_28 = arith.constant 9.99999974E-6 : f32
    %50 = vector.broadcast %cst_28 : f32 to vector<1x128xf32>
    %51 = arith.addf %49, %50 : vector<1x128xf32>
    %52 = math.rsqrt %51 : vector<1x128xf32>
    %53 = vector.broadcast %52 : vector<1x128xf32> to vector<128x128xf32>
    %54 = arith.mulf %44, %53 : vector<128x128xf32>
    %55 = vector.broadcast %37 : vector<1x128xf32> to vector<128x128xf32>
    %56 = arith.mulf %54, %55 : vector<128x128xf32>
    %57 = vector.broadcast %38 : vector<1x128xf32> to vector<128x128xf32>
    %58 = arith.addf %56, %57 : vector<128x128xf32>
    %cst_29 = arith.constant 0.000000e+00 : f32
    %59 = vector.broadcast %cst_29 : f32 to vector<128x128xf32>
    %60 = arith.maximumf %58, %59 : vector<128x128xf32>
    %61 = arith.truncf %60 : vector<128x128xf32> to vector<128x128xbf16>
    %c0_30 = arith.constant 0 : index
    %c0_31 = arith.constant 0 : index
    %62 = vector.load %arg10[%c0_30, %c0_31] : memref<128x32xbf16, #tpu.memory_space<vmem>>, vector<128x32xbf16>
    %c0_32 = arith.constant 0 : index
    %c0_33 = arith.constant 0 : index
    %63 = vector.load %arg11[%c0_32, %c0_33] : memref<1x32xf32, #tpu.memory_space<vmem>>, vector<1x32xf32>
    %cst_34 = arith.constant dense<0.000000e+00> : vector<128x32xf32>
    %64 = tpu.matmul %61, %62, %cst_34 {dimension_numbers = #tpu.dot_dimension_numbers<[1], [0], [0], [1], [0, 0, 1, 1], [], []>} : vector<128x128xbf16>, vector<128x32xbf16>, vector<128x32xf32> -> vector<128x32xf32>
    %65 = vector.broadcast %63 : vector<1x32xf32> to vector<128x32xf32>
    %66 = arith.addf %64, %65 : vector<128x32xf32>
    %c0_35 = arith.constant 0 : index
    %c0_36 = arith.constant 0 : index
    %67 = vector.load %arg12[%c0_35, %c0_36] : memref<1x32xf32, #tpu.memory_space<vmem>>, vector<1x32xf32>
    %c0_37 = arith.constant 0 : index
    %c0_38 = arith.constant 0 : index
    %68 = vector.load %arg13[%c0_37, %c0_38] : memref<1x32xf32, #tpu.memory_space<vmem>>, vector<1x32xf32>
    %cst_39 = arith.constant dense<0.000000e+00> : vector<32xf32>
    %69 = vector.multi_reduction <add>, %66, %cst_39 [0] : vector<128x32xf32> to vector<32xf32>
    %70 = vector.shape_cast %69 : vector<32xf32> to vector<1x32xf32>
    %cst_40 = arith.constant 7.812500e-03 : f32
    %71 = vector.broadcast %cst_40 : f32 to vector<1x32xf32>
    %72 = arith.mulf %70, %71 : vector<1x32xf32>
    %73 = vector.broadcast %72 : vector<1x32xf32> to vector<128x32xf32>
    %74 = arith.subf %66, %73 : vector<128x32xf32>
    %75 = arith.mulf %74, %74 : vector<128x32xf32>
    %cst_41 = arith.constant dense<0.000000e+00> : vector<32xf32>
    %76 = vector.multi_reduction <add>, %75, %cst_41 [0] : vector<128x32xf32> to vector<32xf32>
    %77 = vector.shape_cast %76 : vector<32xf32> to vector<1x32xf32>
    %cst_42 = arith.constant 7.812500e-03 : f32
    %78 = vector.broadcast %cst_42 : f32 to vector<1x32xf32>
    %79 = arith.mulf %77, %78 : vector<1x32xf32>
    %cst_43 = arith.constant 9.99999974E-6 : f32
    %80 = vector.broadcast %cst_43 : f32 to vector<1x32xf32>
    %81 = arith.addf %79, %80 : vector<1x32xf32>
    %82 = math.rsqrt %81 : vector<1x32xf32>
    %83 = vector.broadcast %82 : vector<1x32xf32> to vector<128x32xf32>
    %84 = arith.mulf %74, %83 : vector<128x32xf32>
    %85 = vector.broadcast %67 : vector<1x32xf32> to vector<128x32xf32>
    %86 = arith.mulf %84, %85 : vector<128x32xf32>
    %87 = vector.broadcast %68 : vector<1x32xf32> to vector<128x32xf32>
    %88 = arith.addf %86, %87 : vector<128x32xf32>
    %89 = arith.truncf %88 : vector<128x32xf32> to vector<128x32xbf16>
    %90 = vector.shape_cast %89 : vector<128x32xbf16> to vector<2x64x32xbf16>
    %cst_44 = arith.constant dense<0xFF80> : vector<2x32xbf16>
    %91 = vector.multi_reduction <maximumf>, %90, %cst_44 [1] : vector<2x64x32xbf16> to vector<2x32xbf16>
    %c0_45 = arith.constant 0 : index
    %c0_46 = arith.constant 0 : index
    %92 = vector.load %arg14[%c0_45, %c0_46] : memref<32x32xbf16, #tpu.memory_space<vmem>>, vector<32x32xbf16>
    %c0_47 = arith.constant 0 : index
    %c0_48 = arith.constant 0 : index
    %93 = vector.load %arg15[%c0_47, %c0_48] : memref<1x32xf32, #tpu.memory_space<vmem>>, vector<1x32xf32>
    %cst_49 = arith.constant dense<0.000000e+00> : vector<2x32xf32>
    %94 = tpu.matmul %91, %92, %cst_49 {dimension_numbers = #tpu.dot_dimension_numbers<[1], [0], [0], [1], [0, 0, 1, 1], [], []>} : vector<2x32xbf16>, vector<32x32xbf16>, vector<2x32xf32> -> vector<2x32xf32>
    %95 = vector.broadcast %93 : vector<1x32xf32> to vector<2x32xf32>
    %96 = arith.addf %94, %95 : vector<2x32xf32>
    %c0_50 = arith.constant 0 : index
    %c0_51 = arith.constant 0 : index
    %97 = vector.load %arg16[%c0_50, %c0_51] : memref<1x32xf32, #tpu.memory_space<vmem>>, vector<1x32xf32>
    %c0_52 = arith.constant 0 : index
    %c0_53 = arith.constant 0 : index
    %98 = vector.load %arg17[%c0_52, %c0_53] : memref<1x32xf32, #tpu.memory_space<vmem>>, vector<1x32xf32>
    %cst_54 = arith.constant dense<0.000000e+00> : vector<32xf32>
    %99 = vector.multi_reduction <add>, %96, %cst_54 [0] : vector<2x32xf32> to vector<32xf32>
    %100 = vector.shape_cast %99 : vector<32xf32> to vector<1x32xf32>
    %cst_55 = arith.constant 5.000000e-01 : f32
    %101 = vector.broadcast %cst_55 : f32 to vector<1x32xf32>
    %102 = arith.mulf %100, %101 : vector<1x32xf32>
    %103 = vector.broadcast %102 : vector<1x32xf32> to vector<2x32xf32>
    %104 = arith.subf %96, %103 : vector<2x32xf32>
    %105 = arith.mulf %104, %104 : vector<2x32xf32>
    %cst_56 = arith.constant dense<0.000000e+00> : vector<32xf32>
    %106 = vector.multi_reduction <add>, %105, %cst_56 [0] : vector<2x32xf32> to vector<32xf32>
    %107 = vector.shape_cast %106 : vector<32xf32> to vector<1x32xf32>
    %cst_57 = arith.constant 5.000000e-01 : f32
    %108 = vector.broadcast %cst_57 : f32 to vector<1x32xf32>
    %109 = arith.mulf %107, %108 : vector<1x32xf32>
    %cst_58 = arith.constant 9.99999974E-6 : f32
    %110 = vector.broadcast %cst_58 : f32 to vector<1x32xf32>
    %111 = arith.addf %109, %110 : vector<1x32xf32>
    %112 = math.rsqrt %111 : vector<1x32xf32>
    %113 = vector.broadcast %112 : vector<1x32xf32> to vector<2x32xf32>
    %114 = arith.mulf %104, %113 : vector<2x32xf32>
    %115 = vector.broadcast %97 : vector<1x32xf32> to vector<2x32xf32>
    %116 = arith.mulf %114, %115 : vector<2x32xf32>
    %117 = vector.broadcast %98 : vector<1x32xf32> to vector<2x32xf32>
    %118 = arith.addf %116, %117 : vector<2x32xf32>
    %cst_59 = arith.constant 0.000000e+00 : f32
    %119 = vector.broadcast %cst_59 : f32 to vector<2x32xf32>
    %120 = arith.maximumf %118, %119 : vector<2x32xf32>
    %121 = arith.truncf %120 : vector<2x32xf32> to vector<2x32xbf16>
    %c0_60 = arith.constant 0 : index
    %c0_61 = arith.constant 0 : index
    %122 = vector.load %arg18[%c0_60, %c0_61] : memref<32x32xbf16, #tpu.memory_space<vmem>>, vector<32x32xbf16>
    %c0_62 = arith.constant 0 : index
    %c0_63 = arith.constant 0 : index
    %123 = vector.load %arg19[%c0_62, %c0_63] : memref<1x32xf32, #tpu.memory_space<vmem>>, vector<1x32xf32>
    %cst_64 = arith.constant dense<0.000000e+00> : vector<2x32xf32>
    %124 = tpu.matmul %121, %122, %cst_64 {dimension_numbers = #tpu.dot_dimension_numbers<[1], [0], [0], [1], [0, 0, 1, 1], [], []>} : vector<2x32xbf16>, vector<32x32xbf16>, vector<2x32xf32> -> vector<2x32xf32>
    %125 = vector.broadcast %123 : vector<1x32xf32> to vector<2x32xf32>
    %126 = arith.addf %124, %125 : vector<2x32xf32>
    %c0_65 = arith.constant 0 : index
    %c0_66 = arith.constant 0 : index
    %127 = vector.load %arg20[%c0_65, %c0_66] : memref<1x32xf32, #tpu.memory_space<vmem>>, vector<1x32xf32>
    %c0_67 = arith.constant 0 : index
    %c0_68 = arith.constant 0 : index
    %128 = vector.load %arg21[%c0_67, %c0_68] : memref<1x32xf32, #tpu.memory_space<vmem>>, vector<1x32xf32>
    %cst_69 = arith.constant dense<0.000000e+00> : vector<32xf32>
    %129 = vector.multi_reduction <add>, %126, %cst_69 [0] : vector<2x32xf32> to vector<32xf32>
    %130 = vector.shape_cast %129 : vector<32xf32> to vector<1x32xf32>
    %cst_70 = arith.constant 5.000000e-01 : f32
    %131 = vector.broadcast %cst_70 : f32 to vector<1x32xf32>
    %132 = arith.mulf %130, %131 : vector<1x32xf32>
    %133 = vector.broadcast %132 : vector<1x32xf32> to vector<2x32xf32>
    %134 = arith.subf %126, %133 : vector<2x32xf32>
    %135 = arith.mulf %134, %134 : vector<2x32xf32>
    %cst_71 = arith.constant dense<0.000000e+00> : vector<32xf32>
    %136 = vector.multi_reduction <add>, %135, %cst_71 [0] : vector<2x32xf32> to vector<32xf32>
    %137 = vector.shape_cast %136 : vector<32xf32> to vector<1x32xf32>
    %cst_72 = arith.constant 5.000000e-01 : f32
    %138 = vector.broadcast %cst_72 : f32 to vector<1x32xf32>
    %139 = arith.mulf %137, %138 : vector<1x32xf32>
    %cst_73 = arith.constant 9.99999974E-6 : f32
    %140 = vector.broadcast %cst_73 : f32 to vector<1x32xf32>
    %141 = arith.addf %139, %140 : vector<1x32xf32>
    %142 = math.rsqrt %141 : vector<1x32xf32>
    %143 = vector.broadcast %142 : vector<1x32xf32> to vector<2x32xf32>
    %144 = arith.mulf %134, %143 : vector<2x32xf32>
    %145 = vector.broadcast %127 : vector<1x32xf32> to vector<2x32xf32>
    %146 = arith.mulf %144, %145 : vector<2x32xf32>
    %147 = vector.broadcast %128 : vector<1x32xf32> to vector<2x32xf32>
    %148 = arith.addf %146, %147 : vector<2x32xf32>
    %cst_74 = arith.constant 0.000000e+00 : f32
    %149 = vector.broadcast %cst_74 : f32 to vector<2x32xf32>
    %150 = arith.maximumf %148, %149 : vector<2x32xf32>
    %c0_75 = arith.constant 0 : index
    %c0_76 = arith.constant 0 : index
    %151 = vector.load %arg22[%c0_75, %c0_76] : memref<2x32xf32, #tpu.memory_space<vmem>>, vector<2x32xf32>
    tpu.vector_store %arg22[%c0_75, %c0_76], %150 {strides = array<i32>} : memref<2x32xf32, #tpu.memory_space<vmem>>, vector<2x32xf32>,
    return
  }
  func.func @transform_0(%arg0: i32) -> (i32, i32) {
    %c0_i32 = arith.constant 0 : i32
    %c0_i32_0 = arith.constant 0 : i32
    %c0_i32_1 = arith.constant 0 : i32
    return %c0_i32, %c0_i32_0 : i32, i32
  }
  func.func @transform_1(%arg0: i32) -> (i32, i32) {
    %c0_i32 = arith.constant 0 : i32
    %c0_i32_0 = arith.constant 0 : i32
    %c0_i32_1 = arith.constant 0 : i32
    return %c0_i32, %c0_i32_0 : i32, i32
  }
  func.func @transform_2(%arg0: i32) -> (i32, i32) {
    %c0_i32 = arith.constant 0 : i32
    %c0_i32_0 = arith.constant 0 : i32
    %c0_i32_1 = arith.constant 0 : i32
    return %c0_i32, %c0_i32_0 : i32, i32
  }
  func.func @transform_3(%arg0: i32) -> (i32, i32) {
    %c0_i32 = arith.constant 0 : i32
    %c0_i32_0 = arith.constant 0 : i32
    %c0_i32_1 = arith.constant 0 : i32
    return %c0_i32, %c0_i32_0 : i32, i32
  }
  func.func @transform_4(%arg0: i32) -> (i32, i32) {
    %c0_i32 = arith.constant 0 : i32
    %c0_i32_0 = arith.constant 0 : i32
    %c0_i32_1 = arith.constant 0 : i32
    return %c0_i32, %c0_i32_0 : i32, i32
  }
  func.func @transform_5(%arg0: i32) -> (i32, i32) {
    %c0_i32 = arith.constant 0 : i32
    %c0_i32_0 = arith.constant 0 : i32
    %c0_i32_1 = arith.constant 0 : i32
    return %c0_i32, %c0_i32_0 : i32, i32
  }
  func.func @transform_6(%arg0: i32) -> (i32, i32) {
    %c0_i32 = arith.constant 0 : i32
    %c0_i32_0 = arith.constant 0 : i32
    %c0_i32_1 = arith.constant 0 : i32
    return %c0_i32, %c0_i32_0 : i32, i32
  }
  func.func @transform_7(%arg0: i32) -> (i32, i32) {
    %c0_i32 = arith.constant 0 : i32
    %c0_i32_0 = arith.constant 0 : i32
    %c0_i32_1 = arith.constant 0 : i32
    return %c0_i32, %c0_i32_0 : i32, i32
  }
  func.func @transform_8(%arg0: i32) -> (i32, i32) {
    %c0_i32 = arith.constant 0 : i32
    %c0_i32_0 = arith.constant 0 : i32
    %c0_i32_1 = arith.constant 0 : i32
    return %c0_i32, %c0_i32_0 : i32, i32
  }
  func.func @transform_9(%arg0: i32) -> (i32, i32) {
    %c0_i32 = arith.constant 0 : i32
    %c0_i32_0 = arith.constant 0 : i32
    %c0_i32_1 = arith.constant 0 : i32
    return %c0_i32, %c0_i32_0 : i32, i32
  }
  func.func @transform_10(%arg0: i32) -> (i32, i32) {
    %c0_i32 = arith.constant 0 : i32
    %c0_i32_0 = arith.constant 0 : i32
    %c0_i32_1 = arith.constant 0 : i32
    return %c0_i32, %c0_i32_0 : i32, i32
  }
  func.func @transform_11(%arg0: i32) -> (i32, i32) {
    %c0_i32 = arith.constant 0 : i32
    %c0_i32_0 = arith.constant 0 : i32
    %c0_i32_1 = arith.constant 0 : i32
    return %c0_i32, %c0_i32_0 : i32, i32
  }
  func.func @transform_12(%arg0: i32) -> (i32, i32) {
    %c0_i32 = arith.constant 0 : i32
    %c0_i32_0 = arith.constant 0 : i32
    %c0_i32_1 = arith.constant 0 : i32
    return %c0_i32, %c0_i32_0 : i32, i32
  }
  func.func @transform_13(%arg0: i32) -> (i32, i32) {
    %c0_i32 = arith.constant 0 : i32
    %c0_i32_0 = arith.constant 0 : i32
    %c0_i32_1 = arith.constant 0 : i32
    return %c0_i32, %c0_i32_0 : i32, i32
  }
  func.func @transform_14(%arg0: i32) -> (i32, i32) {
    %c0_i32 = arith.constant 0 : i32
    %c0_i32_0 = arith.constant 0 : i32
    %c0_i32_1 = arith.constant 0 : i32
    return %c0_i32, %c0_i32_0 : i32, i32
  }
  func.func @transform_15(%arg0: i32) -> (i32, i32) {
    %c0_i32 = arith.constant 0 : i32
    %c0_i32_0 = arith.constant 0 : i32
    %c0_i32_1 = arith.constant 0 : i32
    return %c0_i32, %c0_i32_0 : i32, i32
  }
  func.func @transform_16(%arg0: i32) -> (i32, i32) {
    %c0_i32 = arith.constant 0 : i32
    %c0_i32_0 = arith.constant 0 : i32
    %c0_i32_1 = arith.constant 0 : i32
    return %c0_i32, %c0_i32_0 : i32, i32
  }
  func.func @transform_17(%arg0: i32) -> (i32, i32) {
    %c0_i32 = arith.constant 0 : i32
    %c0_i32_0 = arith.constant 0 : i32
    %c0_i32_1 = arith.constant 0 : i32
    return %c0_i32, %c0_i32_0 : i32, i32
  }
  func.func @transform_18(%arg0: i32) -> (i32, i32) {
    %c0_i32 = arith.constant 0 : i32
    %c0_i32_0 = arith.constant 0 : i32
    %c0_i32_1 = arith.constant 0 : i32
    return %c0_i32, %c0_i32_0 : i32, i32
  }
  func.func @transform_19(%arg0: i32) -> (i32, i32) {
    %c0_i32 = arith.constant 0 : i32
    %c0_i32_0 = arith.constant 0 : i32
    %c0_i32_1 = arith.constant 0 : i32
    return %c0_i32, %c0_i32_0 : i32, i32
  }
  func.func @transform_20(%arg0: i32) -> (i32, i32) {
    %c0_i32 = arith.constant 0 : i32
    %c0_i32_0 = arith.constant 0 : i32
    %c0_i32_1 = arith.constant 0 : i32
    return %c0_i32, %c0_i32_0 : i32, i32
  }
  func.func @transform_21(%arg0: i32) -> (i32, i32) {
    %c0_i32 = arith.constant 0 : i32
    %c0_i32_0 = arith.constant 0 : i32
    %c0_i32_1 = arith.constant 0 : i32
    return %c0_i32, %c0_i32_0 : i32, i32
  }
}

module attributes {stable_mosaic.version = 11 : i64} {
  func.func @_decoder_kernel(%arg0: i32, %arg1: memref<2x16x8xf32, #tpu.memory_space<vmem>>, %arg2: memref<2x32xf32, #tpu.memory_space<vmem>>, %arg3: memref<2x8x32xbf16, #tpu.memory_space<vmem>>, %arg4: memref<2x1x32xf32, #tpu.memory_space<vmem>>, %arg5: memref<2x1x32xf32, #tpu.memory_space<vmem>>, %arg6: memref<2x1x32xf32, #tpu.memory_space<vmem>>, %arg7: memref<2x32x32xbf16, #tpu.memory_space<vmem>>, %arg8: memref<2x1x32xf32, #tpu.memory_space<vmem>>, %arg9: memref<2x1x32xf32, #tpu.memory_space<vmem>>, %arg10: memref<2x1x32xf32, #tpu.memory_space<vmem>>, %arg11: memref<2x2x32x32xbf16, #tpu.memory_space<vmem>>, %arg12: memref<2x2x1x32xf32, #tpu.memory_space<vmem>>, %arg13: memref<2x2x1x32xf32, #tpu.memory_space<vmem>>, %arg14: memref<2x2x1x32xf32, #tpu.memory_space<vmem>>, %arg15: memref<2x8x32xbf16, #tpu.memory_space<vmem>>, %arg16: memref<2x8x1xf32, #tpu.memory_space<vmem>>, %arg17: memref<2x8x32xf32, #tpu.memory_space<vmem>>) attributes {dimension_semantics = [#tpu.dimension_semantics<parallel>], iteration_bounds = array<i64: 2>, scalar_prefetch = 0 : i64, scratch_operands = 0 : i64, tpu.core_type = #tpu.core_type<tc>, window_params = [{transform_indices = @transform_0, window_bounds = array<i64: 2, 16, 8>}, {pipeline_mode = #tpu.pipeline_mode<synchronous>, transform_indices = @transform_1, window_bounds = array<i64: 2, 32>}, {transform_indices = @transform_2, window_bounds = array<i64: 2, 8, 32>}, {transform_indices = @transform_3, window_bounds = array<i64: 2, 1, 32>}, {transform_indices = @transform_4, window_bounds = array<i64: 2, 1, 32>}, {transform_indices = @transform_5, window_bounds = array<i64: 2, 1, 32>}, {transform_indices = @transform_6, window_bounds = array<i64: 2, 32, 32>}, {transform_indices = @transform_7, window_bounds = array<i64: 2, 1, 32>}, {transform_indices = @transform_8, window_bounds = array<i64: 2, 1, 32>}, {transform_indices = @transform_9, window_bounds = array<i64: 2, 1, 32>}, {transform_indices = @transform_10, window_bounds = array<i64: 2, 2, 32, 32>}, {transform_indices = @transform_11, window_bounds = array<i64: 2, 2, 1, 32>}, {transform_indices = @transform_12, window_bounds = array<i64: 2, 2, 1, 32>}, {transform_indices = @transform_13, window_bounds = array<i64: 2, 2, 1, 32>}, {transform_indices = @transform_14, window_bounds = array<i64: 2, 8, 32>}, {transform_indices = @transform_15, window_bounds = array<i64: 2, 8, 1>}, {transform_indices = @transform_16, window_bounds = array<i64: 2, 8, 32>}]} {
    %c0 = arith.constant 0 : index
    %c0_0 = arith.constant 0 : index
    %0 = vector.load %arg2[%c0, %c0_0] : memref<2x32xf32, #tpu.memory_space<vmem>>, vector<2x32xf32>
    %c0_1 = arith.constant 0 : index
    %c0_2 = arith.constant 0 : index
    %c0_3 = arith.constant 0 : index
    %1 = vector.load %arg1[%c0_1, %c0_2, %c0_3] : memref<2x16x8xf32, #tpu.memory_space<vmem>>, vector<1x16x8xf32>
    %2 = vector.shape_cast %1 : vector<1x16x8xf32> to vector<16x8xf32>
    %c0_4 = arith.constant 0 : index
    %c0_5 = arith.constant 0 : index
    %c0_6 = arith.constant 0 : index
    %3 = vector.load %arg3[%c0_4, %c0_5, %c0_6] : memref<2x8x32xbf16, #tpu.memory_space<vmem>>, vector<1x8x32xbf16>
    %4 = vector.shape_cast %3 : vector<1x8x32xbf16> to vector<8x32xbf16>
    %c0_7 = arith.constant 0 : index
    %c0_8 = arith.constant 0 : index
    %c0_9 = arith.constant 0 : index
    %5 = vector.load %arg4[%c0_7, %c0_8, %c0_9] : memref<2x1x32xf32, #tpu.memory_space<vmem>>, vector<1x1x32xf32>
    %6 = vector.shape_cast %5 : vector<1x1x32xf32> to vector<1x32xf32>
    %7 = arith.truncf %2 : vector<16x8xf32> to vector<16x8xbf16>
    %cst = arith.constant dense<0.000000e+00> : vector<16x32xf32>
    %8 = tpu.matmul %7, %4, %cst {dimension_numbers = #tpu.dot_dimension_numbers<[1], [0], [0], [1], [0, 0, 1, 1], [], []>} : vector<16x8xbf16>, vector<8x32xbf16>, vector<16x32xf32> -> vector<16x32xf32>
    %9 = vector.broadcast %6 : vector<1x32xf32> to vector<16x32xf32>
    %10 = arith.addf %8, %9 : vector<16x32xf32>
    %11 = vector.shape_cast %10 : vector<16x32xf32> to vector<1x16x32xf32>
    %12 = vector.shape_cast %0 : vector<2x32xf32> to vector<2x1x32xf32>
    %13 = vector.broadcast %11 : vector<1x16x32xf32> to vector<2x16x32xf32>
    %14 = vector.broadcast %12 : vector<2x1x32xf32> to vector<2x16x32xf32>
    %15 = arith.addf %13, %14 : vector<2x16x32xf32>
    %16 = vector.shape_cast %15 : vector<2x16x32xf32> to vector<32x32xf32>
    %c0_10 = arith.constant 0 : index
    %c0_11 = arith.constant 0 : index
    %c0_12 = arith.constant 0 : index
    %17 = vector.load %arg5[%c0_10, %c0_11, %c0_12] : memref<2x1x32xf32, #tpu.memory_space<vmem>>, vector<1x1x32xf32>
    %18 = vector.shape_cast %17 : vector<1x1x32xf32> to vector<1x32xf32>
    %c0_13 = arith.constant 0 : index
    %c0_14 = arith.constant 0 : index
    %c0_15 = arith.constant 0 : index
    %19 = vector.load %arg6[%c0_13, %c0_14, %c0_15] : memref<2x1x32xf32, #tpu.memory_space<vmem>>, vector<1x1x32xf32>
    %20 = vector.shape_cast %19 : vector<1x1x32xf32> to vector<1x32xf32>
    %cst_16 = arith.constant dense<0.000000e+00> : vector<32xf32>
    %21 = vector.multi_reduction <add>, %16, %cst_16 [0] : vector<32x32xf32> to vector<32xf32>
    %22 = vector.shape_cast %21 : vector<32xf32> to vector<1x32xf32>
    %cst_17 = arith.constant 3.125000e-02 : f32
    %23 = vector.broadcast %cst_17 : f32 to vector<1x32xf32>
    %24 = arith.mulf %22, %23 : vector<1x32xf32>
    %25 = vector.broadcast %24 : vector<1x32xf32> to vector<32x32xf32>
    %26 = arith.subf %16, %25 : vector<32x32xf32>
    %27 = arith.mulf %26, %26 : vector<32x32xf32>
    %cst_18 = arith.constant dense<0.000000e+00> : vector<32xf32>
    %28 = vector.multi_reduction <add>, %27, %cst_18 [0] : vector<32x32xf32> to vector<32xf32>
    %29 = vector.shape_cast %28 : vector<32xf32> to vector<1x32xf32>
    %cst_19 = arith.constant 3.125000e-02 : f32
    %30 = vector.broadcast %cst_19 : f32 to vector<1x32xf32>
    %31 = arith.mulf %29, %30 : vector<1x32xf32>
    %cst_20 = arith.constant 9.99999974E-6 : f32
    %32 = vector.broadcast %cst_20 : f32 to vector<1x32xf32>
    %33 = arith.addf %31, %32 : vector<1x32xf32>
    %34 = math.rsqrt %33 : vector<1x32xf32>
    %35 = vector.broadcast %34 : vector<1x32xf32> to vector<32x32xf32>
    %36 = arith.mulf %26, %35 : vector<32x32xf32>
    %37 = vector.broadcast %18 : vector<1x32xf32> to vector<32x32xf32>
    %38 = arith.mulf %36, %37 : vector<32x32xf32>
    %39 = vector.broadcast %20 : vector<1x32xf32> to vector<32x32xf32>
    %40 = arith.addf %38, %39 : vector<32x32xf32>
    %cst_21 = arith.constant 0.000000e+00 : f32
    %41 = vector.broadcast %cst_21 : f32 to vector<32x32xf32>
    %42 = arith.maximumf %40, %41 : vector<32x32xf32>
    %43 = arith.truncf %42 : vector<32x32xf32> to vector<32x32xbf16>
    %c0_22 = arith.constant 0 : index
    %c0_23 = arith.constant 0 : index
    %c0_24 = arith.constant 0 : index
    %44 = vector.load %arg7[%c0_22, %c0_23, %c0_24] : memref<2x32x32xbf16, #tpu.memory_space<vmem>>, vector<1x32x32xbf16>
    %45 = vector.shape_cast %44 : vector<1x32x32xbf16> to vector<32x32xbf16>
    %c0_25 = arith.constant 0 : index
    %c0_26 = arith.constant 0 : index
    %c0_27 = arith.constant 0 : index
    %46 = vector.load %arg8[%c0_25, %c0_26, %c0_27] : memref<2x1x32xf32, #tpu.memory_space<vmem>>, vector<1x1x32xf32>
    %47 = vector.shape_cast %46 : vector<1x1x32xf32> to vector<1x32xf32>
    %cst_28 = arith.constant dense<0.000000e+00> : vector<32x32xf32>
    %48 = tpu.matmul %43, %45, %cst_28 {dimension_numbers = #tpu.dot_dimension_numbers<[1], [0], [0], [1], [0, 0, 1, 1], [], []>} : vector<32x32xbf16>, vector<32x32xbf16>, vector<32x32xf32> -> vector<32x32xf32>
    %49 = vector.broadcast %47 : vector<1x32xf32> to vector<32x32xf32>
    %50 = arith.addf %48, %49 : vector<32x32xf32>
    %c0_29 = arith.constant 0 : index
    %c0_30 = arith.constant 0 : index
    %c0_31 = arith.constant 0 : index
    %51 = vector.load %arg9[%c0_29, %c0_30, %c0_31] : memref<2x1x32xf32, #tpu.memory_space<vmem>>, vector<1x1x32xf32>
    %52 = vector.shape_cast %51 : vector<1x1x32xf32> to vector<1x32xf32>
    %c0_32 = arith.constant 0 : index
    %c0_33 = arith.constant 0 : index
    %c0_34 = arith.constant 0 : index
    %53 = vector.load %arg10[%c0_32, %c0_33, %c0_34] : memref<2x1x32xf32, #tpu.memory_space<vmem>>, vector<1x1x32xf32>
    %54 = vector.shape_cast %53 : vector<1x1x32xf32> to vector<1x32xf32>
    %cst_35 = arith.constant dense<0.000000e+00> : vector<32xf32>
    %55 = vector.multi_reduction <add>, %50, %cst_35 [0] : vector<32x32xf32> to vector<32xf32>
    %56 = vector.shape_cast %55 : vector<32xf32> to vector<1x32xf32>
    %cst_36 = arith.constant 3.125000e-02 : f32
    %57 = vector.broadcast %cst_36 : f32 to vector<1x32xf32>
    %58 = arith.mulf %56, %57 : vector<1x32xf32>
    %59 = vector.broadcast %58 : vector<1x32xf32> to vector<32x32xf32>
    %60 = arith.subf %50, %59 : vector<32x32xf32>
    %61 = arith.mulf %60, %60 : vector<32x32xf32>
    %cst_37 = arith.constant dense<0.000000e+00> : vector<32xf32>
    %62 = vector.multi_reduction <add>, %61, %cst_37 [0] : vector<32x32xf32> to vector<32xf32>
    %63 = vector.shape_cast %62 : vector<32xf32> to vector<1x32xf32>
    %cst_38 = arith.constant 3.125000e-02 : f32
    %64 = vector.broadcast %cst_38 : f32 to vector<1x32xf32>
    %65 = arith.mulf %63, %64 : vector<1x32xf32>
    %cst_39 = arith.constant 9.99999974E-6 : f32
    %66 = vector.broadcast %cst_39 : f32 to vector<1x32xf32>
    %67 = arith.addf %65, %66 : vector<1x32xf32>
    %68 = math.rsqrt %67 : vector<1x32xf32>
    %69 = vector.broadcast %68 : vector<1x32xf32> to vector<32x32xf32>
    %70 = arith.mulf %60, %69 : vector<32x32xf32>
    %71 = vector.broadcast %52 : vector<1x32xf32> to vector<32x32xf32>
    %72 = arith.mulf %70, %71 : vector<32x32xf32>
    %73 = vector.broadcast %54 : vector<1x32xf32> to vector<32x32xf32>
    %74 = arith.addf %72, %73 : vector<32x32xf32>
    %cst_40 = arith.constant 0.000000e+00 : f32
    %75 = vector.broadcast %cst_40 : f32 to vector<32x32xf32>
    %76 = arith.maximumf %74, %75 : vector<32x32xf32>
    %77 = arith.truncf %76 : vector<32x32xf32> to vector<32x32xbf16>
    %c0_41 = arith.constant 0 : index
    %c0_42 = arith.constant 0 : index
    %c0_43 = arith.constant 0 : index
    %c0_44 = arith.constant 0 : index
    %78 = vector.load %arg11[%c0_41, %c0_42, %c0_43, %c0_44] : memref<2x2x32x32xbf16, #tpu.memory_space<vmem>>, vector<1x1x32x32xbf16>
    %79 = vector.shape_cast %78 : vector<1x1x32x32xbf16> to vector<32x32xbf16>
    %c0_45 = arith.constant 0 : index
    %c0_46 = arith.constant 0 : index
    %c0_47 = arith.constant 0 : index
    %c0_48 = arith.constant 0 : index
    %80 = vector.load %arg12[%c0_45, %c0_46, %c0_47, %c0_48] : memref<2x2x1x32xf32, #tpu.memory_space<vmem>>, vector<1x1x1x32xf32>
    %81 = vector.shape_cast %80 : vector<1x1x1x32xf32> to vector<1x32xf32>
    %cst_49 = arith.constant dense<0.000000e+00> : vector<32x32xf32>
    %82 = tpu.matmul %77, %79, %cst_49 {dimension_numbers = #tpu.dot_dimension_numbers<[1], [0], [0], [1], [0, 0, 1, 1], [], []>} : vector<32x32xbf16>, vector<32x32xbf16>, vector<32x32xf32> -> vector<32x32xf32>
    %83 = vector.broadcast %81 : vector<1x32xf32> to vector<32x32xf32>
    %84 = arith.addf %82, %83 : vector<32x32xf32>
    %c0_50 = arith.constant 0 : index
    %c0_51 = arith.constant 0 : index
    %c0_52 = arith.constant 0 : index
    %c0_53 = arith.constant 0 : index
    %85 = vector.load %arg13[%c0_50, %c0_51, %c0_52, %c0_53] : memref<2x2x1x32xf32, #tpu.memory_space<vmem>>, vector<1x1x1x32xf32>
    %86 = vector.shape_cast %85 : vector<1x1x1x32xf32> to vector<1x32xf32>
    %c0_54 = arith.constant 0 : index
    %c0_55 = arith.constant 0 : index
    %c0_56 = arith.constant 0 : index
    %c0_57 = arith.constant 0 : index
    %87 = vector.load %arg14[%c0_54, %c0_55, %c0_56, %c0_57] : memref<2x2x1x32xf32, #tpu.memory_space<vmem>>, vector<1x1x1x32xf32>
    %88 = vector.shape_cast %87 : vector<1x1x1x32xf32> to vector<1x32xf32>
    %cst_58 = arith.constant dense<0.000000e+00> : vector<32xf32>
    %89 = vector.multi_reduction <add>, %84, %cst_58 [0] : vector<32x32xf32> to vector<32xf32>
    %90 = vector.shape_cast %89 : vector<32xf32> to vector<1x32xf32>
    %cst_59 = arith.constant 3.125000e-02 : f32
    %91 = vector.broadcast %cst_59 : f32 to vector<1x32xf32>
    %92 = arith.mulf %90, %91 : vector<1x32xf32>
    %93 = vector.broadcast %92 : vector<1x32xf32> to vector<32x32xf32>
    %94 = arith.subf %84, %93 : vector<32x32xf32>
    %95 = arith.mulf %94, %94 : vector<32x32xf32>
    %cst_60 = arith.constant dense<0.000000e+00> : vector<32xf32>
    %96 = vector.multi_reduction <add>, %95, %cst_60 [0] : vector<32x32xf32> to vector<32xf32>
    %97 = vector.shape_cast %96 : vector<32xf32> to vector<1x32xf32>
    %cst_61 = arith.constant 3.125000e-02 : f32
    %98 = vector.broadcast %cst_61 : f32 to vector<1x32xf32>
    %99 = arith.mulf %97, %98 : vector<1x32xf32>
    %cst_62 = arith.constant 9.99999974E-6 : f32
    %100 = vector.broadcast %cst_62 : f32 to vector<1x32xf32>
    %101 = arith.addf %99, %100 : vector<1x32xf32>
    %102 = math.rsqrt %101 : vector<1x32xf32>
    %103 = vector.broadcast %102 : vector<1x32xf32> to vector<32x32xf32>
    %104 = arith.mulf %94, %103 : vector<32x32xf32>
    %105 = vector.broadcast %86 : vector<1x32xf32> to vector<32x32xf32>
    %106 = arith.mulf %104, %105 : vector<32x32xf32>
    %107 = vector.broadcast %88 : vector<1x32xf32> to vector<32x32xf32>
    %108 = arith.addf %106, %107 : vector<32x32xf32>
    %cst_63 = arith.constant 0.000000e+00 : f32
    %109 = vector.broadcast %cst_63 : f32 to vector<32x32xf32>
    %110 = arith.maximumf %108, %109 : vector<32x32xf32>
    %111 = arith.truncf %110 : vector<32x32xf32> to vector<32x32xbf16>
    %c0_64 = arith.constant 0 : index
    %c1 = arith.constant 1 : index
    %c0_65 = arith.constant 0 : index
    %c0_66 = arith.constant 0 : index
    %112 = vector.load %arg11[%c0_64, %c1, %c0_65, %c0_66] : memref<2x2x32x32xbf16, #tpu.memory_space<vmem>>, vector<1x1x32x32xbf16>
    %113 = vector.shape_cast %112 : vector<1x1x32x32xbf16> to vector<32x32xbf16>
    %c0_67 = arith.constant 0 : index
    %c1_68 = arith.constant 1 : index
    %c0_69 = arith.constant 0 : index
    %c0_70 = arith.constant 0 : index
    %114 = vector.load %arg12[%c0_67, %c1_68, %c0_69, %c0_70] : memref<2x2x1x32xf32, #tpu.memory_space<vmem>>, vector<1x1x1x32xf32>
    %115 = vector.shape_cast %114 : vector<1x1x1x32xf32> to vector<1x32xf32>
    %cst_71 = arith.constant dense<0.000000e+00> : vector<32x32xf32>
    %116 = tpu.matmul %111, %113, %cst_71 {dimension_numbers = #tpu.dot_dimension_numbers<[1], [0], [0], [1], [0, 0, 1, 1], [], []>} : vector<32x32xbf16>, vector<32x32xbf16>, vector<32x32xf32> -> vector<32x32xf32>
    %117 = vector.broadcast %115 : vector<1x32xf32> to vector<32x32xf32>
    %118 = arith.addf %116, %117 : vector<32x32xf32>
    %c0_72 = arith.constant 0 : index
    %c1_73 = arith.constant 1 : index
    %c0_74 = arith.constant 0 : index
    %c0_75 = arith.constant 0 : index
    %119 = vector.load %arg13[%c0_72, %c1_73, %c0_74, %c0_75] : memref<2x2x1x32xf32, #tpu.memory_space<vmem>>, vector<1x1x1x32xf32>
    %120 = vector.shape_cast %119 : vector<1x1x1x32xf32> to vector<1x32xf32>
    %c0_76 = arith.constant 0 : index
    %c1_77 = arith.constant 1 : index
    %c0_78 = arith.constant 0 : index
    %c0_79 = arith.constant 0 : index
    %121 = vector.load %arg14[%c0_76, %c1_77, %c0_78, %c0_79] : memref<2x2x1x32xf32, #tpu.memory_space<vmem>>, vector<1x1x1x32xf32>
    %122 = vector.shape_cast %121 : vector<1x1x1x32xf32> to vector<1x32xf32>
    %cst_80 = arith.constant dense<0.000000e+00> : vector<32xf32>
    %123 = vector.multi_reduction <add>, %118, %cst_80 [0] : vector<32x32xf32> to vector<32xf32>
    %124 = vector.shape_cast %123 : vector<32xf32> to vector<1x32xf32>
    %cst_81 = arith.constant 3.125000e-02 : f32
    %125 = vector.broadcast %cst_81 : f32 to vector<1x32xf32>
    %126 = arith.mulf %124, %125 : vector<1x32xf32>
    %127 = vector.broadcast %126 : vector<1x32xf32> to vector<32x32xf32>
    %128 = arith.subf %118, %127 : vector<32x32xf32>
    %129 = arith.mulf %128, %128 : vector<32x32xf32>
    %cst_82 = arith.constant dense<0.000000e+00> : vector<32xf32>
    %130 = vector.multi_reduction <add>, %129, %cst_82 [0] : vector<32x32xf32> to vector<32xf32>
    %131 = vector.shape_cast %130 : vector<32xf32> to vector<1x32xf32>
    %cst_83 = arith.constant 3.125000e-02 : f32
    %132 = vector.broadcast %cst_83 : f32 to vector<1x32xf32>
    %133 = arith.mulf %131, %132 : vector<1x32xf32>
    %cst_84 = arith.constant 9.99999974E-6 : f32
    %134 = vector.broadcast %cst_84 : f32 to vector<1x32xf32>
    %135 = arith.addf %133, %134 : vector<1x32xf32>
    %136 = math.rsqrt %135 : vector<1x32xf32>
    %137 = vector.broadcast %136 : vector<1x32xf32> to vector<32x32xf32>
    %138 = arith.mulf %128, %137 : vector<32x32xf32>
    %139 = vector.broadcast %120 : vector<1x32xf32> to vector<32x32xf32>
    %140 = arith.mulf %138, %139 : vector<32x32xf32>
    %141 = vector.broadcast %122 : vector<1x32xf32> to vector<32x32xf32>
    %142 = arith.addf %140, %141 : vector<32x32xf32>
    %cst_85 = arith.constant 0.000000e+00 : f32
    %143 = vector.broadcast %cst_85 : f32 to vector<32x32xf32>
    %144 = arith.maximumf %142, %143 : vector<32x32xf32>
    %145 = arith.truncf %144 : vector<32x32xf32> to vector<32x32xbf16>
    %c0_86 = arith.constant 0 : index
    %c0_87 = arith.constant 0 : index
    %c0_88 = arith.constant 0 : index
    %146 = vector.load %arg15[%c0_86, %c0_87, %c0_88] : memref<2x8x32xbf16, #tpu.memory_space<vmem>>, vector<1x8x32xbf16>
    %147 = vector.shape_cast %146 : vector<1x8x32xbf16> to vector<8x32xbf16>
    %cst_89 = arith.constant dense<0.000000e+00> : vector<8x32xf32>
    %148 = tpu.matmul %147, %145, %cst_89 {dimension_numbers = #tpu.dot_dimension_numbers<[1], [1], [0], [0], [0, 0, 1, 0], [], []>} : vector<8x32xbf16>, vector<32x32xbf16>, vector<8x32xf32> -> vector<8x32xf32>
    %c0_90 = arith.constant 0 : index
    %c0_91 = arith.constant 0 : index
    %c0_92 = arith.constant 0 : index
    %149 = vector.load %arg16[%c0_90, %c0_91, %c0_92] : memref<2x8x1xf32, #tpu.memory_space<vmem>>, vector<1x8x1xf32>
    %150 = vector.shape_cast %149 : vector<1x8x1xf32> to vector<8x1xf32>
    %151 = vector.broadcast %150 : vector<8x1xf32> to vector<8x32xf32>
    %152 = arith.addf %148, %151 : vector<8x32xf32>
    %c0_93 = arith.constant 0 : index
    %c0_94 = arith.constant 0 : index
    %c0_95 = arith.constant 0 : index
    %153 = vector.load %arg17[%c0_93, %c0_94, %c0_95] : memref<2x8x32xf32, #tpu.memory_space<vmem>>, vector<1x8x32xf32>
    %154 = vector.shape_cast %153 : vector<1x8x32xf32> to vector<8x32xf32>
    %155 = vector.shape_cast %152 : vector<8x32xf32> to vector<1x8x32xf32>
    tpu.vector_store %arg17[%c0_93, %c0_94, %c0_95], %155 {strides = array<i32>} : memref<2x8x32xf32, #tpu.memory_space<vmem>>, vector<1x8x32xf32>,
    %c1_96 = arith.constant 1 : index
    %c0_97 = arith.constant 0 : index
    %c0_98 = arith.constant 0 : index
    %156 = vector.load %arg1[%c1_96, %c0_97, %c0_98] : memref<2x16x8xf32, #tpu.memory_space<vmem>>, vector<1x16x8xf32>
    %157 = vector.shape_cast %156 : vector<1x16x8xf32> to vector<16x8xf32>
    %c1_99 = arith.constant 1 : index
    %c0_100 = arith.constant 0 : index
    %c0_101 = arith.constant 0 : index
    %158 = vector.load %arg3[%c1_99, %c0_100, %c0_101] : memref<2x8x32xbf16, #tpu.memory_space<vmem>>, vector<1x8x32xbf16>
    %159 = vector.shape_cast %158 : vector<1x8x32xbf16> to vector<8x32xbf16>
    %c1_102 = arith.constant 1 : index
    %c0_103 = arith.constant 0 : index
    %c0_104 = arith.constant 0 : index
    %160 = vector.load %arg4[%c1_102, %c0_103, %c0_104] : memref<2x1x32xf32, #tpu.memory_space<vmem>>, vector<1x1x32xf32>
    %161 = vector.shape_cast %160 : vector<1x1x32xf32> to vector<1x32xf32>
    %162 = arith.truncf %157 : vector<16x8xf32> to vector<16x8xbf16>
    %cst_105 = arith.constant dense<0.000000e+00> : vector<16x32xf32>
    %163 = tpu.matmul %162, %159, %cst_105 {dimension_numbers = #tpu.dot_dimension_numbers<[1], [0], [0], [1], [0, 0, 1, 1], [], []>} : vector<16x8xbf16>, vector<8x32xbf16>, vector<16x32xf32> -> vector<16x32xf32>
    %164 = vector.broadcast %161 : vector<1x32xf32> to vector<16x32xf32>
    %165 = arith.addf %163, %164 : vector<16x32xf32>
    %166 = vector.shape_cast %165 : vector<16x32xf32> to vector<1x16x32xf32>
    %167 = vector.shape_cast %0 : vector<2x32xf32> to vector<2x1x32xf32>
    %168 = vector.broadcast %166 : vector<1x16x32xf32> to vector<2x16x32xf32>
    %169 = vector.broadcast %167 : vector<2x1x32xf32> to vector<2x16x32xf32>
    %170 = arith.addf %168, %169 : vector<2x16x32xf32>
    %171 = vector.shape_cast %170 : vector<2x16x32xf32> to vector<32x32xf32>
    %c1_106 = arith.constant 1 : index
    %c0_107 = arith.constant 0 : index
    %c0_108 = arith.constant 0 : index
    %172 = vector.load %arg5[%c1_106, %c0_107, %c0_108] : memref<2x1x32xf32, #tpu.memory_space<vmem>>, vector<1x1x32xf32>
    %173 = vector.shape_cast %172 : vector<1x1x32xf32> to vector<1x32xf32>
    %c1_109 = arith.constant 1 : index
    %c0_110 = arith.constant 0 : index
    %c0_111 = arith.constant 0 : index
    %174 = vector.load %arg6[%c1_109, %c0_110, %c0_111] : memref<2x1x32xf32, #tpu.memory_space<vmem>>, vector<1x1x32xf32>
    %175 = vector.shape_cast %174 : vector<1x1x32xf32> to vector<1x32xf32>
    %cst_112 = arith.constant dense<0.000000e+00> : vector<32xf32>
    %176 = vector.multi_reduction <add>, %171, %cst_112 [0] : vector<32x32xf32> to vector<32xf32>
    %177 = vector.shape_cast %176 : vector<32xf32> to vector<1x32xf32>
    %cst_113 = arith.constant 3.125000e-02 : f32
    %178 = vector.broadcast %cst_113 : f32 to vector<1x32xf32>
    %179 = arith.mulf %177, %178 : vector<1x32xf32>
    %180 = vector.broadcast %179 : vector<1x32xf32> to vector<32x32xf32>
    %181 = arith.subf %171, %180 : vector<32x32xf32>
    %182 = arith.mulf %181, %181 : vector<32x32xf32>
    %cst_114 = arith.constant dense<0.000000e+00> : vector<32xf32>
    %183 = vector.multi_reduction <add>, %182, %cst_114 [0] : vector<32x32xf32> to vector<32xf32>
    %184 = vector.shape_cast %183 : vector<32xf32> to vector<1x32xf32>
    %cst_115 = arith.constant 3.125000e-02 : f32
    %185 = vector.broadcast %cst_115 : f32 to vector<1x32xf32>
    %186 = arith.mulf %184, %185 : vector<1x32xf32>
    %cst_116 = arith.constant 9.99999974E-6 : f32
    %187 = vector.broadcast %cst_116 : f32 to vector<1x32xf32>
    %188 = arith.addf %186, %187 : vector<1x32xf32>
    %189 = math.rsqrt %188 : vector<1x32xf32>
    %190 = vector.broadcast %189 : vector<1x32xf32> to vector<32x32xf32>
    %191 = arith.mulf %181, %190 : vector<32x32xf32>
    %192 = vector.broadcast %173 : vector<1x32xf32> to vector<32x32xf32>
    %193 = arith.mulf %191, %192 : vector<32x32xf32>
    %194 = vector.broadcast %175 : vector<1x32xf32> to vector<32x32xf32>
    %195 = arith.addf %193, %194 : vector<32x32xf32>
    %cst_117 = arith.constant 0.000000e+00 : f32
    %196 = vector.broadcast %cst_117 : f32 to vector<32x32xf32>
    %197 = arith.maximumf %195, %196 : vector<32x32xf32>
    %198 = arith.truncf %197 : vector<32x32xf32> to vector<32x32xbf16>
    %c1_118 = arith.constant 1 : index
    %c0_119 = arith.constant 0 : index
    %c0_120 = arith.constant 0 : index
    %199 = vector.load %arg7[%c1_118, %c0_119, %c0_120] : memref<2x32x32xbf16, #tpu.memory_space<vmem>>, vector<1x32x32xbf16>
    %200 = vector.shape_cast %199 : vector<1x32x32xbf16> to vector<32x32xbf16>
    %c1_121 = arith.constant 1 : index
    %c0_122 = arith.constant 0 : index
    %c0_123 = arith.constant 0 : index
    %201 = vector.load %arg8[%c1_121, %c0_122, %c0_123] : memref<2x1x32xf32, #tpu.memory_space<vmem>>, vector<1x1x32xf32>
    %202 = vector.shape_cast %201 : vector<1x1x32xf32> to vector<1x32xf32>
    %cst_124 = arith.constant dense<0.000000e+00> : vector<32x32xf32>
    %203 = tpu.matmul %198, %200, %cst_124 {dimension_numbers = #tpu.dot_dimension_numbers<[1], [0], [0], [1], [0, 0, 1, 1], [], []>} : vector<32x32xbf16>, vector<32x32xbf16>, vector<32x32xf32> -> vector<32x32xf32>
    %204 = vector.broadcast %202 : vector<1x32xf32> to vector<32x32xf32>
    %205 = arith.addf %203, %204 : vector<32x32xf32>
    %c1_125 = arith.constant 1 : index
    %c0_126 = arith.constant 0 : index
    %c0_127 = arith.constant 0 : index
    %206 = vector.load %arg9[%c1_125, %c0_126, %c0_127] : memref<2x1x32xf32, #tpu.memory_space<vmem>>, vector<1x1x32xf32>
    %207 = vector.shape_cast %206 : vector<1x1x32xf32> to vector<1x32xf32>
    %c1_128 = arith.constant 1 : index
    %c0_129 = arith.constant 0 : index
    %c0_130 = arith.constant 0 : index
    %208 = vector.load %arg10[%c1_128, %c0_129, %c0_130] : memref<2x1x32xf32, #tpu.memory_space<vmem>>, vector<1x1x32xf32>
    %209 = vector.shape_cast %208 : vector<1x1x32xf32> to vector<1x32xf32>
    %cst_131 = arith.constant dense<0.000000e+00> : vector<32xf32>
    %210 = vector.multi_reduction <add>, %205, %cst_131 [0] : vector<32x32xf32> to vector<32xf32>
    %211 = vector.shape_cast %210 : vector<32xf32> to vector<1x32xf32>
    %cst_132 = arith.constant 3.125000e-02 : f32
    %212 = vector.broadcast %cst_132 : f32 to vector<1x32xf32>
    %213 = arith.mulf %211, %212 : vector<1x32xf32>
    %214 = vector.broadcast %213 : vector<1x32xf32> to vector<32x32xf32>
    %215 = arith.subf %205, %214 : vector<32x32xf32>
    %216 = arith.mulf %215, %215 : vector<32x32xf32>
    %cst_133 = arith.constant dense<0.000000e+00> : vector<32xf32>
    %217 = vector.multi_reduction <add>, %216, %cst_133 [0] : vector<32x32xf32> to vector<32xf32>
    %218 = vector.shape_cast %217 : vector<32xf32> to vector<1x32xf32>
    %cst_134 = arith.constant 3.125000e-02 : f32
    %219 = vector.broadcast %cst_134 : f32 to vector<1x32xf32>
    %220 = arith.mulf %218, %219 : vector<1x32xf32>
    %cst_135 = arith.constant 9.99999974E-6 : f32
    %221 = vector.broadcast %cst_135 : f32 to vector<1x32xf32>
    %222 = arith.addf %220, %221 : vector<1x32xf32>
    %223 = math.rsqrt %222 : vector<1x32xf32>
    %224 = vector.broadcast %223 : vector<1x32xf32> to vector<32x32xf32>
    %225 = arith.mulf %215, %224 : vector<32x32xf32>
    %226 = vector.broadcast %207 : vector<1x32xf32> to vector<32x32xf32>
    %227 = arith.mulf %225, %226 : vector<32x32xf32>
    %228 = vector.broadcast %209 : vector<1x32xf32> to vector<32x32xf32>
    %229 = arith.addf %227, %228 : vector<32x32xf32>
    %cst_136 = arith.constant 0.000000e+00 : f32
    %230 = vector.broadcast %cst_136 : f32 to vector<32x32xf32>
    %231 = arith.maximumf %229, %230 : vector<32x32xf32>
    %232 = arith.truncf %231 : vector<32x32xf32> to vector<32x32xbf16>
    %c1_137 = arith.constant 1 : index
    %c0_138 = arith.constant 0 : index
    %c0_139 = arith.constant 0 : index
    %c0_140 = arith.constant 0 : index
    %233 = vector.load %arg11[%c1_137, %c0_138, %c0_139, %c0_140] : memref<2x2x32x32xbf16, #tpu.memory_space<vmem>>, vector<1x1x32x32xbf16>
    %234 = vector.shape_cast %233 : vector<1x1x32x32xbf16> to vector<32x32xbf16>
    %c1_141 = arith.constant 1 : index
    %c0_142 = arith.constant 0 : index
    %c0_143 = arith.constant 0 : index
    %c0_144 = arith.constant 0 : index
    %235 = vector.load %arg12[%c1_141, %c0_142, %c0_143, %c0_144] : memref<2x2x1x32xf32, #tpu.memory_space<vmem>>, vector<1x1x1x32xf32>
    %236 = vector.shape_cast %235 : vector<1x1x1x32xf32> to vector<1x32xf32>
    %cst_145 = arith.constant dense<0.000000e+00> : vector<32x32xf32>
    %237 = tpu.matmul %232, %234, %cst_145 {dimension_numbers = #tpu.dot_dimension_numbers<[1], [0], [0], [1], [0, 0, 1, 1], [], []>} : vector<32x32xbf16>, vector<32x32xbf16>, vector<32x32xf32> -> vector<32x32xf32>
    %238 = vector.broadcast %236 : vector<1x32xf32> to vector<32x32xf32>
    %239 = arith.addf %237, %238 : vector<32x32xf32>
    %c1_146 = arith.constant 1 : index
    %c0_147 = arith.constant 0 : index
    %c0_148 = arith.constant 0 : index
    %c0_149 = arith.constant 0 : index
    %240 = vector.load %arg13[%c1_146, %c0_147, %c0_148, %c0_149] : memref<2x2x1x32xf32, #tpu.memory_space<vmem>>, vector<1x1x1x32xf32>
    %241 = vector.shape_cast %240 : vector<1x1x1x32xf32> to vector<1x32xf32>
    %c1_150 = arith.constant 1 : index
    %c0_151 = arith.constant 0 : index
    %c0_152 = arith.constant 0 : index
    %c0_153 = arith.constant 0 : index
    %242 = vector.load %arg14[%c1_150, %c0_151, %c0_152, %c0_153] : memref<2x2x1x32xf32, #tpu.memory_space<vmem>>, vector<1x1x1x32xf32>
    %243 = vector.shape_cast %242 : vector<1x1x1x32xf32> to vector<1x32xf32>
    %cst_154 = arith.constant dense<0.000000e+00> : vector<32xf32>
    %244 = vector.multi_reduction <add>, %239, %cst_154 [0] : vector<32x32xf32> to vector<32xf32>
    %245 = vector.shape_cast %244 : vector<32xf32> to vector<1x32xf32>
    %cst_155 = arith.constant 3.125000e-02 : f32
    %246 = vector.broadcast %cst_155 : f32 to vector<1x32xf32>
    %247 = arith.mulf %245, %246 : vector<1x32xf32>
    %248 = vector.broadcast %247 : vector<1x32xf32> to vector<32x32xf32>
    %249 = arith.subf %239, %248 : vector<32x32xf32>
    %250 = arith.mulf %249, %249 : vector<32x32xf32>
    %cst_156 = arith.constant dense<0.000000e+00> : vector<32xf32>
    %251 = vector.multi_reduction <add>, %250, %cst_156 [0] : vector<32x32xf32> to vector<32xf32>
    %252 = vector.shape_cast %251 : vector<32xf32> to vector<1x32xf32>
    %cst_157 = arith.constant 3.125000e-02 : f32
    %253 = vector.broadcast %cst_157 : f32 to vector<1x32xf32>
    %254 = arith.mulf %252, %253 : vector<1x32xf32>
    %cst_158 = arith.constant 9.99999974E-6 : f32
    %255 = vector.broadcast %cst_158 : f32 to vector<1x32xf32>
    %256 = arith.addf %254, %255 : vector<1x32xf32>
    %257 = math.rsqrt %256 : vector<1x32xf32>
    %258 = vector.broadcast %257 : vector<1x32xf32> to vector<32x32xf32>
    %259 = arith.mulf %249, %258 : vector<32x32xf32>
    %260 = vector.broadcast %241 : vector<1x32xf32> to vector<32x32xf32>
    %261 = arith.mulf %259, %260 : vector<32x32xf32>
    %262 = vector.broadcast %243 : vector<1x32xf32> to vector<32x32xf32>
    %263 = arith.addf %261, %262 : vector<32x32xf32>
    %cst_159 = arith.constant 0.000000e+00 : f32
    %264 = vector.broadcast %cst_159 : f32 to vector<32x32xf32>
    %265 = arith.maximumf %263, %264 : vector<32x32xf32>
    %266 = arith.truncf %265 : vector<32x32xf32> to vector<32x32xbf16>
    %c1_160 = arith.constant 1 : index
    %c1_161 = arith.constant 1 : index
    %c0_162 = arith.constant 0 : index
    %c0_163 = arith.constant 0 : index
    %267 = vector.load %arg11[%c1_160, %c1_161, %c0_162, %c0_163] : memref<2x2x32x32xbf16, #tpu.memory_space<vmem>>, vector<1x1x32x32xbf16>
    %268 = vector.shape_cast %267 : vector<1x1x32x32xbf16> to vector<32x32xbf16>
    %c1_164 = arith.constant 1 : index
    %c1_165 = arith.constant 1 : index
    %c0_166 = arith.constant 0 : index
    %c0_167 = arith.constant 0 : index
    %269 = vector.load %arg12[%c1_164, %c1_165, %c0_166, %c0_167] : memref<2x2x1x32xf32, #tpu.memory_space<vmem>>, vector<1x1x1x32xf32>
    %270 = vector.shape_cast %269 : vector<1x1x1x32xf32> to vector<1x32xf32>
    %cst_168 = arith.constant dense<0.000000e+00> : vector<32x32xf32>
    %271 = tpu.matmul %266, %268, %cst_168 {dimension_numbers = #tpu.dot_dimension_numbers<[1], [0], [0], [1], [0, 0, 1, 1], [], []>} : vector<32x32xbf16>, vector<32x32xbf16>, vector<32x32xf32> -> vector<32x32xf32>
    %272 = vector.broadcast %270 : vector<1x32xf32> to vector<32x32xf32>
    %273 = arith.addf %271, %272 : vector<32x32xf32>
    %c1_169 = arith.constant 1 : index
    %c1_170 = arith.constant 1 : index
    %c0_171 = arith.constant 0 : index
    %c0_172 = arith.constant 0 : index
    %274 = vector.load %arg13[%c1_169, %c1_170, %c0_171, %c0_172] : memref<2x2x1x32xf32, #tpu.memory_space<vmem>>, vector<1x1x1x32xf32>
    %275 = vector.shape_cast %274 : vector<1x1x1x32xf32> to vector<1x32xf32>
    %c1_173 = arith.constant 1 : index
    %c1_174 = arith.constant 1 : index
    %c0_175 = arith.constant 0 : index
    %c0_176 = arith.constant 0 : index
    %276 = vector.load %arg14[%c1_173, %c1_174, %c0_175, %c0_176] : memref<2x2x1x32xf32, #tpu.memory_space<vmem>>, vector<1x1x1x32xf32>
    %277 = vector.shape_cast %276 : vector<1x1x1x32xf32> to vector<1x32xf32>
    %cst_177 = arith.constant dense<0.000000e+00> : vector<32xf32>
    %278 = vector.multi_reduction <add>, %273, %cst_177 [0] : vector<32x32xf32> to vector<32xf32>
    %279 = vector.shape_cast %278 : vector<32xf32> to vector<1x32xf32>
    %cst_178 = arith.constant 3.125000e-02 : f32
    %280 = vector.broadcast %cst_178 : f32 to vector<1x32xf32>
    %281 = arith.mulf %279, %280 : vector<1x32xf32>
    %282 = vector.broadcast %281 : vector<1x32xf32> to vector<32x32xf32>
    %283 = arith.subf %273, %282 : vector<32x32xf32>
    %284 = arith.mulf %283, %283 : vector<32x32xf32>
    %cst_179 = arith.constant dense<0.000000e+00> : vector<32xf32>
    %285 = vector.multi_reduction <add>, %284, %cst_179 [0] : vector<32x32xf32> to vector<32xf32>
    %286 = vector.shape_cast %285 : vector<32xf32> to vector<1x32xf32>
    %cst_180 = arith.constant 3.125000e-02 : f32
    %287 = vector.broadcast %cst_180 : f32 to vector<1x32xf32>
    %288 = arith.mulf %286, %287 : vector<1x32xf32>
    %cst_181 = arith.constant 9.99999974E-6 : f32
    %289 = vector.broadcast %cst_181 : f32 to vector<1x32xf32>
    %290 = arith.addf %288, %289 : vector<1x32xf32>
    %291 = math.rsqrt %290 : vector<1x32xf32>
    %292 = vector.broadcast %291 : vector<1x32xf32> to vector<32x32xf32>
    %293 = arith.mulf %283, %292 : vector<32x32xf32>
    %294 = vector.broadcast %275 : vector<1x32xf32> to vector<32x32xf32>
    %295 = arith.mulf %293, %294 : vector<32x32xf32>
    %296 = vector.broadcast %277 : vector<1x32xf32> to vector<32x32xf32>
    %297 = arith.addf %295, %296 : vector<32x32xf32>
    %cst_182 = arith.constant 0.000000e+00 : f32
    %298 = vector.broadcast %cst_182 : f32 to vector<32x32xf32>
    %299 = arith.maximumf %297, %298 : vector<32x32xf32>
    %300 = arith.truncf %299 : vector<32x32xf32> to vector<32x32xbf16>
    %c1_183 = arith.constant 1 : index
    %c0_184 = arith.constant 0 : index
    %c0_185 = arith.constant 0 : index
    %301 = vector.load %arg15[%c1_183, %c0_184, %c0_185] : memref<2x8x32xbf16, #tpu.memory_space<vmem>>, vector<1x8x32xbf16>
    %302 = vector.shape_cast %301 : vector<1x8x32xbf16> to vector<8x32xbf16>
    %cst_186 = arith.constant dense<0.000000e+00> : vector<8x32xf32>
    %303 = tpu.matmul %302, %300, %cst_186 {dimension_numbers = #tpu.dot_dimension_numbers<[1], [1], [0], [0], [0, 0, 1, 0], [], []>} : vector<8x32xbf16>, vector<32x32xbf16>, vector<8x32xf32> -> vector<8x32xf32>
    %c1_187 = arith.constant 1 : index
    %c0_188 = arith.constant 0 : index
    %c0_189 = arith.constant 0 : index
    %304 = vector.load %arg16[%c1_187, %c0_188, %c0_189] : memref<2x8x1xf32, #tpu.memory_space<vmem>>, vector<1x8x1xf32>
    %305 = vector.shape_cast %304 : vector<1x8x1xf32> to vector<8x1xf32>
    %306 = vector.broadcast %305 : vector<8x1xf32> to vector<8x32xf32>
    %307 = arith.addf %303, %306 : vector<8x32xf32>
    %c1_190 = arith.constant 1 : index
    %c0_191 = arith.constant 0 : index
    %c0_192 = arith.constant 0 : index
    %308 = vector.load %arg17[%c1_190, %c0_191, %c0_192] : memref<2x8x32xf32, #tpu.memory_space<vmem>>, vector<1x8x32xf32>
    %309 = vector.shape_cast %308 : vector<1x8x32xf32> to vector<8x32xf32>
    %310 = vector.shape_cast %307 : vector<8x32xf32> to vector<1x8x32xf32>
    tpu.vector_store %arg17[%c1_190, %c0_191, %c0_192], %310 {strides = array<i32>} : memref<2x8x32xf32, #tpu.memory_space<vmem>>, vector<1x8x32xf32>,
    return
  }
  func.func @transform_0(%arg0: i32) -> (i32, i32, i32) {
    %c0_i32 = arith.constant 0 : i32
    %c0_i32_0 = arith.constant 0 : i32
    %c0_i32_1 = arith.constant 0 : i32
    return %arg0, %c0_i32, %c0_i32_0 : i32, i32, i32
  }
  func.func @transform_1(%arg0: i32) -> (i32, i32) {
    %c0_i32 = arith.constant 0 : i32
    %c0_i32_0 = arith.constant 0 : i32
    %c0_i32_1 = arith.constant 0 : i32
    return %c0_i32, %c0_i32_0 : i32, i32
  }
  func.func @transform_2(%arg0: i32) -> (i32, i32, i32) {
    %c0_i32 = arith.constant 0 : i32
    %c0_i32_0 = arith.constant 0 : i32
    %c0_i32_1 = arith.constant 0 : i32
    return %arg0, %c0_i32, %c0_i32_0 : i32, i32, i32
  }
  func.func @transform_3(%arg0: i32) -> (i32, i32, i32) {
    %c0_i32 = arith.constant 0 : i32
    %c0_i32_0 = arith.constant 0 : i32
    %c0_i32_1 = arith.constant 0 : i32
    return %arg0, %c0_i32, %c0_i32_0 : i32, i32, i32
  }
  func.func @transform_4(%arg0: i32) -> (i32, i32, i32) {
    %c0_i32 = arith.constant 0 : i32
    %c0_i32_0 = arith.constant 0 : i32
    %c0_i32_1 = arith.constant 0 : i32
    return %arg0, %c0_i32, %c0_i32_0 : i32, i32, i32
  }
  func.func @transform_5(%arg0: i32) -> (i32, i32, i32) {
    %c0_i32 = arith.constant 0 : i32
    %c0_i32_0 = arith.constant 0 : i32
    %c0_i32_1 = arith.constant 0 : i32
    return %arg0, %c0_i32, %c0_i32_0 : i32, i32, i32
  }
  func.func @transform_6(%arg0: i32) -> (i32, i32, i32) {
    %c0_i32 = arith.constant 0 : i32
    %c0_i32_0 = arith.constant 0 : i32
    %c0_i32_1 = arith.constant 0 : i32
    return %arg0, %c0_i32, %c0_i32_0 : i32, i32, i32
  }
  func.func @transform_7(%arg0: i32) -> (i32, i32, i32) {
    %c0_i32 = arith.constant 0 : i32
    %c0_i32_0 = arith.constant 0 : i32
    %c0_i32_1 = arith.constant 0 : i32
    return %arg0, %c0_i32, %c0_i32_0 : i32, i32, i32
  }
  func.func @transform_8(%arg0: i32) -> (i32, i32, i32) {
    %c0_i32 = arith.constant 0 : i32
    %c0_i32_0 = arith.constant 0 : i32
    %c0_i32_1 = arith.constant 0 : i32
    return %arg0, %c0_i32, %c0_i32_0 : i32, i32, i32
  }
  func.func @transform_9(%arg0: i32) -> (i32, i32, i32) {
    %c0_i32 = arith.constant 0 : i32
    %c0_i32_0 = arith.constant 0 : i32
    %c0_i32_1 = arith.constant 0 : i32
    return %arg0, %c0_i32, %c0_i32_0 : i32, i32, i32
  }
  func.func @transform_10(%arg0: i32) -> (i32, i32, i32, i32) {
    %c0_i32 = arith.constant 0 : i32
    %c0_i32_0 = arith.constant 0 : i32
    %c0_i32_1 = arith.constant 0 : i32
    %c0_i32_2 = arith.constant 0 : i32
    return %arg0, %c0_i32, %c0_i32_0, %c0_i32_1 : i32, i32, i32, i32
  }
  func.func @transform_11(%arg0: i32) -> (i32, i32, i32, i32) {
    %c0_i32 = arith.constant 0 : i32
    %c0_i32_0 = arith.constant 0 : i32
    %c0_i32_1 = arith.constant 0 : i32
    %c0_i32_2 = arith.constant 0 : i32
    return %arg0, %c0_i32, %c0_i32_0, %c0_i32_1 : i32, i32, i32, i32
  }
  func.func @transform_12(%arg0: i32) -> (i32, i32, i32, i32) {
    %c0_i32 = arith.constant 0 : i32
    %c0_i32_0 = arith.constant 0 : i32
    %c0_i32_1 = arith.constant 0 : i32
    %c0_i32_2 = arith.constant 0 : i32
    return %arg0, %c0_i32, %c0_i32_0, %c0_i32_1 : i32, i32, i32, i32
  }
  func.func @transform_13(%arg0: i32) -> (i32, i32, i32, i32) {
    %c0_i32 = arith.constant 0 : i32
    %c0_i32_0 = arith.constant 0 : i32
    %c0_i32_1 = arith.constant 0 : i32
    %c0_i32_2 = arith.constant 0 : i32
    return %arg0, %c0_i32, %c0_i32_0, %c0_i32_1 : i32, i32, i32, i32
  }
  func.func @transform_14(%arg0: i32) -> (i32, i32, i32) {
    %c0_i32 = arith.constant 0 : i32
    %c0_i32_0 = arith.constant 0 : i32
    %c0_i32_1 = arith.constant 0 : i32
    return %arg0, %c0_i32, %c0_i32_0 : i32, i32, i32
  }
  func.func @transform_15(%arg0: i32) -> (i32, i32, i32) {
    %c0_i32 = arith.constant 0 : i32
    %c0_i32_0 = arith.constant 0 : i32
    %c0_i32_1 = arith.constant 0 : i32
    return %arg0, %c0_i32, %c0_i32_0 : i32, i32, i32
  }
  func.func @transform_16(%arg0: i32) -> (i32, i32, i32) {
    %c0_i32 = arith.constant 0 : i32
    %c0_i32_0 = arith.constant 0 : i32
    %c0_i32_1 = arith.constant 0 : i32
    return %arg0, %c0_i32, %c0_i32_0 : i32, i32, i32
  }
}

</mosaic_0001>

<llo_original>
// kernel: encoder_decoder_forward.2
$region0: #{encoder_decoder_forward.2}
  #allocation0 [shape = 'u32[]', space=smem, size = 0x4, offset = 0x4, fixed_abs, tag = 'smem constant byte address 0x4 - core index']
  #allocation1 [shape = 'u32[144,128]{1,0:T(1,128)}', space=vmem, size = 0x12000, scoped, tag = 'internal scratch']
  %s0 = inlined_call_operand.vmem [shape: f32[128,8], index: 0, kind: input, shape index: {}]
  %s1 = inlined_call_operand.vmem [shape: bf16[8,64], index: 1, kind: input, shape index: {}]
  %s2 = inlined_call_operand.vmem [shape: f32[1,64], index: 2, kind: input, shape index: {}]
  %s3 = inlined_call_operand.vmem [shape: f32[1,64], index: 3, kind: input, shape index: {}]
  %s4 = inlined_call_operand.vmem [shape: f32[1,64], index: 4, kind: input, shape index: {}]
  %s5 = inlined_call_operand.vmem [shape: bf16[64,128], index: 5, kind: input, shape index: {}]
  %s6 = inlined_call_operand.vmem [shape: f32[1,128], index: 6, kind: input, shape index: {}]
  %s7 = inlined_call_operand.vmem [shape: f32[1,128], index: 7, kind: input, shape index: {}]
  %s8 = inlined_call_operand.vmem [shape: f32[1,128], index: 8, kind: input, shape index: {}]
  %s9 = inlined_call_operand.vmem [shape: bf16[128,32], index: 9, kind: input, shape index: {}]
  %s10 = inlined_call_operand.vmem [shape: f32[1,32], index: 10, kind: input, shape index: {}]
  %s11 = inlined_call_operand.vmem [shape: f32[1,32], index: 11, kind: input, shape index: {}]
  %s12 = inlined_call_operand.vmem [shape: f32[1,32], index: 12, kind: input, shape index: {}]
  %s13 = inlined_call_operand.vmem [shape: bf16[32,32], index: 13, kind: input, shape index: {}]
  %s14 = inlined_call_operand.vmem [shape: f32[1,32], index: 14, kind: input, shape index: {}]
  %s15 = inlined_call_operand.vmem [shape: f32[1,32], index: 15, kind: input, shape index: {}]
  %s16 = inlined_call_operand.vmem [shape: f32[1,32], index: 16, kind: input, shape index: {}]
  %s17 = inlined_call_operand.vmem [shape: bf16[32,32], index: 17, kind: input, shape index: {}]
  %s18 = inlined_call_operand.vmem [shape: f32[1,32], index: 18, kind: input, shape index: {}]
  %s19 = inlined_call_operand.vmem [shape: f32[1,32], index: 19, kind: input, shape index: {}]
  %s20 = inlined_call_operand.vmem [shape: f32[1,32], index: 20, kind: input, shape index: {}]
  %s21 = inlined_call_operand.vmem [shape: f32[2,32], index: 21, kind: output, shape index: {}]
  %s22 = sld [smem:[#allocation0]]
  $region94: #{encoder_decoder_forward.2} parent=0
    _
  %s24 = ssub.s32 1, %s22
  %s25 = scalar_select 0, %s24, %s22
  // Predicated region
  $region2: #{encoder_decoder_forward.2} parent=0 // pred_check
    _
  $region3: #{encoder_decoder_forward.2} parent=0 // pred_check_branch
    %27 = sbr.rel (0) target = $region5
  $region4: #{encoder_decoder_forward.2} parent=0 // pred_region
    _
  $region5: #{encoder_decoder_forward.2} parent=0 // pred_fallthru
    _
  // Predicated region
  $region6: #{encoder_decoder_forward.2} parent=0 // pred_check
    _
  $region7: #{encoder_decoder_forward.2} parent=0 // pred_check_branch
    %29 = sbr.rel (0) target = $region9
  $region8: #{encoder_decoder_forward.2} parent=0 // pred_region
    _
  $region9: #{encoder_decoder_forward.2} parent=0 // pred_fallthru
    _
  // Predicated region
  $region10: #{encoder_decoder_forward.2} parent=0 // pred_check
    _
  $region11: #{encoder_decoder_forward.2} parent=0 // pred_check_branch
    %31 = sbr.rel (0) target = $region13
  $region12: #{encoder_decoder_forward.2} parent=0 // pred_region
    _
  $region13: #{encoder_decoder_forward.2} parent=0 // pred_fallthru
    _
  // Predicated region
  $region14: #{encoder_decoder_forward.2} parent=0 // pred_check
    _
  $region15: #{encoder_decoder_forward.2} parent=0 // pred_check_branch
    %33 = sbr.rel (0) target = $region17
  $region16: #{encoder_decoder_forward.2} parent=0 // pred_region
    _
  $region17: #{encoder_decoder_forward.2} parent=0 // pred_fallthru
    _
  // Predicated region
  $region18: #{encoder_decoder_forward.2} parent=0 // pred_check
    _
  $region19: #{encoder_decoder_forward.2} parent=0 // pred_check_branch
    %35 = sbr.rel (0) target = $region21
  $region20: #{encoder_decoder_forward.2} parent=0 // pred_region
    _
  $region21: #{encoder_decoder_forward.2} parent=0 // pred_fallthru
    _
  // Predicated region
  $region22: #{encoder_decoder_forward.2} parent=0 // pred_check
    _
  $region23: #{encoder_decoder_forward.2} parent=0 // pred_check_branch
    %37 = sbr.rel (0) target = $region25
  $region24: #{encoder_decoder_forward.2} parent=0 // pred_region
    _
  $region25: #{encoder_decoder_forward.2} parent=0 // pred_fallthru
    _
  // Predicated region
  $region26: #{encoder_decoder_forward.2} parent=0 // pred_check
    _
  $region27: #{encoder_decoder_forward.2} parent=0 // pred_check_branch
    %39 = sbr.rel (0) target = $region29
  $region28: #{encoder_decoder_forward.2} parent=0 // pred_region
    _
  $region29: #{encoder_decoder_forward.2} parent=0 // pred_fallthru
    _
  // Predicated region
  $region30: #{encoder_decoder_forward.2} parent=0 // pred_check
    _
  $region31: #{encoder_decoder_forward.2} parent=0 // pred_check_branch
    %41 = sbr.rel (0) target = $region33
  $region32: #{encoder_decoder_forward.2} parent=0 // pred_region
    _
  $region33: #{encoder_decoder_forward.2} parent=0 // pred_fallthru
    _
  // Predicated region
  $region34: #{encoder_decoder_forward.2} parent=0 // pred_check
    _
  $region35: #{encoder_decoder_forward.2} parent=0 // pred_check_branch
    %43 = sbr.rel (0) target = $region37
  $region36: #{encoder_decoder_forward.2} parent=0 // pred_region
    _
  $region37: #{encoder_decoder_forward.2} parent=0 // pred_fallthru
    _
  // Predicated region
  $region38: #{encoder_decoder_forward.2} parent=0 // pred_check
    _
  $region39: #{encoder_decoder_forward.2} parent=0 // pred_check_branch
    %45 = sbr.rel (0) target = $region41
  $region40: #{encoder_decoder_forward.2} parent=0 // pred_region
    _
  $region41: #{encoder_decoder_forward.2} parent=0 // pred_fallthru
    _
  // Predicated region
  $region42: #{encoder_decoder_forward.2} parent=0 // pred_check
    _
  $region43: #{encoder_decoder_forward.2} parent=0 // pred_check_branch
    %47 = sbr.rel (0) target = $region45
  $region44: #{encoder_decoder_forward.2} parent=0 // pred_region
    _
  $region45: #{encoder_decoder_forward.2} parent=0 // pred_fallthru
    _
  // Predicated region
  $region46: #{encoder_decoder_forward.2} parent=0 // pred_check
    _
  $region47: #{encoder_decoder_forward.2} parent=0 // pred_check_branch
    %49 = sbr.rel (0) target = $region49
  $region48: #{encoder_decoder_forward.2} parent=0 // pred_region
    _
  $region49: #{encoder_decoder_forward.2} parent=0 // pred_fallthru
    _
  // Predicated region
  $region50: #{encoder_decoder_forward.2} parent=0 // pred_check
    _
  $region51: #{encoder_decoder_forward.2} parent=0 // pred_check_branch
    %51 = sbr.rel (0) target = $region53
  $region52: #{encoder_decoder_forward.2} parent=0 // pred_region
    _
  $region53: #{encoder_decoder_forward.2} parent=0 // pred_fallthru
    _
  // Predicated region
  $region54: #{encoder_decoder_forward.2} parent=0 // pred_check
    _
  $region55: #{encoder_decoder_forward.2} parent=0 // pred_check_branch
    %53 = sbr.rel (0) target = $region57
  $region56: #{encoder_decoder_forward.2} parent=0 // pred_region
    _
  $region57: #{encoder_decoder_forward.2} parent=0 // pred_fallthru
    _
  // Predicated region
  $region58: #{encoder_decoder_forward.2} parent=0 // pred_check
    _
  $region59: #{encoder_decoder_forward.2} parent=0 // pred_check_branch
    %55 = sbr.rel (0) target = $region61
  $region60: #{encoder_decoder_forward.2} parent=0 // pred_region
    _
  $region61: #{encoder_decoder_forward.2} parent=0 // pred_fallthru
    _
  // Predicated region
  $region62: #{encoder_decoder_forward.2} parent=0 // pred_check
    _
  $region63: #{encoder_decoder_forward.2} parent=0 // pred_check_branch
    %57 = sbr.rel (0) target = $region65
  $region64: #{encoder_decoder_forward.2} parent=0 // pred_region
    _
  $region65: #{encoder_decoder_forward.2} parent=0 // pred_fallthru
    _
  // Predicated region
  $region66: #{encoder_decoder_forward.2} parent=0 // pred_check
    _
  $region67: #{encoder_decoder_forward.2} parent=0 // pred_check_branch
    %59 = sbr.rel (0) target = $region69
  $region68: #{encoder_decoder_forward.2} parent=0 // pred_region
    _
  $region69: #{encoder_decoder_forward.2} parent=0 // pred_fallthru
    _
  // Predicated region
  $region70: #{encoder_decoder_forward.2} parent=0 // pred_check
    _
  $region71: #{encoder_decoder_forward.2} parent=0 // pred_check_branch
    %61 = sbr.rel (0) target = $region73
  $region72: #{encoder_decoder_forward.2} parent=0 // pred_region
    _
  $region73: #{encoder_decoder_forward.2} parent=0 // pred_fallthru
    _
  // Predicated region
  $region74: #{encoder_decoder_forward.2} parent=0 // pred_check
    _
  $region75: #{encoder_decoder_forward.2} parent=0 // pred_check_branch
    %63 = sbr.rel (0) target = $region77
  $region76: #{encoder_decoder_forward.2} parent=0 // pred_region
    _
  $region77: #{encoder_decoder_forward.2} parent=0 // pred_fallthru
    _
  // Predicated region
  $region78: #{encoder_decoder_forward.2} parent=0 // pred_check
    _
  $region79: #{encoder_decoder_forward.2} parent=0 // pred_check_branch
    %65 = sbr.rel (0) target = $region81
  $region80: #{encoder_decoder_forward.2} parent=0 // pred_region
    _
  $region81: #{encoder_decoder_forward.2} parent=0 // pred_fallthru
    _
  // Predicated region
  $region82: #{encoder_decoder_forward.2} parent=0 // pred_check
    _
  $region83: #{encoder_decoder_forward.2} parent=0 // pred_check_branch
    %67 = sbr.rel (0) target = $region85
  $region84: #{encoder_decoder_forward.2} parent=0 // pred_region
    _
  $region85: #{encoder_decoder_forward.2} parent=0 // pred_fallthru
    _
  %v70 = vld [vmem:[%s0] sm:$0xff]
  %v71 = vld [vmem:[%s0 + $0x8] sm:$0xff]
  %v72 = vld [vmem:[%s0 + $0x10] sm:$0xff]
  %v73 = vld [vmem:[%s0 + $0x18] sm:$0xff]
  %v74 = vld [vmem:[%s0 + $0x20] sm:$0xff]
  %v75 = vld [vmem:[%s0 + $0x28] sm:$0xff]
  %v76 = vld [vmem:[%s0 + $0x30] sm:$0xff]
  %v77 = vld [vmem:[%s0 + $0x38] sm:$0xff]
  %v78 = vld [vmem:[%s0 + $0x40] sm:$0xff]
  %v79 = vld [vmem:[%s0 + $0x48] sm:$0xff]
  %v80 = vld [vmem:[%s0 + $0x50] sm:$0xff]
  %v81 = vld [vmem:[%s0 + $0x58] sm:$0xff]
  %v82 = vld [vmem:[%s0 + $0x60] sm:$0xff]
  %v83 = vld [vmem:[%s0 + $0x68] sm:$0xff]
  %v84 = vld [vmem:[%s0 + $0x70] sm:$0xff]
  %v85 = vld [vmem:[%s0 + $0x78] sm:$0xff]
  %v86 = vld [vmem:[%s1] sm:$0xf]
  %v87 = vld [vmem:[%s2] sm:$0x1]
  %v88 = vpack.c.bf16 %v71, %v70
  %v89 = vpack.c.bf16 %v73, %v72
  %v90 = vpack.c.bf16 %v75, %v74
  %v91 = vpack.c.bf16 %v77, %v76
  %v92 = vpack.c.bf16 %v79, %v78
  %v93 = vpack.c.bf16 %v81, %v80
  %v94 = vpack.c.bf16 %v83, %v82
  %v95 = vpack.c.bf16 %v85, %v84
  %v97 = vlaneseq
  %v98 = vshrl.u32 %v97, 7
  %v99 = vsub.s32 0, %v98
  %v100 = vrot.slane %v87, %v99
  %vm102 = vcmask 64512
  %v104 = vsel %vm102, %v88, 0
  %v107 = vsel %vm102, %v89, 0
  %v110 = vsel %vm102, %v90, 0
  %v113 = vsel %vm102, %v91, 0
  %v116 = vsel %vm102, %v92, 0
  %v119 = vsel %vm102, %v93, 0
  %v122 = vsel %vm102, %v94, 0
  %v125 = vsel %vm102, %v95, 0
  %vm127 = vcmask 1043456
  %v129 = vsel %vm127, %v86, 0
  %131 = vmatprep.subr.bf16.mxu0 0
  %132 = vmatpush1.bf16.msra.mxu0 %v129
  %133 = vmatprep.subr.bf16.mxu0 0
  %134 = vmatpush1.bf16.msra.mxu0 0
  %135 = vmatprep.subr.bf16.mxu0 0
  %136 = vmatpush1.bf16.msra.mxu0 0
  %137 = vmatprep.subr.bf16.mxu0 0
  %138 = vmatpush1.bf16.msra.mxu0 0
  %139 = vmatprep.subr.bf16.mxu0 0
  %140 = vmatpush1.bf16.msra.mxu0 0
  %141 = vmatprep.subr.bf16.mxu0 0
  %142 = vmatpush1.bf16.msra.mxu0 0
  %143 = vmatprep.subr.bf16.mxu0 0
  %144 = vmatpush1.bf16.msra.mxu0 0
  %145 = vmatprep.subr.bf16.mxu0 0
  %146 = vmatpush1.bf16.msra.mxu0 0
  %147 = vmatprep.subr.bf16.mxu0 0
  %148 = vmatpush1.bf16.msra.mxu0 0
  %149 = vmatprep.subr.bf16.mxu0 0
  %150 = vmatpush1.bf16.msra.mxu0 0
  %151 = vmatprep.subr.bf16.mxu0 0
  %152 = vmatpush1.bf16.msra.mxu0 0
  %153 = vmatprep.subr.bf16.mxu0 0
  %154 = vmatpush1.bf16.msra.mxu0 0
  %155 = vmatprep.subr.bf16.mxu0 0
  %156 = vmatpush1.bf16.msra.mxu0 0
  %157 = vmatprep.subr.bf16.mxu0 0
  %158 = vmatpush1.bf16.msra.mxu0 0
  %159 = vmatprep.subr.bf16.mxu0 0
  %160 = vmatpush1.bf16.msra.mxu0 0
  %161 = vmatprep.subr.bf16.mxu0 0
  %162 = vmatpush1.bf16.msra.mxu0 0
  %163 = vmatprep.mubr.bf16.mxu0 0
  %164 = vmatmul.mubr.bf16.gmra.mrb[0].mxu0 %v104
  %v165 = vpop.f32.mrb[0].mxu0
  %v166 = vadd.f32 %v100, %v165
  %v167 = vpop.f32.mrb[0].mxu0
  %v168 = vpop.f32.mrb[0].mxu0
  %v169 = vadd.f32 %v100, %v168
  %v170 = vpop.f32.mrb[0].mxu0
  %171 = vmatprep.mubr.bf16.mxu0 0
  %172 = vmatmul.mubr.bf16.gmra.mrb[0].mxu0 %v107
  %v173 = vpop.f32.mrb[0].mxu0
  %v174 = vadd.f32 %v100, %v173
  %v175 = vpop.f32.mrb[0].mxu0
  %v176 = vpop.f32.mrb[0].mxu0
  %v177 = vadd.f32 %v100, %v176
  %v178 = vpop.f32.mrb[0].mxu0
  %179 = vmatprep.mubr.bf16.mxu0 0
  %180 = vmatmul.mubr.bf16.gmra.mrb[0].mxu0 %v110
  %v181 = vpop.f32.mrb[0].mxu0
  %v182 = vadd.f32 %v100, %v181
  %v183 = vpop.f32.mrb[0].mxu0
  %v184 = vpop.f32.mrb[0].mxu0
  %v185 = vadd.f32 %v100, %v184
  %v186 = vpop.f32.mrb[0].mxu0
  %187 = vmatprep.mubr.bf16.mxu0 0
  %188 = vmatmul.mubr.bf16.gmra.mrb[0].mxu0 %v113
  %v189 = vpop.f32.mrb[0].mxu0
  %v190 = vadd.f32 %v100, %v189
  %v191 = vpop.f32.mrb[0].mxu0
  %v192 = vpop.f32.mrb[0].mxu0
  %v193 = vadd.f32 %v100, %v192
  %v194 = vpop.f32.mrb[0].mxu0
  %195 = vmatprep.mubr.bf16.mxu0 0
  %196 = vmatmul.mubr.bf16.gmra.mrb[0].mxu0 %v116
  %v197 = vpop.f32.mrb[0].mxu0
  %v198 = vadd.f32 %v100, %v197
  %v199 = vpop.f32.mrb[0].mxu0
  %v200 = vpop.f32.mrb[0].mxu0
  %v201 = vadd.f32 %v100, %v200
  %v202 = vpop.f32.mrb[0].mxu0
  %203 = vmatprep.mubr.bf16.mxu0 0
  %204 = vmatmul.mubr.bf16.gmra.mrb[0].mxu0 %v119
  %v205 = vpop.f32.mrb[0].mxu0
  %v206 = vadd.f32 %v100, %v205
  %v207 = vpop.f32.mrb[0].mxu0
  %v208 = vpop.f32.mrb[0].mxu0
  %v209 = vadd.f32 %v100, %v208
  %v210 = vpop.f32.mrb[0].mxu0
  %211 = vmatprep.mubr.bf16.mxu0 0
  %212 = vmatmul.mubr.bf16.gmra.mrb[0].mxu0 %v122
  %v213 = vpop.f32.mrb[0].mxu0
  %v214 = vadd.f32 %v100, %v213
  %v215 = vpop.f32.mrb[0].mxu0
  %v216 = vpop.f32.mrb[0].mxu0
  %v217 = vadd.f32 %v100, %v216
  %v218 = vpop.f32.mrb[0].mxu0
  %219 = vmatprep.mubr.bf16.mxu0 0
  %220 = vmatmul.mubr.bf16.gmra.mrb[0].mxu0 %v125
  %v221 = vpop.f32.mrb[0].mxu0
  %v222 = vadd.f32 %v100, %v221
  %v223 = vpop.f32.mrb[0].mxu0
  %v224 = vpop.f32.mrb[0].mxu0
  %v225 = vadd.f32 %v100, %v224
  %v226 = vpop.f32.mrb[0].mxu0
  %227 = vdwg.mxu0
  %v228 = vld [vmem:[%s3] sm:$0x1]
  %v229 = vld [vmem:[%s4] sm:$0x1]
  %vm230 = vcmask 523264
  %v231 = vsel %vm230, %v166, 0.0
  %v232 = vsel %vm230, %v169, 0.0
  %v233 = vadd.f32 %v231, %v232
  %v234 = vsel %vm230, %v174, 0.0
  %v235 = vadd.f32 %v233, %v234
  %v236 = vsel %vm230, %v177, 0.0
  %v237 = vadd.f32 %v235, %v236
  %v238 = vsel %vm230, %v182, 0.0
  %v239 = vadd.f32 %v237, %v238
  %v240 = vsel %vm230, %v185, 0.0
  %v241 = vadd.f32 %v239, %v240
  %v242 = vsel %vm230, %v190, 0.0
  %v243 = vadd.f32 %v241, %v242
  %v244 = vsel %vm230, %v193, 0.0
  %v245 = vadd.f32 %v243, %v244
  %v246 = vsel %vm230, %v198, 0.0
  %v247 = vadd.f32 %v245, %v246
  %v248 = vsel %vm230, %v201, 0.0
  %v249 = vadd.f32 %v247, %v248
  %v250 = vsel %vm230, %v206, 0.0
  %v251 = vadd.f32 %v249, %v250
  %v252 = vsel %vm230, %v209, 0.0
  %v253 = vadd.f32 %v251, %v252
  %v254 = vsel %vm230, %v214, 0.0
  %v255 = vadd.f32 %v253, %v254
  %v256 = vsel %vm230, %v217, 0.0
  %v257 = vadd.f32 %v255, %v256
  %v258 = vsel %vm230, %v222, 0.0
  %v259 = vadd.f32 %v257, %v258
  %v260 = vsel %vm230, %v225, 0.0
  %v261 = vadd.f32 %v259, %v260
  %v262 = vrot.slane %v261, 4
  %v263 = vadd.f32 %v261, %v262
  %v264 = vrot.slane %v263, 2
  %v265 = vadd.f32 %v263, %v264
  %v266 = vrot.slane %v265, 1
  %v267 = vadd.f32 %v265, %v266
  %v268 = vmul.f32 %v267, 0.0078125
  %v269 = vsub.f32 %v166, %v268
  %v270 = vsub.f32 %v169, %v268
  %v271 = vsub.f32 %v174, %v268
  %v272 = vsub.f32 %v177, %v268
  %v273 = vsub.f32 %v182, %v268
  %v274 = vsub.f32 %v185, %v268
  %v275 = vsub.f32 %v190, %v268
  %v276 = vsub.f32 %v193, %v268
  %v277 = vsub.f32 %v198, %v268
  %v278 = vsub.f32 %v201, %v268
  %v279 = vsub.f32 %v206, %v268
  %v280 = vsub.f32 %v209, %v268
  %v281 = vsub.f32 %v214, %v268
  %v282 = vsub.f32 %v217, %v268
  %v283 = vsub.f32 %v222, %v268
  %v284 = vsub.f32 %v225, %v268
  %v285 = vmul.f32 %v269, %v269
  %v286 = vmul.f32 %v270, %v270
  %v287 = vmul.f32 %v271, %v271
  %v288 = vmul.f32 %v272, %v272
  %v289 = vmul.f32 %v273, %v273
  %v290 = vmul.f32 %v274, %v274
  %v291 = vmul.f32 %v275, %v275
  %v292 = vmul.f32 %v276, %v276
  %v293 = vmul.f32 %v277, %v277
  %v294 = vmul.f32 %v278, %v278
  %v295 = vmul.f32 %v279, %v279
  %v296 = vmul.f32 %v280, %v280
  %v297 = vmul.f32 %v281, %v281
  %v298 = vmul.f32 %v282, %v282
  %v299 = vmul.f32 %v283, %v283
  %v300 = vmul.f32 %v284, %v284
  %v301 = vsel %vm230, %v285, 0.0
  %v302 = vsel %vm230, %v286, 0.0
  %v303 = vadd.f32 %v301, %v302
  %v304 = vsel %vm230, %v287, 0.0
  %v305 = vadd.f32 %v303, %v304
  %v306 = vsel %vm230, %v288, 0.0
  %v307 = vadd.f32 %v305, %v306
  %v308 = vsel %vm230, %v289, 0.0
  %v309 = vadd.f32 %v307, %v308
  %v310 = vsel %vm230, %v290, 0.0
  %v311 = vadd.f32 %v309, %v310
  %v312 = vsel %vm230, %v291, 0.0
  %v313 = vadd.f32 %v311, %v312
  %v314 = vsel %vm230, %v292, 0.0
  %v315 = vadd.f32 %v313, %v314
  %v316 = vsel %vm230, %v293, 0.0
  %v317 = vadd.f32 %v315, %v316
  %v318 = vsel %vm230, %v294, 0.0
  %v319 = vadd.f32 %v317, %v318
  %v320 = vsel %vm230, %v295, 0.0
  %v321 = vadd.f32 %v319, %v320
  %v322 = vsel %vm230, %v296, 0.0
  %v323 = vadd.f32 %v321, %v322
  %v324 = vsel %vm230, %v297, 0.0
  %v325 = vadd.f32 %v323, %v324
  %v326 = vsel %vm230, %v298, 0.0
  %v327 = vadd.f32 %v325, %v326
  %v328 = vsel %vm230, %v299, 0.0
  %v329 = vadd.f32 %v327, %v328
  %v330 = vsel %vm230, %v300, 0.0
  %v331 = vadd.f32 %v329, %v330
  %v332 = vrot.slane %v331, 4
  %v333 = vadd.f32 %v331, %v332
  %v334 = vrot.slane %v333, 2
  %v335 = vadd.f32 %v333, %v334
  %v336 = vrot.slane %v335, 1
  %v337 = vadd.f32 %v335, %v336
  %v338 = vmul.f32 %v337, 0.0078125
  %v339 = vadd.f32 %v338, 1e-05
  %v340 = vrsqrt.pop %v339
  %v341 = vmul.f32 %v269, %v340
  %v342 = vmul.f32 %v270, %v340
  %v343 = vmul.f32 %v271, %v340
  %v344 = vmul.f32 %v272, %v340
  %v345 = vmul.f32 %v273, %v340
  %v346 = vmul.f32 %v274, %v340
  %v347 = vmul.f32 %v275, %v340
  %v348 = vmul.f32 %v276, %v340
  %v349 = vmul.f32 %v277, %v340
  %v350 = vmul.f32 %v278, %v340
  %v351 = vmul.f32 %v279, %v340
  %v352 = vmul.f32 %v280, %v340
  %v353 = vmul.f32 %v281, %v340
  %v354 = vmul.f32 %v282, %v340
  %v355 = vmul.f32 %v283, %v340
  %v356 = vmul.f32 %v284, %v340
  %v358 = vlaneseq
  %v359 = vshrl.u32 %v358, 7
  %v360 = vsub.s32 0, %v359
  %v361 = vrot.slane %v228, %v360
  %v363 = vmul.f32 %v341, %v361
  %v364 = vmul.f32 %v342, %v361
  %v365 = vmul.f32 %v343, %v361
  %v366 = vmul.f32 %v344, %v361
  %v367 = vmul.f32 %v345, %v361
  %v368 = vmul.f32 %v346, %v361
  %v369 = vmul.f32 %v347, %v361
  %v370 = vmul.f32 %v348, %v361
  %v371 = vmul.f32 %v349, %v361
  %v372 = vmul.f32 %v350, %v361
  %v373 = vmul.f32 %v351, %v361
  %v374 = vmul.f32 %v352, %v361
  %v375 = vmul.f32 %v353, %v361
  %v376 = vmul.f32 %v354, %v361
  %v377 = vmul.f32 %v355, %v361
  %v378 = vmul.f32 %v356, %v361
  %v380 = vlaneseq
  %v381 = vshrl.u32 %v380, 7
  %v382 = vsub.s32 0, %v381
  %v383 = vrot.slane %v229, %v382
  %v385 = vadd.f32 %v363, %v383
  %v386 = vadd.f32 %v364, %v383
  %v387 = vadd.f32 %v365, %v383
  %v388 = vadd.f32 %v366, %v383
  %v389 = vadd.f32 %v367, %v383
  %v390 = vadd.f32 %v368, %v383
  %v391 = vadd.f32 %v369, %v383
  %v392 = vadd.f32 %v370, %v383
  %v393 = vadd.f32 %v371, %v383
  %v394 = vadd.f32 %v372, %v383
  %v395 = vadd.f32 %v373, %v383
  %v396 = vadd.f32 %v374, %v383
  %v397 = vadd.f32 %v375, %v383
  %v398 = vadd.f32 %v376, %v383
  %v399 = vadd.f32 %v377, %v383
  %v400 = vadd.f32 %v378, %v383
  %v401 = vmax.f32 %v385, 0.0
  %v402 = vmax.f32 %v386, 0.0
  %v403 = vmax.f32 %v387, 0.0
  %v404 = vmax.f32 %v388, 0.0
  %v405 = vmax.f32 %v389, 0.0
  %v406 = vmax.f32 %v390, 0.0
  %v407 = vmax.f32 %v391, 0.0
  %v408 = vmax.f32 %v392, 0.0
  %v409 = vmax.f32 %v393, 0.0
  %v410 = vmax.f32 %v394, 0.0
  %v411 = vmax.f32 %v395, 0.0
  %v412 = vmax.f32 %v396, 0.0
  %v413 = vmax.f32 %v397, 0.0
  %v414 = vmax.f32 %v398, 0.0
  %v415 = vmax.f32 %v399, 0.0
  %v416 = vmax.f32 %v400, 0.0
  %v417 = vpack.c.bf16 %v402, %v401
  %v418 = vpack.c.bf16 %v404, %v403
  %v419 = vpack.c.bf16 %v406, %v405
  %v420 = vpack.c.bf16 %v408, %v407
  %v421 = vpack.c.bf16 %v410, %v409
  %v422 = vpack.c.bf16 %v412, %v411
  %v423 = vpack.c.bf16 %v414, %v413
  %v424 = vpack.c.bf16 %v416, %v415
  %v425 = vld [vmem:[%s5] sm:$0xf]
  %v426 = vld [vmem:[%s5 + $0x4] sm:$0xf]
  %v427 = vld [vmem:[%s5 + $0x8] sm:$0xf]
  %v428 = vld [vmem:[%s5 + $0xc] sm:$0xf]
  %v429 = vld [vmem:[%s5 + $0x10] sm:$0xf]
  %v430 = vld [vmem:[%s5 + $0x14] sm:$0xf]
  %v431 = vld [vmem:[%s5 + $0x18] sm:$0xf]
  %v432 = vld [vmem:[%s5 + $0x1c] sm:$0xf]
  %v433 = vld [vmem:[%s6] sm:$0x1]
  %v435 = vlaneseq
  %v436 = vshrl.u32 %v435, 7
  %v437 = vsub.s32 0, %v436
  %v438 = vrot.slane %v433, %v437
  %v448 = vunpack.c.l.b16 %v425
  %v449 = vunpack.c.l.b16 %v426
  %v450 = vunpack.c.l.b16 %v427
  %v451 = vunpack.c.l.b16 %v428
  %v452 = vunpack.c.l.b16 %v429
  %v453 = vunpack.c.l.b16 %v430
  %v454 = vunpack.c.l.b16 %v431
  %v455 = vunpack.c.l.b16 %v432
  %v456 = vpack.c.b16 %v449, %v448
  %v457 = vpack.c.b16 %v451, %v450
  %v458 = vpack.c.b16 %v453, %v452
  %v459 = vpack.c.b16 %v455, %v454
  %v465 = vsel %vm230, %v417, 0
  %v468 = vsel %vm230, %v418, 0
  %v471 = vsel %vm230, %v419, 0
  %v474 = vsel %vm230, %v420, 0
  %v477 = vsel %vm230, %v421, 0
  %v480 = vsel %vm230, %v422, 0
  %v483 = vsel %vm230, %v423, 0
  %v486 = vsel %vm230, %v424, 0
  %488 = vmatprep.subr.bf16.mxu0 0
  %489 = vmatpush1.bf16.msra.mxu0 %v456
  %490 = vmatprep.subr.bf16.mxu0 0
  %491 = vmatpush1.bf16.msra.mxu0 %v457
  %492 = vmatprep.subr.bf16.mxu0 0
  %493 = vmatpush1.bf16.msra.mxu0 %v458
  %494 = vmatprep.subr.bf16.mxu0 0
  %495 = vmatpush1.bf16.msra.mxu0 %v459
  %496 = vmatprep.subr.bf16.mxu0 0
  %497 = vmatpush1.bf16.msra.mxu0 0
  %498 = vmatprep.subr.bf16.mxu0 0
  %499 = vmatpush1.bf16.msra.mxu0 0
  %500 = vmatprep.subr.bf16.mxu0 0
  %501 = vmatpush1.bf16.msra.mxu0 0
  %502 = vmatprep.subr.bf16.mxu0 0
  %503 = vmatpush1.bf16.msra.mxu0 0
  %504 = vmatprep.subr.bf16.mxu0 0
  %505 = vmatpush1.bf16.msra.mxu0 0
  %506 = vmatprep.subr.bf16.mxu0 0
  %507 = vmatpush1.bf16.msra.mxu0 0
  %508 = vmatprep.subr.bf16.mxu0 0
  %509 = vmatpush1.bf16.msra.mxu0 0
  %510 = vmatprep.subr.bf16.mxu0 0
  %511 = vmatpush1.bf16.msra.mxu0 0
  %512 = vmatprep.subr.bf16.mxu0 0
  %513 = vmatpush1.bf16.msra.mxu0 0
  %514 = vmatprep.subr.bf16.mxu0 0
  %515 = vmatpush1.bf16.msra.mxu0 0
  %516 = vmatprep.subr.bf16.mxu0 0
  %517 = vmatpush1.bf16.msra.mxu0 0
  %518 = vmatprep.subr.bf16.mxu0 0
  %519 = vmatpush1.bf16.msra.mxu0 0
  %520 = vmatprep.mubr.bf16.mxu0 0
  %521 = vmatmul.mubr.bf16.gmra.mrb[0].mxu0 %v465
  %v522 = vpop.f32.mrb[0].mxu0
  %v523 = vadd.f32 %v438, %v522
  %v524 = vpop.f32.mrb[0].mxu0
  %v525 = vpop.f32.mrb[0].mxu0
  %v526 = vadd.f32 %v438, %v525
  %v527 = vpop.f32.mrb[0].mxu0
  %528 = vmatprep.mubr.bf16.mxu0 0
  %529 = vmatmul.mubr.bf16.gmra.mrb[0].mxu0 %v468
  %v530 = vpop.f32.mrb[0].mxu0
  %v531 = vadd.f32 %v438, %v530
  %v532 = vpop.f32.mrb[0].mxu0
  %v533 = vpop.f32.mrb[0].mxu0
  %v534 = vadd.f32 %v438, %v533
  %v535 = vpop.f32.mrb[0].mxu0
  %536 = vmatprep.mubr.bf16.mxu0 0
  %537 = vmatmul.mubr.bf16.gmra.mrb[0].mxu0 %v471
  %v538 = vpop.f32.mrb[0].mxu0
  %v539 = vadd.f32 %v438, %v538
  %v540 = vpop.f32.mrb[0].mxu0
  %v541 = vpop.f32.mrb[0].mxu0
  %v542 = vadd.f32 %v438, %v541
  %v543 = vpop.f32.mrb[0].mxu0
  %544 = vmatprep.mubr.bf16.mxu0 0
  %545 = vmatmul.mubr.bf16.gmra.mrb[0].mxu0 %v474
  %v546 = vpop.f32.mrb[0].mxu0
  %v547 = vadd.f32 %v438, %v546
  %v548 = vpop.f32.mrb[0].mxu0
  %v549 = vpop.f32.mrb[0].mxu0
  %v550 = vadd.f32 %v438, %v549
  %v551 = vpop.f32.mrb[0].mxu0
  %552 = vmatprep.mubr.bf16.mxu0 0
  %553 = vmatmul.mubr.bf16.gmra.mrb[0].mxu0 %v477
  %v554 = vpop.f32.mrb[0].mxu0
  %v555 = vadd.f32 %v438, %v554
  %v556 = vpop.f32.mrb[0].mxu0
  %v557 = vpop.f32.mrb[0].mxu0
  %v558 = vadd.f32 %v438, %v557
  %v559 = vpop.f32.mrb[0].mxu0
  %560 = vmatprep.mubr.bf16.mxu0 0
  %561 = vmatmul.mubr.bf16.gmra.mrb[0].mxu0 %v480
  %v562 = vpop.f32.mrb[0].mxu0
  %v563 = vadd.f32 %v438, %v562
  %v564 = vpop.f32.mrb[0].mxu0
  %v565 = vpop.f32.mrb[0].mxu0
  %v566 = vadd.f32 %v438, %v565
  %v567 = vpop.f32.mrb[0].mxu0
  %568 = vmatprep.mubr.bf16.mxu0 0
  %569 = vmatmul.mubr.bf16.gmra.mrb[0].mxu0 %v483
  %v570 = vpop.f32.mrb[0].mxu0
  %v571 = vadd.f32 %v438, %v570
  %v572 = vpop.f32.mrb[0].mxu0
  %v573 = vpop.f32.mrb[0].mxu0
  %v574 = vadd.f32 %v438, %v573
  %v575 = vpop.f32.mrb[0].mxu0
  %576 = vmatprep.mubr.bf16.mxu0 0
  %577 = vmatmul.mubr.bf16.gmra.mrb[0].mxu0 %v486
  %v578 = vpop.f32.mrb[0].mxu0
  %v579 = vadd.f32 %v438, %v578
  %v580 = vpop.f32.mrb[0].mxu0
  %v581 = vpop.f32.mrb[0].mxu0
  %v582 = vadd.f32 %v438, %v581
  %v583 = vpop.f32.mrb[0].mxu0
  %584 = vdwg.mxu0
  %v585 = vld [vmem:[%s7] sm:$0x1]
  %v586 = vld [vmem:[%s8] sm:$0x1]
  %v587 = vadd.f32 %v523, %v526
  %v588 = vadd.f32 %v587, %v531
  %v589 = vadd.f32 %v588, %v534
  %v590 = vadd.f32 %v589, %v539
  %v591 = vadd.f32 %v590, %v542
  %v592 = vadd.f32 %v591, %v547
  %v593 = vadd.f32 %v592, %v550
  %v594 = vadd.f32 %v593, %v555
  %v595 = vadd.f32 %v594, %v558
  %v596 = vadd.f32 %v595, %v563
  %v597 = vadd.f32 %v596, %v566
  %v598 = vadd.f32 %v597, %v571
  %v599 = vadd.f32 %v598, %v574
  %v600 = vadd.f32 %v599, %v579
  %v601 = vadd.f32 %v600, %v582
  %v602 = vrot.slane %v601, 4
  %v603 = vadd.f32 %v601, %v602
  %v604 = vrot.slane %v603, 2
  %v605 = vadd.f32 %v603, %v604
  %v606 = vrot.slane %v605, 1
  %v607 = vadd.f32 %v605, %v606
  %v608 = vmul.f32 %v607, 0.0078125
  %v609 = vsub.f32 %v523, %v608
  %v610 = vsub.f32 %v526, %v608
  %v611 = vsub.f32 %v531, %v608
  %v612 = vsub.f32 %v534, %v608
  %v613 = vsub.f32 %v539, %v608
  %v614 = vsub.f32 %v542, %v608
  %v615 = vsub.f32 %v547, %v608
  %v616 = vsub.f32 %v550, %v608
  %v617 = vsub.f32 %v555, %v608
  %v618 = vsub.f32 %v558, %v608
  %v619 = vsub.f32 %v563, %v608
  %v620 = vsub.f32 %v566, %v608
  %v621 = vsub.f32 %v571, %v608
  %v622 = vsub.f32 %v574, %v608
  %v623 = vsub.f32 %v579, %v608
  %v624 = vsub.f32 %v582, %v608
  %v625 = vmul.f32 %v609, %v609
  %v626 = vmul.f32 %v610, %v610
  %v627 = vmul.f32 %v611, %v611
  %v628 = vmul.f32 %v612, %v612
  %v629 = vmul.f32 %v613, %v613
  %v630 = vmul.f32 %v614, %v614
  %v631 = vmul.f32 %v615, %v615
  %v632 = vmul.f32 %v616, %v616
  %v633 = vmul.f32 %v617, %v617
  %v634 = vmul.f32 %v618, %v618
  %v635 = vmul.f32 %v619, %v619
  %v636 = vmul.f32 %v620, %v620
  %v637 = vmul.f32 %v621, %v621
  %v638 = vmul.f32 %v622, %v622
  %v639 = vmul.f32 %v623, %v623
  %v640 = vmul.f32 %v624, %v624
  %v641 = vadd.f32 %v625, %v626
  %v642 = vadd.f32 %v641, %v627
  %v643 = vadd.f32 %v642, %v628
  %v644 = vadd.f32 %v643, %v629
  %v645 = vadd.f32 %v644, %v630
  %v646 = vadd.f32 %v645, %v631
  %v647 = vadd.f32 %v646, %v632
  %v648 = vadd.f32 %v647, %v633
  %v649 = vadd.f32 %v648, %v634
  %v650 = vadd.f32 %v649, %v635
  %v651 = vadd.f32 %v650, %v636
  %v652 = vadd.f32 %v651, %v637
  %v653 = vadd.f32 %v652, %v638
  %v654 = vadd.f32 %v653, %v639
  %v655 = vadd.f32 %v654, %v640
  %v656 = vrot.slane %v655, 4
  %v657 = vadd.f32 %v655, %v656
  %v658 = vrot.slane %v657, 2
  %v659 = vadd.f32 %v657, %v658
  %v660 = vrot.slane %v659, 1
  %v661 = vadd.f32 %v659, %v660
  %v662 = vmul.f32 %v661, 0.0078125
  %v663 = vadd.f32 %v662, 1e-05
  %v664 = vrsqrt.pop %v663
  %v665 = vmul.f32 %v609, %v664
  %v666 = vmul.f32 %v610, %v664
  %v667 = vmul.f32 %v611, %v664
  %v668 = vmul.f32 %v612, %v664
  %v669 = vmul.f32 %v613, %v664
  %v670 = vmul.f32 %v614, %v664
  %v671 = vmul.f32 %v615, %v664
  %v672 = vmul.f32 %v616, %v664
  %v673 = vmul.f32 %v617, %v664
  %v674 = vmul.f32 %v618, %v664
  %v675 = vmul.f32 %v619, %v664
  %v676 = vmul.f32 %v620, %v664
  %v677 = vmul.f32 %v621, %v664
  %v678 = vmul.f32 %v622, %v664
  %v679 = vmul.f32 %v623, %v664
  %v680 = vmul.f32 %v624, %v664
  %v682 = vlaneseq
  %v683 = vshrl.u32 %v682, 7
  %v684 = vsub.s32 0, %v683
  %v685 = vrot.slane %v585, %v684
  %v687 = vmul.f32 %v665, %v685
  %v688 = vmul.f32 %v666, %v685
  %v689 = vmul.f32 %v667, %v685
  %v690 = vmul.f32 %v668, %v685
  %v691 = vmul.f32 %v669, %v685
  %v692 = vmul.f32 %v670, %v685
  %v693 = vmul.f32 %v671, %v685
  %v694 = vmul.f32 %v672, %v685
  %v695 = vmul.f32 %v673, %v685
  %v696 = vmul.f32 %v674, %v685
  %v697 = vmul.f32 %v675, %v685
  %v698 = vmul.f32 %v676, %v685
  %v699 = vmul.f32 %v677, %v685
  %v700 = vmul.f32 %v678, %v685
  %v701 = vmul.f32 %v679, %v685
  %v702 = vmul.f32 %v680, %v685
  %v704 = vlaneseq
  %v705 = vshrl.u32 %v704, 7
  %v706 = vsub.s32 0, %v705
  %v707 = vrot.slane %v586, %v706
  %v709 = vadd.f32 %v687, %v707
  %v710 = vadd.f32 %v688, %v707
  %v711 = vadd.f32 %v689, %v707
  %v712 = vadd.f32 %v690, %v707
  %v713 = vadd.f32 %v691, %v707
  %v714 = vadd.f32 %v692, %v707
  %v715 = vadd.f32 %v693, %v707
  %v716 = vadd.f32 %v694, %v707
  %v717 = vadd.f32 %v695, %v707
  %v718 = vadd.f32 %v696, %v707
  %v719 = vadd.f32 %v697, %v707
  %v720 = vadd.f32 %v698, %v707
  %v721 = vadd.f32 %v699, %v707
  %v722 = vadd.f32 %v700, %v707
  %v723 = vadd.f32 %v701, %v707
  %v724 = vadd.f32 %v702, %v707
  %v725 = vmax.f32 %v709, 0.0
  %v726 = vmax.f32 %v710, 0.0
  %v727 = vmax.f32 %v711, 0.0
  %v728 = vmax.f32 %v712, 0.0
  %v729 = vmax.f32 %v713, 0.0
  %v730 = vmax.f32 %v714, 0.0
  %v731 = vmax.f32 %v715, 0.0
  %v732 = vmax.f32 %v716, 0.0
  %v733 = vmax.f32 %v717, 0.0
  %v734 = vmax.f32 %v718, 0.0
  %v735 = vmax.f32 %v719, 0.0
  %v736 = vmax.f32 %v720, 0.0
  %v737 = vmax.f32 %v721, 0.0
  %v738 = vmax.f32 %v722, 0.0
  %v739 = vmax.f32 %v723, 0.0
  %v740 = vmax.f32 %v724, 0.0
  %v741 = vpack.c.bf16 %v726, %v725
  %v742 = vpack.c.bf16 %v728, %v727
  %v743 = vpack.c.bf16 %v730, %v729
  %v744 = vpack.c.bf16 %v732, %v731
  %v745 = vpack.c.bf16 %v734, %v733
  %v746 = vpack.c.bf16 %v736, %v735
  %v747 = vpack.c.bf16 %v738, %v737
  %v748 = vpack.c.bf16 %v740, %v739
  %v749 = vld [vmem:[%s9] sm:$0xf]
  %v750 = vld [vmem:[%s9 + $0x4] sm:$0xf]
  %v751 = vld [vmem:[%s9 + $0x8] sm:$0xf]
  %v752 = vld [vmem:[%s9 + $0xc] sm:$0xf]
  %v753 = vld [vmem:[%s9 + $0x10] sm:$0xf]
  %v754 = vld [vmem:[%s9 + $0x14] sm:$0xf]
  %v755 = vld [vmem:[%s9 + $0x18] sm:$0xf]
  %v756 = vld [vmem:[%s9 + $0x1c] sm:$0xf]
  %v757 = vld [vmem:[%s9 + $0x20] sm:$0xf]
  %v758 = vld [vmem:[%s9 + $0x24] sm:$0xf]
  %v759 = vld [vmem:[%s9 + $0x28] sm:$0xf]
  %v760 = vld [vmem:[%s9 + $0x2c] sm:$0xf]
  %v761 = vld [vmem:[%s9 + $0x30] sm:$0xf]
  %v762 = vld [vmem:[%s9 + $0x34] sm:$0xf]
  %v763 = vld [vmem:[%s9 + $0x38] sm:$0xf]
  %v764 = vld [vmem:[%s9 + $0x3c] sm:$0xf]
  %v765 = vld [vmem:[%s10] sm:$0x1]
  %v767 = vlaneseq
  %v768 = vshrl.u32 %v767, 7
  %v769 = vsub.s32 0, %v768
  %v770 = vrot.slane %v765, %v769
  %v788 = vunpack.c.l.b16 %v749
  %v789 = vunpack.c.l.b16 %v750
  %v790 = vunpack.c.l.b16 %v751
  %v791 = vunpack.c.l.b16 %v752
  %v792 = vunpack.c.l.b16 %v753
  %v793 = vunpack.c.l.b16 %v754
  %v794 = vunpack.c.l.b16 %v755
  %v795 = vunpack.c.l.b16 %v756
  %v796 = vunpack.c.l.b16 %v757
  %v797 = vunpack.c.l.b16 %v758
  %v798 = vunpack.c.l.b16 %v759
  %v799 = vunpack.c.l.b16 %v760
  %v800 = vunpack.c.l.b16 %v761
  %v801 = vunpack.c.l.b16 %v762
  %v802 = vunpack.c.l.b16 %v763
  %v803 = vunpack.c.l.b16 %v764
  %v804 = vpack.c.b16 %v789, %v788
  %v805 = vpack.c.b16 %v791, %v790
  %v806 = vpack.c.b16 %v793, %v792
  %v807 = vpack.c.b16 %v795, %v794
  %v808 = vpack.c.b16 %v797, %v796
  %v809 = vpack.c.b16 %v799, %v798
  %v810 = vpack.c.b16 %v801, %v800
  %v811 = vpack.c.b16 %v803, %v802
  %820 = vmatprep.subr.bf16.mxu0 0
  %821 = vmatpush1.bf16.msra.mxu0 %v804
  %822 = vmatprep.subr.bf16.mxu0 0
  %823 = vmatpush1.bf16.msra.mxu0 %v805
  %824 = vmatprep.subr.bf16.mxu0 0
  %825 = vmatpush1.bf16.msra.mxu0 %v806
  %826 = vmatprep.subr.bf16.mxu0 0
  %827 = vmatpush1.bf16.msra.mxu0 %v807
  %828 = vmatprep.subr.bf16.mxu0 0
  %829 = vmatpush1.bf16.msra.mxu0 %v808
  %830 = vmatprep.subr.bf16.mxu0 0
  %831 = vmatpush1.bf16.msra.mxu0 %v809
  %832 = vmatprep.subr.bf16.mxu0 0
  %833 = vmatpush1.bf16.msra.mxu0 %v810
  %834 = vmatprep.subr.bf16.mxu0 0
  %835 = vmatpush1.bf16.msra.mxu0 %v811
  %836 = vmatprep.subr.bf16.mxu0 0
  %837 = vmatpush1.bf16.msra.mxu0 0
  %838 = vmatprep.subr.bf16.mxu0 0
  %839 = vmatpush1.bf16.msra.mxu0 0
  %840 = vmatprep.subr.bf16.mxu0 0
  %841 = vmatpush1.bf16.msra.mxu0 0
  %842 = vmatprep.subr.bf16.mxu0 0
  %843 = vmatpush1.bf16.msra.mxu0 0
  %844 = vmatprep.subr.bf16.mxu0 0
  %845 = vmatpush1.bf16.msra.mxu0 0
  %846 = vmatprep.subr.bf16.mxu0 0
  %847 = vmatpush1.bf16.msra.mxu0 0
  %848 = vmatprep.subr.bf16.mxu0 0
  %849 = vmatpush1.bf16.msra.mxu0 0
  %850 = vmatprep.subr.bf16.mxu0 0
  %851 = vmatpush1.bf16.msra.mxu0 0
  %852 = vmatprep.mubr.bf16.mxu0 0
  %853 = vmatmul.mubr.bf16.gmra.mrb[0].mxu0 %v741
  %v854 = vpop.f32.mrb[0].mxu0
  %v855 = vadd.f32 %v770, %v854
  %v856 = vpop.f32.mrb[0].mxu0
  %v857 = vpop.f32.mrb[0].mxu0
  %v858 = vadd.f32 %v770, %v857
  %v859 = vpop.f32.mrb[0].mxu0
  %860 = vmatprep.mubr.bf16.mxu0 0
  %861 = vmatmul.mubr.bf16.gmra.mrb[0].mxu0 %v742
  %v862 = vpop.f32.mrb[0].mxu0
  %v863 = vadd.f32 %v770, %v862
  %v864 = vpop.f32.mrb[0].mxu0
  %v865 = vpop.f32.mrb[0].mxu0
  %v866 = vadd.f32 %v770, %v865
  %v867 = vpop.f32.mrb[0].mxu0
  %868 = vmatprep.mubr.bf16.mxu0 0
  %869 = vmatmul.mubr.bf16.gmra.mrb[0].mxu0 %v743
  %v870 = vpop.f32.mrb[0].mxu0
  %v871 = vadd.f32 %v770, %v870
  %v872 = vpop.f32.mrb[0].mxu0
  %v873 = vpop.f32.mrb[0].mxu0
  %v874 = vadd.f32 %v770, %v873
  %v875 = vpop.f32.mrb[0].mxu0
  %876 = vmatprep.mubr.bf16.mxu0 0
  %877 = vmatmul.mubr.bf16.gmra.mrb[0].mxu0 %v744
  %v878 = vpop.f32.mrb[0].mxu0
  %v879 = vadd.f32 %v770, %v878
  %v880 = vpop.f32.mrb[0].mxu0
  %v881 = vpop.f32.mrb[0].mxu0
  %v882 = vadd.f32 %v770, %v881
  %v883 = vpop.f32.mrb[0].mxu0
  %884 = vmatprep.mubr.bf16.mxu0 0
  %885 = vmatmul.mubr.bf16.gmra.mrb[0].mxu0 %v745
  %v886 = vpop.f32.mrb[0].mxu0
  %v887 = vadd.f32 %v770, %v886
  %v888 = vpop.f32.mrb[0].mxu0
  %v889 = vpop.f32.mrb[0].mxu0
  %v890 = vadd.f32 %v770, %v889
  %v891 = vpop.f32.mrb[0].mxu0
  %892 = vmatprep.mubr.bf16.mxu0 0
  %893 = vmatmul.mubr.bf16.gmra.mrb[0].mxu0 %v746
  %v894 = vpop.f32.mrb[0].mxu0
  %v895 = vadd.f32 %v770, %v894
  %v896 = vpop.f32.mrb[0].mxu0
  %v897 = vpop.f32.mrb[0].mxu0
  %v898 = vadd.f32 %v770, %v897
  %v899 = vpop.f32.mrb[0].mxu0
  %900 = vmatprep.mubr.bf16.mxu0 0
  %901 = vmatmul.mubr.bf16.gmra.mrb[0].mxu0 %v747
  %v902 = vpop.f32.mrb[0].mxu0
  %v903 = vadd.f32 %v770, %v902
  %v904 = vpop.f32.mrb[0].mxu0
  %v905 = vpop.f32.mrb[0].mxu0
  %v906 = vadd.f32 %v770, %v905
  %v907 = vpop.f32.mrb[0].mxu0
  %908 = vmatprep.mubr.bf16.mxu0 0
  %909 = vmatmul.mubr.bf16.gmra.mrb[0].mxu0 %v748
  %v910 = vpop.f32.mrb[0].mxu0
  %v911 = vadd.f32 %v770, %v910
  %v912 = vpop.f32.mrb[0].mxu0
  %v913 = vpop.f32.mrb[0].mxu0
  %v914 = vadd.f32 %v770, %v913
  %v915 = vpop.f32.mrb[0].mxu0
  %916 = vdwg.mxu0
  %v917 = vld [vmem:[%s11] sm:$0x1]
  %v918 = vld [vmem:[%s12] sm:$0x1]
  %vm919 = vcmask 261120
  %v920 = vsel %vm919, %v855, 0.0
  %v921 = vsel %vm919, %v858, 0.0
  %v922 = vadd.f32 %v920, %v921
  %v923 = vsel %vm919, %v863, 0.0
  %v924 = vadd.f32 %v922, %v923
  %v925 = vsel %vm919, %v866, 0.0
  %v926 = vadd.f32 %v924, %v925
  %v927 = vsel %vm919, %v871, 0.0
  %v928 = vadd.f32 %v926, %v927
  %v929 = vsel %vm919, %v874, 0.0
  %v930 = vadd.f32 %v928, %v929
  %v931 = vsel %vm919, %v879, 0.0
  %v932 = vadd.f32 %v930, %v931
  %v933 = vsel %vm919, %v882, 0.0
  %v934 = vadd.f32 %v932, %v933
  %v935 = vsel %vm919, %v887, 0.0
  %v936 = vadd.f32 %v934, %v935
  %v937 = vsel %vm919, %v890, 0.0
  %v938 = vadd.f32 %v936, %v937
  %v939 = vsel %vm919, %v895, 0.0
  %v940 = vadd.f32 %v938, %v939
  %v941 = vsel %vm919, %v898, 0.0
  %v942 = vadd.f32 %v940, %v941
  %v943 = vsel %vm919, %v903, 0.0
  %v944 = vadd.f32 %v942, %v943
  %v945 = vsel %vm919, %v906, 0.0
  %v946 = vadd.f32 %v944, %v945
  %v947 = vsel %vm919, %v911, 0.0
  %v948 = vadd.f32 %v946, %v947
  %v949 = vsel %vm919, %v914, 0.0
  %v950 = vadd.f32 %v948, %v949
  %v951 = vrot.slane %v950, 4
  %v952 = vadd.f32 %v950, %v951
  %v953 = vrot.slane %v952, 2
  %v954 = vadd.f32 %v952, %v953
  %v955 = vrot.slane %v954, 1
  %v956 = vadd.f32 %v954, %v955
  %v957 = vmul.f32 %v956, 0.0078125
  %v958 = vsub.f32 %v855, %v957
  %v959 = vsub.f32 %v858, %v957
  %v960 = vsub.f32 %v863, %v957
  %v961 = vsub.f32 %v866, %v957
  %v962 = vsub.f32 %v871, %v957
  %v963 = vsub.f32 %v874, %v957
  %v964 = vsub.f32 %v879, %v957
  %v965 = vsub.f32 %v882, %v957
  %v966 = vsub.f32 %v887, %v957
  %v967 = vsub.f32 %v890, %v957
  %v968 = vsub.f32 %v895, %v957
  %v969 = vsub.f32 %v898, %v957
  %v970 = vsub.f32 %v903, %v957
  %v971 = vsub.f32 %v906, %v957
  %v972 = vsub.f32 %v911, %v957
  %v973 = vsub.f32 %v914, %v957
  %v974 = vmul.f32 %v958, %v958
  %v975 = vmul.f32 %v959, %v959
  %v976 = vmul.f32 %v960, %v960
  %v977 = vmul.f32 %v961, %v961
  %v978 = vmul.f32 %v962, %v962
  %v979 = vmul.f32 %v963, %v963
  %v980 = vmul.f32 %v964, %v964
  %v981 = vmul.f32 %v965, %v965
  %v982 = vmul.f32 %v966, %v966
  %v983 = vmul.f32 %v967, %v967
  %v984 = vmul.f32 %v968, %v968
  %v985 = vmul.f32 %v969, %v969
  %v986 = vmul.f32 %v970, %v970
  %v987 = vmul.f32 %v971, %v971
  %v988 = vmul.f32 %v972, %v972
  %v989 = vmul.f32 %v973, %v973
  %v990 = vsel %vm919, %v974, 0.0
  %v991 = vsel %vm919, %v975, 0.0
  %v992 = vadd.f32 %v990, %v991
  %v993 = vsel %vm919, %v976, 0.0
  %v994 = vadd.f32 %v992, %v993
  %v995 = vsel %vm919, %v977, 0.0
  %v996 = vadd.f32 %v994, %v995
  %v997 = vsel %vm919, %v978, 0.0
  %v998 = vadd.f32 %v996, %v997
  %v999 = vsel %vm919, %v979, 0.0
  %v1000 = vadd.f32 %v998, %v999
  %v1001 = vsel %vm919, %v980, 0.0
  %v1002 = vadd.f32 %v1000, %v1001
  %v1003 = vsel %vm919, %v981, 0.0
  %v1004 = vadd.f32 %v1002, %v1003
  %v1005 = vsel %vm919, %v982, 0.0
  %v1006 = vadd.f32 %v1004, %v1005
  %v1007 = vsel %vm919, %v983, 0.0
  %v1008 = vadd.f32 %v1006, %v1007
  %v1009 = vsel %vm919, %v984, 0.0
  %v1010 = vadd.f32 %v1008, %v1009
  %v1011 = vsel %vm919, %v985, 0.0
  %v1012 = vadd.f32 %v1010, %v1011
  %v1013 = vsel %vm919, %v986, 0.0
  %v1014 = vadd.f32 %v1012, %v1013
  %v1015 = vsel %vm919, %v987, 0.0
  %v1016 = vadd.f32 %v1014, %v1015
  %v1017 = vsel %vm919, %v988, 0.0
  %v1018 = vadd.f32 %v1016, %v1017
  %v1019 = vsel %vm919, %v989, 0.0
  %v1020 = vadd.f32 %v1018, %v1019
  %v1021 = vrot.slane %v1020, 4
  %v1022 = vadd.f32 %v1020, %v1021
  %v1023 = vrot.slane %v1022, 2
  %v1024 = vadd.f32 %v1022, %v1023
  %v1025 = vrot.slane %v1024, 1
  %v1026 = vadd.f32 %v1024, %v1025
  %v1027 = vmul.f32 %v1026, 0.0078125
  %v1028 = vadd.f32 %v1027, 1e-05
  %v1029 = vrsqrt.pop %v1028
  %v1030 = vmul.f32 %v958, %v1029
  %v1031 = vmul.f32 %v959, %v1029
  %v1032 = vmul.f32 %v960, %v1029
  %v1033 = vmul.f32 %v961, %v1029
  %v1034 = vmul.f32 %v962, %v1029
  %v1035 = vmul.f32 %v963, %v1029
  %v1036 = vmul.f32 %v964, %v1029
  %v1037 = vmul.f32 %v965, %v1029
  %v1038 = vmul.f32 %v966, %v1029
  %v1039 = vmul.f32 %v967, %v1029
  %v1040 = vmul.f32 %v968, %v1029
  %v1041 = vmul.f32 %v969, %v1029
  %v1042 = vmul.f32 %v970, %v1029
  %v1043 = vmul.f32 %v971, %v1029
  %v1044 = vmul.f32 %v972, %v1029
  %v1045 = vmul.f32 %v973, %v1029
  %v1047 = vlaneseq
  %v1048 = vshrl.u32 %v1047, 7
  %v1049 = vsub.s32 0, %v1048
  %v1050 = vrot.slane %v917, %v1049
  %v1052 = vmul.f32 %v1030, %v1050
  %v1053 = vmul.f32 %v1031, %v1050
  %v1054 = vmul.f32 %v1032, %v1050
  %v1055 = vmul.f32 %v1033, %v1050
  %v1056 = vmul.f32 %v1034, %v1050
  %v1057 = vmul.f32 %v1035, %v1050
  %v1058 = vmul.f32 %v1036, %v1050
  %v1059 = vmul.f32 %v1037, %v1050
  %v1060 = vmul.f32 %v1038, %v1050
  %v1061 = vmul.f32 %v1039, %v1050
  %v1062 = vmul.f32 %v1040, %v1050
  %v1063 = vmul.f32 %v1041, %v1050
  %v1064 = vmul.f32 %v1042, %v1050
  %v1065 = vmul.f32 %v1043, %v1050
  %v1066 = vmul.f32 %v1044, %v1050
  %v1067 = vmul.f32 %v1045, %v1050
  %v1069 = vlaneseq
  %v1070 = vshrl.u32 %v1069, 7
  %v1071 = vsub.s32 0, %v1070
  %v1072 = vrot.slane %v918, %v1071
  %v1074 = vadd.f32 %v1052, %v1072
  %v1075 = vadd.f32 %v1053, %v1072
  %v1076 = vadd.f32 %v1054, %v1072
  %v1077 = vadd.f32 %v1055, %v1072
  %v1078 = vadd.f32 %v1056, %v1072
  %v1079 = vadd.f32 %v1057, %v1072
  %v1080 = vadd.f32 %v1058, %v1072
  %v1081 = vadd.f32 %v1059, %v1072
  %v1082 = vadd.f32 %v1060, %v1072
  %v1083 = vadd.f32 %v1061, %v1072
  %v1084 = vadd.f32 %v1062, %v1072
  %v1085 = vadd.f32 %v1063, %v1072
  %v1086 = vadd.f32 %v1064, %v1072
  %v1087 = vadd.f32 %v1065, %v1072
  %v1088 = vadd.f32 %v1066, %v1072
  %v1089 = vadd.f32 %v1067, %v1072
  %v1090 = vpack.c.bf16 %v1075, %v1074
  %v1091 = vpack.c.bf16 %v1077, %v1076
  %v1092 = vpack.c.bf16 %v1079, %v1078
  %v1093 = vpack.c.bf16 %v1081, %v1080
  %v1094 = vpack.c.bf16 %v1083, %v1082
  %v1095 = vpack.c.bf16 %v1085, %v1084
  %v1096 = vpack.c.bf16 %v1087, %v1086
  %v1097 = vpack.c.bf16 %v1089, %v1088
  %v1100 = vsel %vm919, %v1090, 4286644096
  %v1103 = vsel %vm919, %v1091, 4286644096
  %v1106 = vsel %vm919, %v1092, 4286644096
  %v1108 = vmax.bf16 %v1100, %v1106
  %v1110 = vsel %vm919, %v1093, 4286644096
  %v1112 = vmax.bf16 %v1103, %v1110
  %v1113 = vmax.bf16 %v1108, %v1112
  %v1114 = vunpack.i.l.bf16 %v1113
  %v1115 = vunpack.i.h.bf16 %v1113
  %v1116 = vmax.f32 %v1114, %v1115
  %v1117 = vrot.slane %v1116, 4
  %v1118 = vmax.f32 %v1116, %v1117
  %v1119 = vrot.slane %v1118, 2
  %v1120 = vmax.f32 %v1118, %v1119
  %v1121 = vrot.slane %v1120, 1
  %v1122 = vmax.f32 %v1120, %v1121
  %v1123 = vpack.i.bf16 %v1122, %v1122
  %v1125 = vsel %vm919, %v1094, 4286644096
  %v1128 = vsel %vm919, %v1095, 4286644096
  %v1131 = vsel %vm919, %v1096, 4286644096
  %v1133 = vmax.bf16 %v1125, %v1131
  %v1135 = vsel %vm919, %v1097, 4286644096
  %v1137 = vmax.bf16 %v1128, %v1135
  %v1138 = vmax.bf16 %v1133, %v1137
  %v1139 = vunpack.i.l.bf16 %v1138
  %v1140 = vunpack.i.h.bf16 %v1138
  %v1141 = vmax.f32 %v1139, %v1140
  %v1142 = vrot.slane %v1141, 4
  %v1143 = vmax.f32 %v1141, %v1142
  %v1144 = vrot.slane %v1143, 2
  %v1145 = vmax.f32 %v1143, %v1144
  %v1146 = vrot.slane %v1145, 1
  %v1147 = vmax.f32 %v1145, %v1146
  %v1148 = vpack.i.bf16 %v1147, %v1147
  %v1149 = vld [vmem:[%s13] sm:$0xf]
  %v1150 = vld [vmem:[%s13 + $0x4] sm:$0xf]
  %v1151 = vld [vmem:[%s13 + $0x8] sm:$0xf]
  %v1152 = vld [vmem:[%s13 + $0xc] sm:$0xf]
  %v1153 = vld [vmem:[%s14] sm:$0x1]
  %v1155 = vlaneseq
  %v1156 = vshrl.u32 %v1155, 7
  %v1157 = vsub.s32 0, %v1156
  %v1158 = vrot.slane %v1153, %v1157
  %v1162 = vunpack.c.l.b16 %v1123
  %v1163 = vunpack.c.l.b16 %v1148
  %vm1164 = vcmask 1041409
  %v1165 = vsel %vm1164, %v1163, %v1162
  %v1166 = vpack.c.b16 %v1165, %v1165
  %v1171 = vunpack.c.l.b16 %v1149
  %v1172 = vunpack.c.l.b16 %v1150
  %v1173 = vunpack.c.l.b16 %v1151
  %v1174 = vunpack.c.l.b16 %v1152
  %v1175 = vpack.c.b16 %v1172, %v1171
  %v1176 = vpack.c.b16 %v1174, %v1173
  %v1180 = vsel %vm919, %v1166, 0
  %1182 = vmatprep.subr.bf16.mxu0 0
  %1183 = vmatpush1.bf16.msra.mxu0 %v1175
  %1184 = vmatprep.subr.bf16.mxu0 0
  %1185 = vmatpush1.bf16.msra.mxu0 %v1176
  %1186 = vmatprep.subr.bf16.mxu0 0
  %1187 = vmatpush1.bf16.msra.mxu0 0
  %1188 = vmatprep.subr.bf16.mxu0 0
  %1189 = vmatpush1.bf16.msra.mxu0 0
  %1190 = vmatprep.subr.bf16.mxu0 0
  %1191 = vmatpush1.bf16.msra.mxu0 0
  %1192 = vmatprep.subr.bf16.mxu0 0
  %1193 = vmatpush1.bf16.msra.mxu0 0
  %1194 = vmatprep.subr.bf16.mxu0 0
  %1195 = vmatpush1.bf16.msra.mxu0 0
  %1196 = vmatprep.subr.bf16.mxu0 0
  %1197 = vmatpush1.bf16.msra.mxu0 0
  %1198 = vmatprep.subr.bf16.mxu0 0
  %1199 = vmatpush1.bf16.msra.mxu0 0
  %1200 = vmatprep.subr.bf16.mxu0 0
  %1201 = vmatpush1.bf16.msra.mxu0 0
  %1202 = vmatprep.subr.bf16.mxu0 0
  %1203 = vmatpush1.bf16.msra.mxu0 0
  %1204 = vmatprep.subr.bf16.mxu0 0
  %1205 = vmatpush1.bf16.msra.mxu0 0
  %1206 = vmatprep.subr.bf16.mxu0 0
  %1207 = vmatpush1.bf16.msra.mxu0 0
  %1208 = vmatprep.subr.bf16.mxu0 0
  %1209 = vmatpush1.bf16.msra.mxu0 0
  %1210 = vmatprep.subr.bf16.mxu0 0
  %1211 = vmatpush1.bf16.msra.mxu0 0
  %1212 = vmatprep.subr.bf16.mxu0 0
  %1213 = vmatpush1.bf16.msra.mxu0 0
  %1214 = vmatprep.mubr.bf16.mxu0 0
  %1215 = vmatmul.mubr.bf16.gmra.mrb[0].mxu0 %v1180
  %v1216 = vpop.f32.mrb[0].mxu0
  %v1217 = vadd.f32 %v1158, %v1216
  %v1218 = vpop.f32.mrb[0].mxu0
  %v1219 = vpop.f32.mrb[0].mxu0
  %v1220 = vpop.f32.mrb[0].mxu0
  %1221 = vdwg.mxu0
  %v1222 = vld [vmem:[%s15] sm:$0x1]
  %v1223 = vld [vmem:[%s16] sm:$0x1]
  %vm1224 = vcmask 254976
  %v1225 = vsel %vm1224, %v1217, 0.0
  %v1226 = vrot.slane %v1225, 4
  %v1227 = vadd.f32 %v1225, %v1226
  %v1228 = vrot.slane %v1227, 2
  %v1229 = vadd.f32 %v1227, %v1228
  %v1230 = vrot.slane %v1229, 1
  %v1231 = vadd.f32 %v1229, %v1230
  %v1232 = vmul.f32 %v1231, 0.5
  %v1233 = vsub.f32 %v1217, %v1232
  %v1234 = vmul.f32 %v1233, %v1233
  %v1235 = vsel %vm1224, %v1234, 0.0
  %v1236 = vrot.slane %v1235, 4
  %v1237 = vadd.f32 %v1235, %v1236
  %v1238 = vrot.slane %v1237, 2
  %v1239 = vadd.f32 %v1237, %v1238
  %v1240 = vrot.slane %v1239, 1
  %v1241 = vadd.f32 %v1239, %v1240
  %v1242 = vmul.f32 %v1241, 0.5
  %v1243 = vadd.f32 %v1242, 1e-05
  %v1244 = vrsqrt.pop %v1243
  %v1245 = vmul.f32 %v1233, %v1244
  %v1247 = vlaneseq
  %v1248 = vshrl.u32 %v1247, 7
  %v1249 = vsub.s32 0, %v1248
  %v1250 = vrot.slane %v1222, %v1249
  %v1252 = vmul.f32 %v1245, %v1250
  %v1254 = vlaneseq
  %v1255 = vshrl.u32 %v1254, 7
  %v1256 = vsub.s32 0, %v1255
  %v1257 = vrot.slane %v1223, %v1256
  %v1259 = vadd.f32 %v1252, %v1257
  %v1260 = vmax.f32 %v1259, 0.0
  %v1261 = vpack.c.bf16 %v1260, %v1260
  %v1262 = vld [vmem:[%s17] sm:$0xf]
  %v1263 = vld [vmem:[%s17 + $0x4] sm:$0xf]
  %v1264 = vld [vmem:[%s17 + $0x8] sm:$0xf]
  %v1265 = vld [vmem:[%s17 + $0xc] sm:$0xf]
  %v1266 = vld [vmem:[%s18] sm:$0x1]
  %v1268 = vlaneseq
  %v1269 = vshrl.u32 %v1268, 7
  %v1270 = vsub.s32 0, %v1269
  %v1271 = vrot.slane %v1266, %v1270
  %v1277 = vunpack.c.l.b16 %v1262
  %v1278 = vunpack.c.l.b16 %v1263
  %v1279 = vunpack.c.l.b16 %v1264
  %v1280 = vunpack.c.l.b16 %v1265
  %v1281 = vpack.c.b16 %v1278, %v1277
  %v1282 = vpack.c.b16 %v1280, %v1279
  %v1286 = vsel %vm919, %v1261, 0
  %1288 = vmatprep.subr.bf16.mxu0 0
  %1289 = vmatpush1.bf16.msra.mxu0 %v1281
  %1290 = vmatprep.subr.bf16.mxu0 0
  %1291 = vmatpush1.bf16.msra.mxu0 %v1282
  %1292 = vmatprep.subr.bf16.mxu0 0
  %1293 = vmatpush1.bf16.msra.mxu0 0
  %1294 = vmatprep.subr.bf16.mxu0 0
  %1295 = vmatpush1.bf16.msra.mxu0 0
  %1296 = vmatprep.subr.bf16.mxu0 0
  %1297 = vmatpush1.bf16.msra.mxu0 0
  %1298 = vmatprep.subr.bf16.mxu0 0
  %1299 = vmatpush1.bf16.msra.mxu0 0
  %1300 = vmatprep.subr.bf16.mxu0 0
  %1301 = vmatpush1.bf16.msra.mxu0 0
  %1302 = vmatprep.subr.bf16.mxu0 0
  %1303 = vmatpush1.bf16.msra.mxu0 0
  %1304 = vmatprep.subr.bf16.mxu0 0
  %1305 = vmatpush1.bf16.msra.mxu0 0
  %1306 = vmatprep.subr.bf16.mxu0 0
  %1307 = vmatpush1.bf16.msra.mxu0 0
  %1308 = vmatprep.subr.bf16.mxu0 0
  %1309 = vmatpush1.bf16.msra.mxu0 0
  %1310 = vmatprep.subr.bf16.mxu0 0
  %1311 = vmatpush1.bf16.msra.mxu0 0
  %1312 = vmatprep.subr.bf16.mxu0 0
  %1313 = vmatpush1.bf16.msra.mxu0 0
  %1314 = vmatprep.subr.bf16.mxu0 0
  %1315 = vmatpush1.bf16.msra.mxu0 0
  %1316 = vmatprep.subr.bf16.mxu0 0
  %1317 = vmatpush1.bf16.msra.mxu0 0
  %1318 = vmatprep.subr.bf16.mxu0 0
  %1319 = vmatpush1.bf16.msra.mxu0 0
  %1320 = vmatprep.mubr.bf16.mxu0 0
  %1321 = vmatmul.mubr.bf16.gmra.mrb[0].mxu0 %v1286
  %v1322 = vpop.f32.mrb[0].mxu0
  %v1323 = vadd.f32 %v1271, %v1322
  %v1324 = vpop.f32.mrb[0].mxu0
  %v1325 = vpop.f32.mrb[0].mxu0
  %v1326 = vpop.f32.mrb[0].mxu0
  %1327 = vdwg.mxu0
  %v1328 = vld [vmem:[%s19] sm:$0x1]
  %v1329 = vld [vmem:[%s20] sm:$0x1]
  %v1330 = vsel %vm1224, %v1323, 0.0
  %v1331 = vrot.slane %v1330, 4
  %v1332 = vadd.f32 %v1330, %v1331
  %v1333 = vrot.slane %v1332, 2
  %v1334 = vadd.f32 %v1332, %v1333
  %v1335 = vrot.slane %v1334, 1
  %v1336 = vadd.f32 %v1334, %v1335
  %v1337 = vmul.f32 %v1336, 0.5
  %v1338 = vsub.f32 %v1323, %v1337
  %v1339 = vmul.f32 %v1338, %v1338
  %v1340 = vsel %vm1224, %v1339, 0.0
  %v1341 = vrot.slane %v1340, 4
  %v1342 = vadd.f32 %v1340, %v1341
  %v1343 = vrot.slane %v1342, 2
  %v1344 = vadd.f32 %v1342, %v1343
  %v1345 = vrot.slane %v1344, 1
  %v1346 = vadd.f32 %v1344, %v1345
  %v1347 = vmul.f32 %v1346, 0.5
  %v1348 = vadd.f32 %v1347, 1e-05
  %v1349 = vrsqrt.pop %v1348
  %v1350 = vmul.f32 %v1338, %v1349
  %v1352 = vlaneseq
  %v1353 = vshrl.u32 %v1352, 7
  %v1354 = vsub.s32 0, %v1353
  %v1355 = vrot.slane %v1328, %v1354
  %v1357 = vmul.f32 %v1350, %v1355
  %v1359 = vlaneseq
  %v1360 = vshrl.u32 %v1359, 7
  %v1361 = vsub.s32 0, %v1360
  %v1362 = vrot.slane %v1329, %v1361
  %v1364 = vadd.f32 %v1357, %v1362
  %v1365 = vmax.f32 %v1364, 0.0
  %1366 = vst.msk [vmem:[%s21] sm:$0x3] %vm1224, %v1365
  // Predicated region
  $region86: #{encoder_decoder_forward.2} parent=0 // pred_check
    _
  $region87: #{encoder_decoder_forward.2} parent=0 // pred_check_branch
    %1368 = sbr.rel (0) target = $region89
  $region88: #{encoder_decoder_forward.2} parent=0 // pred_region
    _
  $region89: #{encoder_decoder_forward.2} parent=0 // pred_fallthru
    _
  // Predicated region
  $region90: #{encoder_decoder_forward.2} parent=0 // pred_check
    _
  $region91: #{encoder_decoder_forward.2} parent=0 // pred_check_branch
    %1370 = sbr.rel (0) target = $region93
  $region92: #{encoder_decoder_forward.2} parent=0 // pred_region
    _
  $region93: #{encoder_decoder_forward.2} parent=0 // pred_fallthru
    _

// kernel: encoder_decoder_forward.3
$region0: #{encoder_decoder_forward.3}
  #allocation0 [shape = 'u32[]', space=smem, size = 0x4, offset = 0x4, fixed_abs, tag = 'smem constant byte address 0x4 - core index']
  #allocation1 [shape = 'u32[144,128]{1,0:T(1,128)}', space=vmem, size = 0x12000, scoped, tag = 'internal scratch']
  %s0 = inlined_call_operand.vmem [shape: f32[4,16,8], index: 0, kind: input, shape index: {}]
  %s1 = inlined_call_operand.vmem [shape: f32[2,32], index: 1, kind: input, shape index: {}]
  %s2 = inlined_call_operand.vmem [shape: bf16[4,8,32], index: 2, kind: input, shape index: {}]
  %s3 = inlined_call_operand.vmem [shape: f32[4,1,32], index: 3, kind: input, shape index: {}]
  %s4 = inlined_call_operand.vmem [shape: f32[4,1,32], index: 4, kind: input, shape index: {}]
  %s5 = inlined_call_operand.vmem [shape: f32[4,1,32], index: 5, kind: input, shape index: {}]
  %s6 = inlined_call_operand.vmem [shape: bf16[4,32,32], index: 6, kind: input, shape index: {}]
  %s7 = inlined_call_operand.vmem [shape: f32[4,1,32], index: 7, kind: input, shape index: {}]
  %s8 = inlined_call_operand.vmem [shape: f32[4,1,32], index: 8, kind: input, shape index: {}]
  %s9 = inlined_call_operand.vmem [shape: f32[4,1,32], index: 9, kind: input, shape index: {}]
  %s10 = inlined_call_operand.vmem [shape: bf16[4,2,32,32], index: 10, kind: input, shape index: {}]
  %s11 = inlined_call_operand.vmem [shape: f32[4,2,1,32], index: 11, kind: input, shape index: {}]
  %s12 = inlined_call_operand.vmem [shape: f32[4,2,1,32], index: 12, kind: input, shape index: {}]
  %s13 = inlined_call_operand.vmem [shape: f32[4,2,1,32], index: 13, kind: input, shape index: {}]
  %s14 = inlined_call_operand.vmem [shape: bf16[4,8,32], index: 14, kind: input, shape index: {}]
  %s15 = inlined_call_operand.vmem [shape: f32[4,8,1], index: 15, kind: input, shape index: {}]
  %s16 = inlined_call_operand.vmem [shape: f32[4,8,32], index: 16, kind: output, shape index: {}]
  %s17 = sld [smem:[#allocation0]]
  $region97: #{encoder_decoder_forward.3} parent=0
    _
  %s19 = ssub.s32 1, %s17
  %s20 = scalar_select 0, %s19, %s17
  loop: start=0, step=1, limit=4
  $region2: #{encoder_decoder_forward.3} parent=0 // loop_pre_header
    _
  $region3: #{encoder_decoder_forward.3} parent=0 // loop_header
    %s22 = sphi 0, %s26
    %p23 = scmp.ge.s32.totalorder %s22, 4
    %s32 = sphi 0, %s34
    %s35 = sphi 0, %s32
    %s36 = sphi 0, %s35
    %s52 = sphi 0, %s36
    %s56 = sphi 0, %s56
    %s58 = sphi 0, %s56
    %s59 = sphi 0, %s58
    %s73 = sphi 0, %s59
    %s79 = sphi 0, %s81
    %s82 = sphi 0, %s79
    %s83 = sphi 0, %s82
    %s99 = sphi 0, %s83
    %s105 = sphi 0, %s107
    %s108 = sphi 0, %s105
    %s109 = sphi 0, %s108
    %s125 = sphi 0, %s109
    %s131 = sphi 0, %s133
    %s134 = sphi 0, %s131
    %s135 = sphi 0, %s134
    %s151 = sphi 0, %s135
    %s157 = sphi 0, %s159
    %s160 = sphi 0, %s157
    %s161 = sphi 0, %s160
    %s177 = sphi 0, %s161
    %s183 = sphi 0, %s185
    %s186 = sphi 0, %s183
    %s187 = sphi 0, %s186
    %s203 = sphi 0, %s187
    %s209 = sphi 0, %s211
    %s212 = sphi 0, %s209
    %s213 = sphi 0, %s212
    %s229 = sphi 0, %s213
    %s235 = sphi 0, %s237
    %s238 = sphi 0, %s235
    %s239 = sphi 0, %s238
    %s255 = sphi 0, %s239
    %s261 = sphi 0, %s263
    %s264 = sphi 0, %s261
    %s265 = sphi 0, %s264
    %s281 = sphi 0, %s265
    %s287 = sphi 0, %s289
    %s290 = sphi 0, %s287
    %s291 = sphi 0, %s290
    %s307 = sphi 0, %s291
    %s313 = sphi 0, %s315
    %s316 = sphi 0, %s313
    %s317 = sphi 0, %s316
    %s333 = sphi 0, %s317
    %s339 = sphi 0, %s341
    %s342 = sphi 0, %s339
    %s343 = sphi 0, %s342
    %s359 = sphi 0, %s343
    %s365 = sphi 0, %s367
    %s368 = sphi 0, %s365
    %s369 = sphi 0, %s368
    %s385 = sphi 0, %s369
    %s391 = sphi 0, %s393
    %s394 = sphi 0, %s391
    %s395 = sphi 0, %s394
    %s411 = sphi 0, %s395
    %s417 = sphi 0, %s419
    %s420 = sphi 0, %s417
    %s421 = sphi 0, %s420
    %s437 = sphi 0, %s421
    %s443 = sphi 0, %s445
    %s446 = sphi 0, %s443
    %s447 = sphi 0, %s446
    %s463 = sphi 0, %s447
  $region4: #{encoder_decoder_forward.3} parent=0 // loop_header_branch
    %25 = sbr.rel (%p23) target = $region8
  $region5: #{encoder_decoder_forward.3} parent=0 // loop_body
    %s27 = ssub.s32 %s22, 1
    %s28 = ssub.s32 %s22, 2
    %s29 = sadd.s32 %s22, 1
    %s30 = ssub.s32 %s22, %s29
    %p31 = scmp.eq.s32.totalorder %s30, 0
    %s33 = sadd.s32 %s32, 1
    %s34 = scalar_select %p31, %s32, %s33
    %p37 = pneg %p31
    %p38 = scmp.eq.s32.totalorder %s22, 1
    %p39 = por %p37, %p38
    %p40 = scmp.ne.s32.totalorder %s32, %s35
    %p41 = scmp.eq.s32.totalorder %s22, 0
    %p42 = por %p40, %p41
    %p43 = scmp.ne.s32.totalorder %s32, %s35
    %p44 = scmp.eq.s32.totalorder %s27, 1
    %p45 = por %p43, %p44
    %p46 = scmp.ne.s32.totalorder %s35, %s36
    %p47 = scmp.eq.s32.totalorder %s27, 0
    %p48 = por %p46, %p47
    %p49 = scmp.ne.s32.totalorder %s35, %s36
    %p50 = scmp.eq.s32.totalorder %s28, 1
    %p51 = por %p49, %p50
    %p53 = scmp.ne.s32.totalorder %s36, %s52
    %p54 = scmp.eq.s32.totalorder %s28, 0
    %p55 = por %p53, %p54
    %s57 = sadd.s32 %s56, 1
    %p60 = scmp.eq.s32.totalorder %s22, 1
    %p61 = scmp.ne.s32.totalorder %s56, %s58
    %p62 = scmp.eq.s32.totalorder %s22, 0
    %p63 = por %p61, %p62
    %p64 = scmp.ne.s32.totalorder %s56, %s58
    %p65 = scmp.eq.s32.totalorder %s27, 1
    %p66 = por %p64, %p65
    %p67 = scmp.ne.s32.totalorder %s58, %s59
    %p68 = scmp.eq.s32.totalorder %s27, 0
    %p69 = por %p67, %p68
    %p70 = scmp.ne.s32.totalorder %s58, %s59
    %p71 = scmp.eq.s32.totalorder %s28, 1
    %p72 = por %p70, %p71
    %p74 = scmp.ne.s32.totalorder %s59, %s73
    %p75 = scmp.eq.s32.totalorder %s28, 0
    %p76 = por %p74, %p75
    %s77 = ssub.s32 %s22, %s29
    %p78 = scmp.eq.s32.totalorder %s77, 0
    %s80 = sadd.s32 %s79, 1
    %s81 = scalar_select %p78, %s79, %s80
    %p84 = pneg %p78
    %p85 = scmp.eq.s32.totalorder %s22, 1
    %p86 = por %p84, %p85
    %p87 = scmp.ne.s32.totalorder %s79, %s82
    %p88 = scmp.eq.s32.totalorder %s22, 0
    %p89 = por %p87, %p88
    %p90 = scmp.ne.s32.totalorder %s79, %s82
    %p91 = scmp.eq.s32.totalorder %s27, 1
    %p92 = por %p90, %p91
    %p93 = scmp.ne.s32.totalorder %s82, %s83
    %p94 = scmp.eq.s32.totalorder %s27, 0
    %p95 = por %p93, %p94
    %p96 = scmp.ne.s32.totalorder %s82, %s83
    %p97 = scmp.eq.s32.totalorder %s28, 1
    %p98 = por %p96, %p97
    %p100 = scmp.ne.s32.totalorder %s83, %s99
    %p101 = scmp.eq.s32.totalorder %s28, 0
    %p102 = por %p100, %p101
    %s103 = ssub.s32 %s22, %s29
    %p104 = scmp.eq.s32.totalorder %s103, 0
    %s106 = sadd.s32 %s105, 1
    %s107 = scalar_select %p104, %s105, %s106
    %p110 = pneg %p104
    %p111 = scmp.eq.s32.totalorder %s22, 1
    %p112 = por %p110, %p111
    %p113 = scmp.ne.s32.totalorder %s105, %s108
    %p114 = scmp.eq.s32.totalorder %s22, 0
    %p115 = por %p113, %p114
    %p116 = scmp.ne.s32.totalorder %s105, %s108
    %p117 = scmp.eq.s32.totalorder %s27, 1
    %p118 = por %p116, %p117
    %p119 = scmp.ne.s32.totalorder %s108, %s109
    %p120 = scmp.eq.s32.totalorder %s27, 0
    %p121 = por %p119, %p120
    %p122 = scmp.ne.s32.totalorder %s108, %s109
    %p123 = scmp.eq.s32.totalorder %s28, 1
    %p124 = por %p122, %p123
    %p126 = scmp.ne.s32.totalorder %s109, %s125
    %p127 = scmp.eq.s32.totalorder %s28, 0
    %p128 = por %p126, %p127
    %s129 = ssub.s32 %s22, %s29
    %p130 = scmp.eq.s32.totalorder %s129, 0
    %s132 = sadd.s32 %s131, 1
    %s133 = scalar_select %p130, %s131, %s132
    %p136 = pneg %p130
    %p137 = scmp.eq.s32.totalorder %s22, 1
    %p138 = por %p136, %p137
    %p139 = scmp.ne.s32.totalorder %s131, %s134
    %p140 = scmp.eq.s32.totalorder %s22, 0
    %p141 = por %p139, %p140
    %p142 = scmp.ne.s32.totalorder %s131, %s134
    %p143 = scmp.eq.s32.totalorder %s27, 1
    %p144 = por %p142, %p143
    %p145 = scmp.ne.s32.totalorder %s134, %s135
    %p146 = scmp.eq.s32.totalorder %s27, 0
    %p147 = por %p145, %p146
    %p148 = scmp.ne.s32.totalorder %s134, %s135
    %p149 = scmp.eq.s32.totalorder %s28, 1
    %p150 = por %p148, %p149
    %p152 = scmp.ne.s32.totalorder %s135, %s151
    %p153 = scmp.eq.s32.totalorder %s28, 0
    %p154 = por %p152, %p153
    %s155 = ssub.s32 %s22, %s29
    %p156 = scmp.eq.s32.totalorder %s155, 0
    %s158 = sadd.s32 %s157, 1
    %s159 = scalar_select %p156, %s157, %s158
    %p162 = pneg %p156
    %p163 = scmp.eq.s32.totalorder %s22, 1
    %p164 = por %p162, %p163
    %p165 = scmp.ne.s32.totalorder %s157, %s160
    %p166 = scmp.eq.s32.totalorder %s22, 0
    %p167 = por %p165, %p166
    %p168 = scmp.ne.s32.totalorder %s157, %s160
    %p169 = scmp.eq.s32.totalorder %s27, 1
    %p170 = por %p168, %p169
    %p171 = scmp.ne.s32.totalorder %s160, %s161
    %p172 = scmp.eq.s32.totalorder %s27, 0
    %p173 = por %p171, %p172
    %p174 = scmp.ne.s32.totalorder %s160, %s161
    %p175 = scmp.eq.s32.totalorder %s28, 1
    %p176 = por %p174, %p175
    %p178 = scmp.ne.s32.totalorder %s161, %s177
    %p179 = scmp.eq.s32.totalorder %s28, 0
    %p180 = por %p178, %p179
    %s181 = ssub.s32 %s22, %s29
    %p182 = scmp.eq.s32.totalorder %s181, 0
    %s184 = sadd.s32 %s183, 1
    %s185 = scalar_select %p182, %s183, %s184
    %p188 = pneg %p182
    %p189 = scmp.eq.s32.totalorder %s22, 1
    %p190 = por %p188, %p189
    %p191 = scmp.ne.s32.totalorder %s183, %s186
    %p192 = scmp.eq.s32.totalorder %s22, 0
    %p193 = por %p191, %p192
    %p194 = scmp.ne.s32.totalorder %s183, %s186
    %p195 = scmp.eq.s32.totalorder %s27, 1
    %p196 = por %p194, %p195
    %p197 = scmp.ne.s32.totalorder %s186, %s187
    %p198 = scmp.eq.s32.totalorder %s27, 0
    %p199 = por %p197, %p198
    %p200 = scmp.ne.s32.totalorder %s186, %s187
    %p201 = scmp.eq.s32.totalorder %s28, 1
    %p202 = por %p200, %p201
    %p204 = scmp.ne.s32.totalorder %s187, %s203
    %p205 = scmp.eq.s32.totalorder %s28, 0
    %p206 = por %p204, %p205
    %s207 = ssub.s32 %s22, %s29
    %p208 = scmp.eq.s32.totalorder %s207, 0
    %s210 = sadd.s32 %s209, 1
    %s211 = scalar_select %p208, %s209, %s210
    %p214 = pneg %p208
    %p215 = scmp.eq.s32.totalorder %s22, 1
    %p216 = por %p214, %p215
    %p217 = scmp.ne.s32.totalorder %s209, %s212
    %p218 = scmp.eq.s32.totalorder %s22, 0
    %p219 = por %p217, %p218
    %p220 = scmp.ne.s32.totalorder %s209, %s212
    %p221 = scmp.eq.s32.totalorder %s27, 1
    %p222 = por %p220, %p221
    %p223 = scmp.ne.s32.totalorder %s212, %s213
    %p224 = scmp.eq.s32.totalorder %s27, 0
    %p225 = por %p223, %p224
    %p226 = scmp.ne.s32.totalorder %s212, %s213
    %p227 = scmp.eq.s32.totalorder %s28, 1
    %p228 = por %p226, %p227
    %p230 = scmp.ne.s32.totalorder %s213, %s229
    %p231 = scmp.eq.s32.totalorder %s28, 0
    %p232 = por %p230, %p231
    %s233 = ssub.s32 %s22, %s29
    %p234 = scmp.eq.s32.totalorder %s233, 0
    %s236 = sadd.s32 %s235, 1
    %s237 = scalar_select %p234, %s235, %s236
    %p240 = pneg %p234
    %p241 = scmp.eq.s32.totalorder %s22, 1
    %p242 = por %p240, %p241
    %p243 = scmp.ne.s32.totalorder %s235, %s238
    %p244 = scmp.eq.s32.totalorder %s22, 0
    %p245 = por %p243, %p244
    %p246 = scmp.ne.s32.totalorder %s235, %s238
    %p247 = scmp.eq.s32.totalorder %s27, 1
    %p248 = por %p246, %p247
    %p249 = scmp.ne.s32.totalorder %s238, %s239
    %p250 = scmp.eq.s32.totalorder %s27, 0
    %p251 = por %p249, %p250
    %p252 = scmp.ne.s32.totalorder %s238, %s239
    %p253 = scmp.eq.s32.totalorder %s28, 1
    %p254 = por %p252, %p253
    %p256 = scmp.ne.s32.totalorder %s239, %s255
    %p257 = scmp.eq.s32.totalorder %s28, 0
    %p258 = por %p256, %p257
    %s259 = ssub.s32 %s22, %s29
    %p260 = scmp.eq.s32.totalorder %s259, 0
    %s262 = sadd.s32 %s261, 1
    %s263 = scalar_select %p260, %s261, %s262
    %p266 = pneg %p260
    %p267 = scmp.eq.s32.totalorder %s22, 1
    %p268 = por %p266, %p267
    %p269 = scmp.ne.s32.totalorder %s261, %s264
    %p270 = scmp.eq.s32.totalorder %s22, 0
    %p271 = por %p269, %p270
    %p272 = scmp.ne.s32.totalorder %s261, %s264
    %p273 = scmp.eq.s32.totalorder %s27, 1
    %p274 = por %p272, %p273
    %p275 = scmp.ne.s32.totalorder %s264, %s265
    %p276 = scmp.eq.s32.totalorder %s27, 0
    %p277 = por %p275, %p276
    %p278 = scmp.ne.s32.totalorder %s264, %s265
    %p279 = scmp.eq.s32.totalorder %s28, 1
    %p280 = por %p278, %p279
    %p282 = scmp.ne.s32.totalorder %s265, %s281
    %p283 = scmp.eq.s32.totalorder %s28, 0
    %p284 = por %p282, %p283
    %s285 = ssub.s32 %s22, %s29
    %p286 = scmp.eq.s32.totalorder %s285, 0
    %s288 = sadd.s32 %s287, 1
    %s289 = scalar_select %p286, %s287, %s288
    %p292 = pneg %p286
    %p293 = scmp.eq.s32.totalorder %s22, 1
    %p294 = por %p292, %p293
    %p295 = scmp.ne.s32.totalorder %s287, %s290
    %p296 = scmp.eq.s32.totalorder %s22, 0
    %p297 = por %p295, %p296
    %p298 = scmp.ne.s32.totalorder %s287, %s290
    %p299 = scmp.eq.s32.totalorder %s27, 1
    %p300 = por %p298, %p299
    %p301 = scmp.ne.s32.totalorder %s290, %s291
    %p302 = scmp.eq.s32.totalorder %s27, 0
    %p303 = por %p301, %p302
    %p304 = scmp.ne.s32.totalorder %s290, %s291
    %p305 = scmp.eq.s32.totalorder %s28, 1
    %p306 = por %p304, %p305
    %p308 = scmp.ne.s32.totalorder %s291, %s307
    %p309 = scmp.eq.s32.totalorder %s28, 0
    %p310 = por %p308, %p309
    %s311 = ssub.s32 %s22, %s29
    %p312 = scmp.eq.s32.totalorder %s311, 0
    %s314 = sadd.s32 %s313, 1
    %s315 = scalar_select %p312, %s313, %s314
    %p318 = pneg %p312
    %p319 = scmp.eq.s32.totalorder %s22, 1
    %p320 = por %p318, %p319
    %p321 = scmp.ne.s32.totalorder %s313, %s316
    %p322 = scmp.eq.s32.totalorder %s22, 0
    %p323 = por %p321, %p322
    %p324 = scmp.ne.s32.totalorder %s313, %s316
    %p325 = scmp.eq.s32.totalorder %s27, 1
    %p326 = por %p324, %p325
    %p327 = scmp.ne.s32.totalorder %s316, %s317
    %p328 = scmp.eq.s32.totalorder %s27, 0
    %p329 = por %p327, %p328
    %p330 = scmp.ne.s32.totalorder %s316, %s317
    %p331 = scmp.eq.s32.totalorder %s28, 1
    %p332 = por %p330, %p331
    %p334 = scmp.ne.s32.totalorder %s317, %s333
    %p335 = scmp.eq.s32.totalorder %s28, 0
    %p336 = por %p334, %p335
    %s337 = ssub.s32 %s22, %s29
    %p338 = scmp.eq.s32.totalorder %s337, 0
    %s340 = sadd.s32 %s339, 1
    %s341 = scalar_select %p338, %s339, %s340
    %p344 = pneg %p338
    %p345 = scmp.eq.s32.totalorder %s22, 1
    %p346 = por %p344, %p345
    %p347 = scmp.ne.s32.totalorder %s339, %s342
    %p348 = scmp.eq.s32.totalorder %s22, 0
    %p349 = por %p347, %p348
    %p350 = scmp.ne.s32.totalorder %s339, %s342
    %p351 = scmp.eq.s32.totalorder %s27, 1
    %p352 = por %p350, %p351
    %p353 = scmp.ne.s32.totalorder %s342, %s343
    %p354 = scmp.eq.s32.totalorder %s27, 0
    %p355 = por %p353, %p354
    %p356 = scmp.ne.s32.totalorder %s342, %s343
    %p357 = scmp.eq.s32.totalorder %s28, 1
    %p358 = por %p356, %p357
    %p360 = scmp.ne.s32.totalorder %s343, %s359
    %p361 = scmp.eq.s32.totalorder %s28, 0
    %p362 = por %p360, %p361
    %s363 = ssub.s32 %s22, %s29
    %p364 = scmp.eq.s32.totalorder %s363, 0
    %s366 = sadd.s32 %s365, 1
    %s367 = scalar_select %p364, %s365, %s366
    %p370 = pneg %p364
    %p371 = scmp.eq.s32.totalorder %s22, 1
    %p372 = por %p370, %p371
    %p373 = scmp.ne.s32.totalorder %s365, %s368
    %p374 = scmp.eq.s32.totalorder %s22, 0
    %p375 = por %p373, %p374
    %p376 = scmp.ne.s32.totalorder %s365, %s368
    %p377 = scmp.eq.s32.totalorder %s27, 1
    %p378 = por %p376, %p377
    %p379 = scmp.ne.s32.totalorder %s368, %s369
    %p380 = scmp.eq.s32.totalorder %s27, 0
    %p381 = por %p379, %p380
    %p382 = scmp.ne.s32.totalorder %s368, %s369
    %p383 = scmp.eq.s32.totalorder %s28, 1
    %p384 = por %p382, %p383
    %p386 = scmp.ne.s32.totalorder %s369, %s385
    %p387 = scmp.eq.s32.totalorder %s28, 0
    %p388 = por %p386, %p387
    %s389 = ssub.s32 %s22, %s29
    %p390 = scmp.eq.s32.totalorder %s389, 0
    %s392 = sadd.s32 %s391, 1
    %s393 = scalar_select %p390, %s391, %s392
    %p396 = pneg %p390
    %p397 = scmp.eq.s32.totalorder %s22, 1
    %p398 = por %p396, %p397
    %p399 = scmp.ne.s32.totalorder %s391, %s394
    %p400 = scmp.eq.s32.totalorder %s22, 0
    %p401 = por %p399, %p400
    %p402 = scmp.ne.s32.totalorder %s391, %s394
    %p403 = scmp.eq.s32.totalorder %s27, 1
    %p404 = por %p402, %p403
    %p405 = scmp.ne.s32.totalorder %s394, %s395
    %p406 = scmp.eq.s32.totalorder %s27, 0
    %p407 = por %p405, %p406
    %p408 = scmp.ne.s32.totalorder %s394, %s395
    %p409 = scmp.eq.s32.totalorder %s28, 1
    %p410 = por %p408, %p409
    %p412 = scmp.ne.s32.totalorder %s395, %s411
    %p413 = scmp.eq.s32.totalorder %s28, 0
    %p414 = por %p412, %p413
    %s415 = ssub.s32 %s22, %s29
    %p416 = scmp.eq.s32.totalorder %s415, 0
    %s418 = sadd.s32 %s417, 1
    %s419 = scalar_select %p416, %s417, %s418
    %p422 = pneg %p416
    %p423 = scmp.eq.s32.totalorder %s22, 1
    %p424 = por %p422, %p423
    %p425 = scmp.ne.s32.totalorder %s417, %s420
    %p426 = scmp.eq.s32.totalorder %s22, 0
    %p427 = por %p425, %p426
    %p428 = scmp.ne.s32.totalorder %s417, %s420
    %p429 = scmp.eq.s32.totalorder %s27, 1
    %p430 = por %p428, %p429
    %p431 = scmp.ne.s32.totalorder %s420, %s421
    %p432 = scmp.eq.s32.totalorder %s27, 0
    %p433 = por %p431, %p432
    %p434 = scmp.ne.s32.totalorder %s420, %s421
    %p435 = scmp.eq.s32.totalorder %s28, 1
    %p436 = por %p434, %p435
    %p438 = scmp.ne.s32.totalorder %s421, %s437
    %p439 = scmp.eq.s32.totalorder %s28, 0
    %p440 = por %p438, %p439
    %s441 = ssub.s32 %s22, %s29
    %p442 = scmp.eq.s32.totalorder %s441, 0
    %s444 = sadd.s32 %s443, 1
    %s445 = scalar_select %p442, %s443, %s444
    %p448 = pneg %p442
    %p449 = scmp.eq.s32.totalorder %s22, 1
    %p450 = por %p448, %p449
    %p451 = scmp.ne.s32.totalorder %s443, %s446
    %p452 = scmp.eq.s32.totalorder %s22, 0
    %p453 = por %p451, %p452
    %p454 = scmp.ne.s32.totalorder %s443, %s446
    %p455 = scmp.eq.s32.totalorder %s27, 1
    %p456 = por %p454, %p455
    %p457 = scmp.ne.s32.totalorder %s446, %s447
    %p458 = scmp.eq.s32.totalorder %s27, 0
    %p459 = por %p457, %p458
    %p460 = scmp.ne.s32.totalorder %s446, %s447
    %p461 = scmp.eq.s32.totalorder %s28, 1
    %p462 = por %p460, %p461
    %p464 = scmp.ne.s32.totalorder %s447, %s463
    %p465 = scmp.eq.s32.totalorder %s28, 0
    %p466 = por %p464, %p465
    %p467 = scmp.le.s32.totalorder 1, %s22
    %p468 = scmp.lt.s32.totalorder %s22, 3
    %p469 = pnand %p467, %p468
    %p470 = pneg %p469
    // Predicated region
    $region9: #{encoder_decoder_forward.3} parent=5 // pred_check
      _
    $region10: #{encoder_decoder_forward.3} parent=5 // pred_check_branch
      %472 = sbr.rel (%p469) target = $region12
    $region11: #{encoder_decoder_forward.3} parent=5 // pred_region
      %s473 = ssub.s32 %s22, 1
      // Predicated region
      $region13: #{encoder_decoder_forward.3} parent=11 // pred_check
        %p474 = pneg %p69
      $region14: #{encoder_decoder_forward.3} parent=11 // pred_check_branch
        %476 = sbr.rel (%p474) target = $region16
      $region15: #{encoder_decoder_forward.3} parent=11 // pred_region
        _
      $region16: #{encoder_decoder_forward.3} parent=11 // pred_fallthru
        _
    $region12: #{encoder_decoder_forward.3} parent=5 // pred_fallthru
      _
    %p477 = scmp.lt.s32.totalorder %s22, 2
    // Predicated region
    $region17: #{encoder_decoder_forward.3} parent=5 // pred_check
      %p478 = pneg %p477
    $region18: #{encoder_decoder_forward.3} parent=5 // pred_check_branch
      %480 = sbr.rel (%p478) target = $region20
    $region19: #{encoder_decoder_forward.3} parent=5 // pred_region
      // Predicated region
      $region21: #{encoder_decoder_forward.3} parent=19 // pred_check
        %p481 = pneg %p42
      $region22: #{encoder_decoder_forward.3} parent=19 // pred_check_branch
        %483 = sbr.rel (%p481) target = $region24
      $region23: #{encoder_decoder_forward.3} parent=19 // pred_region
        %s484 = smul.u32 2, %s22
        %p485 = scmp.lt.s32.totalorder %s484, 3
        %s486 = scalar_select %p485, %s484, 3
        %s487 = smul.addr %s486, 2
        %s488 = smul.addr %s487, 8
        %s489 = scalar_lea.vmem %s0, %s488
        %s490 = smul.u32 2, %s22
      $region24: #{encoder_decoder_forward.3} parent=19 // pred_fallthru
        _
      // Predicated region
      $region25: #{encoder_decoder_forward.3} parent=19 // pred_check
        %p491 = pneg %p89
      $region26: #{encoder_decoder_forward.3} parent=19 // pred_check_branch
        %493 = sbr.rel (%p491) target = $region28
      $region27: #{encoder_decoder_forward.3} parent=19 // pred_region
        %s494 = smul.u32 2, %s22
        %p495 = scmp.lt.s32.totalorder %s494, 3
        %s496 = scalar_select %p495, %s494, 3
        %s497 = smul.addr %s496, 4
        %s498 = scalar_lea.vmem %s2, %s497
        %s499 = smul.u32 2, %s22
      $region28: #{encoder_decoder_forward.3} parent=19 // pred_fallthru
        _
      // Predicated region
      $region29: #{encoder_decoder_forward.3} parent=19 // pred_check
        %p500 = pneg %p115
      $region30: #{encoder_decoder_forward.3} parent=19 // pred_check_branch
        %502 = sbr.rel (%p500) target = $region32
      $region31: #{encoder_decoder_forward.3} parent=19 // pred_region
        %s503 = smul.u32 2, %s22
        %p504 = scmp.lt.s32.totalorder %s503, 3
        %s505 = scalar_select %p504, %s503, 3
        %s506 = scalar_lea.vmem %s3, %s505
        %s507 = smul.u32 2, %s22
      $region32: #{encoder_decoder_forward.3} parent=19 // pred_fallthru
        _
      // Predicated region
      $region33: #{encoder_decoder_forward.3} parent=19 // pred_check
        %p508 = pneg %p141
      $region34: #{encoder_decoder_forward.3} parent=19 // pred_check_branch
        %510 = sbr.rel (%p508) target = $region36
      $region35: #{encoder_decoder_forward.3} parent=19 // pred_region
        %s511 = smul.u32 2, %s22
        %p512 = scmp.lt.s32.totalorder %s511, 3
        %s513 = scalar_select %p512, %s511, 3
        %s514 = scalar_lea.vmem %s4, %s513
        %s515 = smul.u32 2, %s22
      $region36: #{encoder_decoder_forward.3} parent=19 // pred_fallthru
        _
      // Predicated region
      $region37: #{encoder_decoder_forward.3} parent=19 // pred_check
        %p516 = pneg %p167
      $region38: #{encoder_decoder_forward.3} parent=19 // pred_check_branch
        %518 = sbr.rel (%p516) target = $region40
      $region39: #{encoder_decoder_forward.3} parent=19 // pred_region
        %s519 = smul.u32 2, %s22
        %p520 = scmp.lt.s32.totalorder %s519, 3
        %s521 = scalar_select %p520, %s519, 3
        %s522 = scalar_lea.vmem %s5, %s521
        %s523 = smul.u32 2, %s22
      $region40: #{encoder_decoder_forward.3} parent=19 // pred_fallthru
        _
      // Predicated region
      $region41: #{encoder_decoder_forward.3} parent=19 // pred_check
        %p524 = pneg %p193
      $region42: #{encoder_decoder_forward.3} parent=19 // pred_check_branch
        %526 = sbr.rel (%p524) target = $region44
      $region43: #{encoder_decoder_forward.3} parent=19 // pred_region
        %s527 = smul.u32 2, %s22
        %p528 = scmp.lt.s32.totalorder %s527, 3
        %s529 = scalar_select %p528, %s527, 3
        %s530 = smul.addr %s529, 4
        %s531 = smul.addr %s530, 4
        %s532 = scalar_lea.vmem %s6, %s531
        %s533 = smul.u32 2, %s22
      $region44: #{encoder_decoder_forward.3} parent=19 // pred_fallthru
        _
      // Predicated region
      $region45: #{encoder_decoder_forward.3} parent=19 // pred_check
        %p534 = pneg %p219
      $region46: #{encoder_decoder_forward.3} parent=19 // pred_check_branch
        %536 = sbr.rel (%p534) target = $region48
      $region47: #{encoder_decoder_forward.3} parent=19 // pred_region
        %s537 = smul.u32 2, %s22
        %p538 = scmp.lt.s32.totalorder %s537, 3
        %s539 = scalar_select %p538, %s537, 3
        %s540 = scalar_lea.vmem %s7, %s539
        %s541 = smul.u32 2, %s22
      $region48: #{encoder_decoder_forward.3} parent=19 // pred_fallthru
        _
      // Predicated region
      $region49: #{encoder_decoder_forward.3} parent=19 // pred_check
        %p542 = pneg %p245
      $region50: #{encoder_decoder_forward.3} parent=19 // pred_check_branch
        %544 = sbr.rel (%p542) target = $region52
      $region51: #{encoder_decoder_forward.3} parent=19 // pred_region
        %s545 = smul.u32 2, %s22
        %p546 = scmp.lt.s32.totalorder %s545, 3
        %s547 = scalar_select %p546, %s545, 3
        %s548 = scalar_lea.vmem %s8, %s547
        %s549 = smul.u32 2, %s22
      $region52: #{encoder_decoder_forward.3} parent=19 // pred_fallthru
        _
      // Predicated region
      $region53: #{encoder_decoder_forward.3} parent=19 // pred_check
        %p550 = pneg %p271
      $region54: #{encoder_decoder_forward.3} parent=19 // pred_check_branch
        %552 = sbr.rel (%p550) target = $region56
      $region55: #{encoder_decoder_forward.3} parent=19 // pred_region
        %s553 = smul.u32 2, %s22
        %p554 = scmp.lt.s32.totalorder %s553, 3
        %s555 = scalar_select %p554, %s553, 3
        %s556 = scalar_lea.vmem %s9, %s555
        %s557 = smul.u32 2, %s22
      $region56: #{encoder_decoder_forward.3} parent=19 // pred_fallthru
        _
      // Predicated region
      $region57: #{encoder_decoder_forward.3} parent=19 // pred_check
        %p558 = pneg %p297
      $region58: #{encoder_decoder_forward.3} parent=19 // pred_check_branch
        %560 = sbr.rel (%p558) target = $region60
      $region59: #{encoder_decoder_forward.3} parent=19 // pred_region
        %s561 = smul.u32 2, %s22
        %p562 = scmp.lt.s32.totalorder %s561, 3
        %s563 = scalar_select %p562, %s561, 3
        %s564 = smul.addr %s563, 8
        %s565 = smul.addr %s564, 4
        %s566 = scalar_lea.vmem %s10, %s565
        %s567 = smul.u32 2, %s22
      $region60: #{encoder_decoder_forward.3} parent=19 // pred_fallthru
        _
      // Predicated region
      $region61: #{encoder_decoder_forward.3} parent=19 // pred_check
        %p568 = pneg %p323
      $region62: #{encoder_decoder_forward.3} parent=19 // pred_check_branch
        %570 = sbr.rel (%p568) target = $region64
      $region63: #{encoder_decoder_forward.3} parent=19 // pred_region
        %s571 = smul.u32 2, %s22
        %p572 = scmp.lt.s32.totalorder %s571, 3
        %s573 = scalar_select %p572, %s571, 3
        %s574 = smul.addr %s573, 2
        %s575 = scalar_lea.vmem %s11, %s574
        %s576 = smul.u32 2, %s22
      $region64: #{encoder_decoder_forward.3} parent=19 // pred_fallthru
        _
      // Predicated region
      $region65: #{encoder_decoder_forward.3} parent=19 // pred_check
        %p577 = pneg %p349
      $region66: #{encoder_decoder_forward.3} parent=19 // pred_check_branch
        %579 = sbr.rel (%p577) target = $region68
      $region67: #{encoder_decoder_forward.3} parent=19 // pred_region
        %s580 = smul.u32 2, %s22
        %p581 = scmp.lt.s32.totalorder %s580, 3
        %s582 = scalar_select %p581, %s580, 3
        %s583 = smul.addr %s582, 2
        %s584 = scalar_lea.vmem %s12, %s583
        %s585 = smul.u32 2, %s22
      $region68: #{encoder_decoder_forward.3} parent=19 // pred_fallthru
        _
      // Predicated region
      $region69: #{encoder_decoder_forward.3} parent=19 // pred_check
        %p586 = pneg %p375
      $region70: #{encoder_decoder_forward.3} parent=19 // pred_check_branch
        %588 = sbr.rel (%p586) target = $region72
      $region71: #{encoder_decoder_forward.3} parent=19 // pred_region
        %s589 = smul.u32 2, %s22
        %p590 = scmp.lt.s32.totalorder %s589, 3
        %s591 = scalar_select %p590, %s589, 3
        %s592 = smul.addr %s591, 2
        %s593 = scalar_lea.vmem %s13, %s592
        %s594 = smul.u32 2, %s22
      $region72: #{encoder_decoder_forward.3} parent=19 // pred_fallthru
        _
      // Predicated region
      $region73: #{encoder_decoder_forward.3} parent=19 // pred_check
        %p595 = pneg %p401
      $region74: #{encoder_decoder_forward.3} parent=19 // pred_check_branch
        %597 = sbr.rel (%p595) target = $region76
      $region75: #{encoder_decoder_forward.3} parent=19 // pred_region
        %s598 = smul.u32 2, %s22
        %p599 = scmp.lt.s32.totalorder %s598, 3
        %s600 = scalar_select %p599, %s598, 3
        %s601 = smul.addr %s600, 4
        %s602 = scalar_lea.vmem %s14, %s601
        %s603 = smul.u32 2, %s22
      $region76: #{encoder_decoder_forward.3} parent=19 // pred_fallthru
        _
      // Predicated region
      $region77: #{encoder_decoder_forward.3} parent=19 // pred_check
        %p604 = pneg %p427
      $region78: #{encoder_decoder_forward.3} parent=19 // pred_check_branch
        %606 = sbr.rel (%p604) target = $region80
      $region79: #{encoder_decoder_forward.3} parent=19 // pred_region
        %s607 = smul.u32 2, %s22
        %p608 = scmp.lt.s32.totalorder %s607, 3
        %s609 = scalar_select %p608, %s607, 3
        %s610 = smul.addr %s609, 8
        %s611 = scalar_lea.vmem %s15, %s610
        %s612 = smul.u32 2, %s22
      $region80: #{encoder_decoder_forward.3} parent=19 // pred_fallthru
        _
    $region20: #{encoder_decoder_forward.3} parent=5 // pred_fallthru
      _
    %p613 = scmp.le.s32.totalorder 1, %s22
    %p614 = scmp.lt.s32.totalorder %s22, 3
    %p615 = pnand %p613, %p614
    %p616 = pneg %p615
    // Predicated region
    $region81: #{encoder_decoder_forward.3} parent=5 // pred_check
      _
    $region82: #{encoder_decoder_forward.3} parent=5 // pred_check_branch
      %618 = sbr.rel (%p615) target = $region84
    $region83: #{encoder_decoder_forward.3} parent=5 // pred_region
      %s619 = ssub.s32 %s22, 1
      %s620 = smul.u32 2, %s27
      %p621 = scmp.lt.s32.totalorder %s620, 3
      %s622 = scalar_select %p621, %s620, 3
      %s623 = smul.addr %s622, 2
      %s624 = smul.addr %s623, 8
      %s625 = scalar_lea.vmem %s0, %s624
      %p626 = pneg %p48
      %p627 = pneg %p45
      %p628 = pneg %p69
      %p629 = pneg %p66
      %s630 = smul.u32 2, %s27
      %p631 = scmp.lt.s32.totalorder %s630, 3
      %s632 = scalar_select %p631, %s630, 3
      %s633 = smul.addr %s632, 4
      %s634 = scalar_lea.vmem %s2, %s633
      %p635 = pneg %p95
      %p636 = pneg %p92
      %s637 = smul.u32 2, %s27
      %p638 = scmp.lt.s32.totalorder %s637, 3
      %s639 = scalar_select %p638, %s637, 3
      %s640 = scalar_lea.vmem %s3, %s639
      %p641 = pneg %p121
      %p642 = pneg %p118
      %s643 = smul.u32 2, %s27
      %p644 = scmp.lt.s32.totalorder %s643, 3
      %s645 = scalar_select %p644, %s643, 3
      %s646 = scalar_lea.vmem %s4, %s645
      %p647 = pneg %p147
      %p648 = pneg %p144
      %s649 = smul.u32 2, %s27
      %p650 = scmp.lt.s32.totalorder %s649, 3
      %s651 = scalar_select %p650, %s649, 3
      %s652 = scalar_lea.vmem %s5, %s651
      %p653 = pneg %p173
      %p654 = pneg %p170
      %s655 = smul.u32 2, %s27
      %p656 = scmp.lt.s32.totalorder %s655, 3
      %s657 = scalar_select %p656, %s655, 3
      %s658 = smul.addr %s657, 4
      %s659 = smul.addr %s658, 4
      %s660 = scalar_lea.vmem %s6, %s659
      %p661 = pneg %p199
      %p662 = pneg %p196
      %s663 = smul.u32 2, %s27
      %p664 = scmp.lt.s32.totalorder %s663, 3
      %s665 = scalar_select %p664, %s663, 3
      %s666 = scalar_lea.vmem %s7, %s665
      %p667 = pneg %p225
      %p668 = pneg %p222
      %s669 = smul.u32 2, %s27
      %p670 = scmp.lt.s32.totalorder %s669, 3
      %s671 = scalar_select %p670, %s669, 3
      %s672 = scalar_lea.vmem %s8, %s671
      %p673 = pneg %p251
      %p674 = pneg %p248
      %s675 = smul.u32 2, %s27
      %p676 = scmp.lt.s32.totalorder %s675, 3
      %s677 = scalar_select %p676, %s675, 3
      %s678 = scalar_lea.vmem %s9, %s677
      %p679 = pneg %p277
      %p680 = pneg %p274
      %s681 = smul.u32 2, %s27
      %p682 = scmp.lt.s32.totalorder %s681, 3
      %s683 = scalar_select %p682, %s681, 3
      %s684 = smul.addr %s683, 8
      %s685 = smul.addr %s684, 4
      %s686 = scalar_lea.vmem %s10, %s685
      %p687 = pneg %p303
      %p688 = pneg %p300
      %s689 = smul.u32 2, %s27
      %p690 = scmp.lt.s32.totalorder %s689, 3
      %s691 = scalar_select %p690, %s689, 3
      %s692 = smul.addr %s691, 2
      %s693 = scalar_lea.vmem %s11, %s692
      %p694 = pneg %p329
      %p695 = pneg %p326
      %s696 = smul.u32 2, %s27
      %p697 = scmp.lt.s32.totalorder %s696, 3
      %s698 = scalar_select %p697, %s696, 3
      %s699 = smul.addr %s698, 2
      %s700 = scalar_lea.vmem %s12, %s699
      %p701 = pneg %p355
      %p702 = pneg %p352
      %s703 = smul.u32 2, %s27
      %p704 = scmp.lt.s32.totalorder %s703, 3
      %s705 = scalar_select %p704, %s703, 3
      %s706 = smul.addr %s705, 2
      %s707 = scalar_lea.vmem %s13, %s706
      %p708 = pneg %p381
      %p709 = pneg %p378
      %s710 = smul.u32 2, %s27
      %p711 = scmp.lt.s32.totalorder %s710, 3
      %s712 = scalar_select %p711, %s710, 3
      %s713 = smul.addr %s712, 4
      %s714 = scalar_lea.vmem %s14, %s713
      %p715 = pneg %p407
      %p716 = pneg %p404
      %s717 = smul.u32 2, %s27
      %p718 = scmp.lt.s32.totalorder %s717, 3
      %s719 = scalar_select %p718, %s717, 3
      %s720 = smul.addr %s719, 8
      %s721 = scalar_lea.vmem %s15, %s720
      %p722 = pneg %p433
      %p723 = pneg %p430
      %p724 = pneg %p459
      %p725 = pneg %p456
      %s726 = smul.u32 2, %s27
      %p727 = scmp.lt.s32.totalorder %s726, 3
      %s728 = scalar_select %p727, %s726, 3
      %s729 = smul.addr %s728, 8
      %s730 = scalar_lea.vmem %s16, %s729
      %s731 = smul.u32 2, %s27
      %p732 = scmp.lt.s32.totalorder %s731, 3
      %s733 = scalar_select %p732, %s731, 3
      %s734 = smul.addr %s733, 2
      %s735 = smul.addr %s734, 8
      %s736 = scalar_lea.vmem %s0, %s735
      %s737 = smul.u32 2, %s27
      %s738 = smul.u32 2, %s27
      %p739 = scmp.lt.s32.totalorder %s738, 3
      %s740 = scalar_select %p739, %s738, 3
      %s741 = smul.addr %s740, 4
      %s742 = scalar_lea.vmem %s2, %s741
      %s743 = smul.u32 2, %s27
      %s744 = smul.u32 2, %s27
      %p745 = scmp.lt.s32.totalorder %s744, 3
      %s746 = scalar_select %p745, %s744, 3
      %s747 = scalar_lea.vmem %s3, %s746
      %s748 = smul.u32 2, %s27
      %s749 = smul.u32 2, %s27
      %p750 = scmp.lt.s32.totalorder %s749, 3
      %s751 = scalar_select %p750, %s749, 3
      %s752 = scalar_lea.vmem %s4, %s751
      %s753 = smul.u32 2, %s27
      %s754 = smul.u32 2, %s27
      %p755 = scmp.lt.s32.totalorder %s754, 3
      %s756 = scalar_select %p755, %s754, 3
      %s757 = scalar_lea.vmem %s5, %s756
      %s758 = smul.u32 2, %s27
      %s759 = smul.u32 2, %s27
      %p760 = scmp.lt.s32.totalorder %s759, 3
      %s761 = scalar_select %p760, %s759, 3
      %s762 = smul.addr %s761, 4
      %s763 = smul.addr %s762, 4
      %s764 = scalar_lea.vmem %s6, %s763
      %s765 = smul.u32 2, %s27
      %s766 = smul.u32 2, %s27
      %p767 = scmp.lt.s32.totalorder %s766, 3
      %s768 = scalar_select %p767, %s766, 3
      %s769 = scalar_lea.vmem %s7, %s768
      %s770 = smul.u32 2, %s27
      %s771 = smul.u32 2, %s27
      %p772 = scmp.lt.s32.totalorder %s771, 3
      %s773 = scalar_select %p772, %s771, 3
      %s774 = scalar_lea.vmem %s8, %s773
      %s775 = smul.u32 2, %s27
      %s776 = smul.u32 2, %s27
      %p777 = scmp.lt.s32.totalorder %s776, 3
      %s778 = scalar_select %p777, %s776, 3
      %s779 = scalar_lea.vmem %s9, %s778
      %s780 = smul.u32 2, %s27
      %s781 = smul.u32 2, %s27
      %p782 = scmp.lt.s32.totalorder %s781, 3
      %s783 = scalar_select %p782, %s781, 3
      %s784 = smul.addr %s783, 8
      %s785 = smul.addr %s784, 4
      %s786 = scalar_lea.vmem %s10, %s785
      %s787 = smul.u32 2, %s27
      %s788 = smul.u32 2, %s27
      %p789 = scmp.lt.s32.totalorder %s788, 3
      %s790 = scalar_select %p789, %s788, 3
      %s791 = smul.addr %s790, 2
      %s792 = scalar_lea.vmem %s11, %s791
      %s793 = smul.u32 2, %s27
      %s794 = smul.u32 2, %s27
      %p795 = scmp.lt.s32.totalorder %s794, 3
      %s796 = scalar_select %p795, %s794, 3
      %s797 = smul.addr %s796, 2
      %s798 = scalar_lea.vmem %s12, %s797
      %s799 = smul.u32 2, %s27
      %s800 = smul.u32 2, %s27
      %p801 = scmp.lt.s32.totalorder %s800, 3
      %s802 = scalar_select %p801, %s800, 3
      %s803 = smul.addr %s802, 2
      %s804 = scalar_lea.vmem %s13, %s803
      %s805 = smul.u32 2, %s27
      %s806 = smul.u32 2, %s27
      %p807 = scmp.lt.s32.totalorder %s806, 3
      %s808 = scalar_select %p807, %s806, 3
      %s809 = smul.addr %s808, 4
      %s810 = scalar_lea.vmem %s14, %s809
      %s811 = smul.u32 2, %s27
      %s812 = smul.u32 2, %s27
      %p813 = scmp.lt.s32.totalorder %s812, 3
      %s814 = scalar_select %p813, %s812, 3
      %s815 = smul.addr %s814, 8
      %s816 = scalar_lea.vmem %s15, %s815
      %s817 = smul.u32 2, %s27
      %s818 = smul.u32 2, %s27
      %p819 = scmp.lt.s32.totalorder %s818, 3
      %s820 = scalar_select %p819, %s818, 3
      %s821 = smul.addr %s820, 8
      %s822 = scalar_lea.vmem %s16, %s821
      %s823 = smul.u32 2, %s27
      %v825 = vld [vmem:[%s1] sm:$0x3]
      %v826 = vld [vmem:[%s736] sm:$0xff]
      %v827 = vld [vmem:[%s736 + $0x8] sm:$0xff]
      %v828 = vld [vmem:[%s742] sm:$0xf]
      %v829 = vld [vmem:[%s747] sm:$0x1]
      %v830 = vpack.c.bf16 %v827, %v826
      %v832 = vlaneseq
      %v833 = vshrl.u32 %v832, 7
      %v834 = vsub.s32 0, %v833
      %v835 = vrot.slane %v829, %v834
      %vm837 = vcmask 64512
      %v839 = vsel %vm837, %v830, 0
      %vm841 = vcmask 1043456
      %v843 = vsel %vm841, %v828, 0
      %845 = vmatprep.subr.bf16.mxu0 0
      %846 = vmatpush1.bf16.msra.mxu0 %v843
      %847 = vmatprep.subr.bf16.mxu0 0
      %848 = vmatpush1.bf16.msra.mxu0 0
      %849 = vmatprep.subr.bf16.mxu0 0
      %850 = vmatpush1.bf16.msra.mxu0 0
      %851 = vmatprep.subr.bf16.mxu0 0
      %852 = vmatpush1.bf16.msra.mxu0 0
      %853 = vmatprep.subr.bf16.mxu0 0
      %854 = vmatpush1.bf16.msra.mxu0 0
      %855 = vmatprep.subr.bf16.mxu0 0
      %856 = vmatpush1.bf16.msra.mxu0 0
      %857 = vmatprep.subr.bf16.mxu0 0
      %858 = vmatpush1.bf16.msra.mxu0 0
      %859 = vmatprep.subr.bf16.mxu0 0
      %860 = vmatpush1.bf16.msra.mxu0 0
      %861 = vmatprep.subr.bf16.mxu0 0
      %862 = vmatpush1.bf16.msra.mxu0 0
      %863 = vmatprep.subr.bf16.mxu0 0
      %864 = vmatpush1.bf16.msra.mxu0 0
      %865 = vmatprep.subr.bf16.mxu0 0
      %866 = vmatpush1.bf16.msra.mxu0 0
      %867 = vmatprep.subr.bf16.mxu0 0
      %868 = vmatpush1.bf16.msra.mxu0 0
      %869 = vmatprep.subr.bf16.mxu0 0
      %870 = vmatpush1.bf16.msra.mxu0 0
      %871 = vmatprep.subr.bf16.mxu0 0
      %872 = vmatpush1.bf16.msra.mxu0 0
      %873 = vmatprep.subr.bf16.mxu0 0
      %874 = vmatpush1.bf16.msra.mxu0 0
      %875 = vmatprep.subr.bf16.mxu0 0
      %876 = vmatpush1.bf16.msra.mxu0 0
      %877 = vmatprep.mubr.bf16.mxu0 0
      %878 = vmatmul.mubr.bf16.gmra.mrb[0].mxu0 %v839
      %v879 = vpop.f32.mrb[0].mxu0
      %v880 = vadd.f32 %v835, %v879
      %v881 = vpop.f32.mrb[0].mxu0
      %v882 = vpop.f32.mrb[0].mxu0
      %v883 = vadd.f32 %v835, %v882
      %v884 = vpop.f32.mrb[0].mxu0
      %885 = vdwg.mxu0
      %v888 = vunpack.c.l.s4 1966171168
      %v889 = vunpack.c.0.s8 %v888
      %v890 = vlaneseq
      %v891 = vshrl.u32 %v890, 7
      %v892 = vsub.s32 %v889, %v891
      %v893 = vrot.slane %v825, %v892
      %v894 = vcombine.high %v893, %v893
      %v896 = vunpack.c.l.s4 1966171168
      %v897 = vunpack.c.0.s8 %v896
      %v898 = vlaneseq
      %v899 = vshrl.u32 %v898, 7
      %v900 = vsub.s32 %v897, %v899
      %v901 = vrot.slane %v893, %v900
      %v903 = vunpack.c.l.s4 1966171168
      %v904 = vunpack.c.0.s8 %v903
      %v905 = vlaneseq
      %v906 = vshrl.u32 %v905, 7
      %v907 = vsub.s32 %v904, %v906
      %v908 = vrot.slane %v894, %v907
      %v909 = vlaneseq
      %v910 = vshrl.u32 %v909, 7
      %v911 = vsub.s32 0, %v910
      %v912 = vrot.slane %v901, %v911
      %v913 = vlaneseq
      %v914 = vshrl.u32 %v913, 7
      %v915 = vsub.s32 0, %v914
      %v916 = vrot.slane %v908, %v915
      %v919 = vadd.f32 %v880, %v912
      %v920 = vadd.f32 %v883, %v912
      %v921 = vadd.f32 %v880, %v916
      %v922 = vadd.f32 %v883, %v916
      %v923 = vld [vmem:[%s752] sm:$0x1]
      %v924 = vld [vmem:[%s757] sm:$0x1]
      %vm925 = vcmask 261120
      %v926 = vsel %vm925, %v919, 0.0
      %v927 = vsel %vm925, %v920, 0.0
      %v928 = vadd.f32 %v926, %v927
      %v929 = vsel %vm925, %v921, 0.0
      %v930 = vadd.f32 %v928, %v929
      %v931 = vsel %vm925, %v922, 0.0
      %v932 = vadd.f32 %v930, %v931
      %v933 = vrot.slane %v932, 4
      %v934 = vadd.f32 %v932, %v933
      %v935 = vrot.slane %v934, 2
      %v936 = vadd.f32 %v934, %v935
      %v937 = vrot.slane %v936, 1
      %v938 = vadd.f32 %v936, %v937
      %v939 = vmul.f32 %v938, 0.03125
      %v940 = vsub.f32 %v919, %v939
      %v941 = vsub.f32 %v920, %v939
      %v942 = vsub.f32 %v921, %v939
      %v943 = vsub.f32 %v922, %v939
      %v944 = vmul.f32 %v940, %v940
      %v945 = vmul.f32 %v941, %v941
      %v946 = vmul.f32 %v942, %v942
      %v947 = vmul.f32 %v943, %v943
      %v948 = vsel %vm925, %v944, 0.0
      %v949 = vsel %vm925, %v945, 0.0
      %v950 = vadd.f32 %v948, %v949
      %v951 = vsel %vm925, %v946, 0.0
      %v952 = vadd.f32 %v950, %v951
      %v953 = vsel %vm925, %v947, 0.0
      %v954 = vadd.f32 %v952, %v953
      %v955 = vrot.slane %v954, 4
      %v956 = vadd.f32 %v954, %v955
      %v957 = vrot.slane %v956, 2
      %v958 = vadd.f32 %v956, %v957
      %v959 = vrot.slane %v958, 1
      %v960 = vadd.f32 %v958, %v959
      %v961 = vmul.f32 %v960, 0.03125
      %v962 = vadd.f32 %v961, 1e-05
      %v963 = vrsqrt.pop %v962
      %v964 = vmul.f32 %v940, %v963
      %v965 = vmul.f32 %v941, %v963
      %v966 = vmul.f32 %v942, %v963
      %v967 = vmul.f32 %v943, %v963
      %v969 = vlaneseq
      %v970 = vshrl.u32 %v969, 7
      %v971 = vsub.s32 0, %v970
      %v972 = vrot.slane %v923, %v971
      %v974 = vmul.f32 %v964, %v972
      %v975 = vmul.f32 %v965, %v972
      %v976 = vmul.f32 %v966, %v972
      %v977 = vmul.f32 %v967, %v972
      %v979 = vlaneseq
      %v980 = vshrl.u32 %v979, 7
      %v981 = vsub.s32 0, %v980
      %v982 = vrot.slane %v924, %v981
      %v984 = vadd.f32 %v974, %v982
      %v985 = vadd.f32 %v975, %v982
      %v986 = vadd.f32 %v976, %v982
      %v987 = vadd.f32 %v977, %v982
      %v988 = vmax.f32 %v984, 0.0
      %v989 = vmax.f32 %v985, 0.0
      %v990 = vmax.f32 %v986, 0.0
      %v991 = vmax.f32 %v987, 0.0
      %v992 = vpack.c.bf16 %v989, %v988
      %v993 = vpack.c.bf16 %v991, %v990
      %v994 = vld [vmem:[%s764] sm:$0xf]
      %v995 = vld [vmem:[%s764 + $0x4] sm:$0xf]
      %v996 = vld [vmem:[%s764 + $0x8] sm:$0xf]
      %v997 = vld [vmem:[%s764 + $0xc] sm:$0xf]
      %v998 = vld [vmem:[%s769] sm:$0x1]
      %v1000 = vlaneseq
      %v1001 = vshrl.u32 %v1000, 7
      %v1002 = vsub.s32 0, %v1001
      %v1003 = vrot.slane %v998, %v1002
      %v1009 = vunpack.c.l.b16 %v994
      %v1010 = vunpack.c.l.b16 %v995
      %v1011 = vunpack.c.l.b16 %v996
      %v1012 = vunpack.c.l.b16 %v997
      %v1013 = vpack.c.b16 %v1010, %v1009
      %v1014 = vpack.c.b16 %v1012, %v1011
      %v1018 = vsel %vm925, %v992, 0
      %v1021 = vsel %vm925, %v993, 0
      %1023 = vmatprep.subr.bf16.mxu0 0
      %1024 = vmatpush1.bf16.msra.mxu0 %v1013
      %1025 = vmatprep.subr.bf16.mxu0 0
      %1026 = vmatpush1.bf16.msra.mxu0 %v1014
      %1027 = vmatprep.subr.bf16.mxu0 0
      %1028 = vmatpush1.bf16.msra.mxu0 0
      %1029 = vmatprep.subr.bf16.mxu0 0
      %1030 = vmatpush1.bf16.msra.mxu0 0
      %1031 = vmatprep.subr.bf16.mxu0 0
      %1032 = vmatpush1.bf16.msra.mxu0 0
      %1033 = vmatprep.subr.bf16.mxu0 0
      %1034 = vmatpush1.bf16.msra.mxu0 0
      %1035 = vmatprep.subr.bf16.mxu0 0
      %1036 = vmatpush1.bf16.msra.mxu0 0
      %1037 = vmatprep.subr.bf16.mxu0 0
      %1038 = vmatpush1.bf16.msra.mxu0 0
      %1039 = vmatprep.subr.bf16.mxu0 0
      %1040 = vmatpush1.bf16.msra.mxu0 0
      %1041 = vmatprep.subr.bf16.mxu0 0
      %1042 = vmatpush1.bf16.msra.mxu0 0
      %1043 = vmatprep.subr.bf16.mxu0 0
      %1044 = vmatpush1.bf16.msra.mxu0 0
      %1045 = vmatprep.subr.bf16.mxu0 0
      %1046 = vmatpush1.bf16.msra.mxu0 0
      %1047 = vmatprep.subr.bf16.mxu0 0
      %1048 = vmatpush1.bf16.msra.mxu0 0
      %1049 = vmatprep.subr.bf16.mxu0 0
      %1050 = vmatpush1.bf16.msra.mxu0 0
      %1051 = vmatprep.subr.bf16.mxu0 0
      %1052 = vmatpush1.bf16.msra.mxu0 0
      %1053 = vmatprep.subr.bf16.mxu0 0
      %1054 = vmatpush1.bf16.msra.mxu0 0
      %1055 = vmatprep.mubr.bf16.mxu0 0
      %1056 = vmatmul.mubr.bf16.gmra.mrb[0].mxu0 %v1018
      %v1057 = vpop.f32.mrb[0].mxu0
      %v1058 = vadd.f32 %v1003, %v1057
      %v1059 = vpop.f32.mrb[0].mxu0
      %v1060 = vpop.f32.mrb[0].mxu0
      %v1061 = vadd.f32 %v1003, %v1060
      %v1062 = vpop.f32.mrb[0].mxu0
      %1063 = vmatprep.mubr.bf16.mxu0 0
      %1064 = vmatmul.mubr.bf16.gmra.mrb[0].mxu0 %v1021
      %v1065 = vpop.f32.mrb[0].mxu0
      %v1066 = vadd.f32 %v1003, %v1065
      %v1067 = vpop.f32.mrb[0].mxu0
      %v1068 = vpop.f32.mrb[0].mxu0
      %v1069 = vadd.f32 %v1003, %v1068
      %v1070 = vpop.f32.mrb[0].mxu0
      %1071 = vdwg.mxu0
      %v1072 = vld [vmem:[%s774] sm:$0x1]
      %v1073 = vld [vmem:[%s779] sm:$0x1]
      %v1074 = vsel %vm925, %v1058, 0.0
      %v1075 = vsel %vm925, %v1061, 0.0
      %v1076 = vadd.f32 %v1074, %v1075
      %v1077 = vsel %vm925, %v1066, 0.0
      %v1078 = vadd.f32 %v1076, %v1077
      %v1079 = vsel %vm925, %v1069, 0.0
      %v1080 = vadd.f32 %v1078, %v1079
      %v1081 = vrot.slane %v1080, 4
      %v1082 = vadd.f32 %v1080, %v1081
      %v1083 = vrot.slane %v1082, 2
      %v1084 = vadd.f32 %v1082, %v1083
      %v1085 = vrot.slane %v1084, 1
      %v1086 = vadd.f32 %v1084, %v1085
      %v1087 = vmul.f32 %v1086, 0.03125
      %v1088 = vsub.f32 %v1058, %v1087
      %v1089 = vsub.f32 %v1061, %v1087
      %v1090 = vsub.f32 %v1066, %v1087
      %v1091 = vsub.f32 %v1069, %v1087
      %v1092 = vmul.f32 %v1088, %v1088
      %v1093 = vmul.f32 %v1089, %v1089
      %v1094 = vmul.f32 %v1090, %v1090
      %v1095 = vmul.f32 %v1091, %v1091
      %v1096 = vsel %vm925, %v1092, 0.0
      %v1097 = vsel %vm925, %v1093, 0.0
      %v1098 = vadd.f32 %v1096, %v1097
      %v1099 = vsel %vm925, %v1094, 0.0
      %v1100 = vadd.f32 %v1098, %v1099
      %v1101 = vsel %vm925, %v1095, 0.0
      %v1102 = vadd.f32 %v1100, %v1101
      %v1103 = vrot.slane %v1102, 4
      %v1104 = vadd.f32 %v1102, %v1103
      %v1105 = vrot.slane %v1104, 2
      %v1106 = vadd.f32 %v1104, %v1105
      %v1107 = vrot.slane %v1106, 1
      %v1108 = vadd.f32 %v1106, %v1107
      %v1109 = vmul.f32 %v1108, 0.03125
      %v1110 = vadd.f32 %v1109, 1e-05
      %v1111 = vrsqrt.pop %v1110
      %v1112 = vmul.f32 %v1088, %v1111
      %v1113 = vmul.f32 %v1089, %v1111
      %v1114 = vmul.f32 %v1090, %v1111
      %v1115 = vmul.f32 %v1091, %v1111
      %v1117 = vlaneseq
      %v1118 = vshrl.u32 %v1117, 7
      %v1119 = vsub.s32 0, %v1118
      %v1120 = vrot.slane %v1072, %v1119
      %v1122 = vmul.f32 %v1112, %v1120
      %v1123 = vmul.f32 %v1113, %v1120
      %v1124 = vmul.f32 %v1114, %v1120
      %v1125 = vmul.f32 %v1115, %v1120
      %v1127 = vlaneseq
      %v1128 = vshrl.u32 %v1127, 7
      %v1129 = vsub.s32 0, %v1128
      %v1130 = vrot.slane %v1073, %v1129
      %v1132 = vadd.f32 %v1122, %v1130
      %v1133 = vadd.f32 %v1123, %v1130
      %v1134 = vadd.f32 %v1124, %v1130
      %v1135 = vadd.f32 %v1125, %v1130
      %v1136 = vmax.f32 %v1132, 0.0
      %v1137 = vmax.f32 %v1133, 0.0
      %v1138 = vmax.f32 %v1134, 0.0
      %v1139 = vmax.f32 %v1135, 0.0
      %v1140 = vpack.c.bf16 %v1137, %v1136
      %v1141 = vpack.c.bf16 %v1139, %v1138
      %v1142 = vld [vmem:[%s786] sm:$0xf]
      %v1143 = vld [vmem:[%s786 + $0x4] sm:$0xf]
      %v1144 = vld [vmem:[%s786 + $0x8] sm:$0xf]
      %v1145 = vld [vmem:[%s786 + $0xc] sm:$0xf]
      %v1146 = vld [vmem:[%s792] sm:$0x1]
      %v1148 = vlaneseq
      %v1149 = vshrl.u32 %v1148, 7
      %v1150 = vsub.s32 0, %v1149
      %v1151 = vrot.slane %v1146, %v1150
      %v1157 = vunpack.c.l.b16 %v1142
      %v1158 = vunpack.c.l.b16 %v1143
      %v1159 = vunpack.c.l.b16 %v1144
      %v1160 = vunpack.c.l.b16 %v1145
      %v1161 = vpack.c.b16 %v1158, %v1157
      %v1162 = vpack.c.b16 %v1160, %v1159
      %v1166 = vsel %vm925, %v1140, 0
      %v1169 = vsel %vm925, %v1141, 0
      %1171 = vmatprep.subr.bf16.mxu0 0
      %1172 = vmatpush1.bf16.msra.mxu0 %v1161
      %1173 = vmatprep.subr.bf16.mxu0 0
      %1174 = vmatpush1.bf16.msra.mxu0 %v1162
      %1175 = vmatprep.subr.bf16.mxu0 0
      %1176 = vmatpush1.bf16.msra.mxu0 0
      %1177 = vmatprep.subr.bf16.mxu0 0
      %1178 = vmatpush1.bf16.msra.mxu0 0
      %1179 = vmatprep.subr.bf16.mxu0 0
      %1180 = vmatpush1.bf16.msra.mxu0 0
      %1181 = vmatprep.subr.bf16.mxu0 0
      %1182 = vmatpush1.bf16.msra.mxu0 0
      %1183 = vmatprep.subr.bf16.mxu0 0
      %1184 = vmatpush1.bf16.msra.mxu0 0
      %1185 = vmatprep.subr.bf16.mxu0 0
      %1186 = vmatpush1.bf16.msra.mxu0 0
      %1187 = vmatprep.subr.bf16.mxu0 0
      %1188 = vmatpush1.bf16.msra.mxu0 0
      %1189 = vmatprep.subr.bf16.mxu0 0
      %1190 = vmatpush1.bf16.msra.mxu0 0
      %1191 = vmatprep.subr.bf16.mxu0 0
      %1192 = vmatpush1.bf16.msra.mxu0 0
      %1193 = vmatprep.subr.bf16.mxu0 0
      %1194 = vmatpush1.bf16.msra.mxu0 0
      %1195 = vmatprep.subr.bf16.mxu0 0
      %1196 = vmatpush1.bf16.msra.mxu0 0
      %1197 = vmatprep.subr.bf16.mxu0 0
      %1198 = vmatpush1.bf16.msra.mxu0 0
      %1199 = vmatprep.subr.bf16.mxu0 0
      %1200 = vmatpush1.bf16.msra.mxu0 0
      %1201 = vmatprep.subr.bf16.mxu0 0
      %1202 = vmatpush1.bf16.msra.mxu0 0
      %1203 = vmatprep.mubr.bf16.mxu0 0
      %1204 = vmatmul.mubr.bf16.gmra.mrb[0].mxu0 %v1166
      %v1205 = vpop.f32.mrb[0].mxu0
      %v1206 = vadd.f32 %v1151, %v1205
      %v1207 = vpop.f32.mrb[0].mxu0
      %v1208 = vpop.f32.mrb[0].mxu0
      %v1209 = vadd.f32 %v1151, %v1208
      %v1210 = vpop.f32.mrb[0].mxu0
      %1211 = vmatprep.mubr.bf16.mxu0 0
      %1212 = vmatmul.mubr.bf16.gmra.mrb[0].mxu0 %v1169
      %v1213 = vpop.f32.mrb[0].mxu0
      %v1214 = vadd.f32 %v1151, %v1213
      %v1215 = vpop.f32.mrb[0].mxu0
      %v1216 = vpop.f32.mrb[0].mxu0
      %v1217 = vadd.f32 %v1151, %v1216
      %v1218 = vpop.f32.mrb[0].mxu0
      %1219 = vdwg.mxu0
      %v1220 = vld [vmem:[%s798] sm:$0x1]
      %v1221 = vld [vmem:[%s804] sm:$0x1]
      %v1222 = vsel %vm925, %v1206, 0.0
      %v1223 = vsel %vm925, %v1209, 0.0
      %v1224 = vadd.f32 %v1222, %v1223
      %v1225 = vsel %vm925, %v1214, 0.0
      %v1226 = vadd.f32 %v1224, %v1225
      %v1227 = vsel %vm925, %v1217, 0.0
      %v1228 = vadd.f32 %v1226, %v1227
      %v1229 = vrot.slane %v1228, 4
      %v1230 = vadd.f32 %v1228, %v1229
      %v1231 = vrot.slane %v1230, 2
      %v1232 = vadd.f32 %v1230, %v1231
      %v1233 = vrot.slane %v1232, 1
      %v1234 = vadd.f32 %v1232, %v1233
      %v1235 = vmul.f32 %v1234, 0.03125
      %v1236 = vsub.f32 %v1206, %v1235
      %v1237 = vsub.f32 %v1209, %v1235
      %v1238 = vsub.f32 %v1214, %v1235
      %v1239 = vsub.f32 %v1217, %v1235
      %v1240 = vmul.f32 %v1236, %v1236
      %v1241 = vmul.f32 %v1237, %v1237
      %v1242 = vmul.f32 %v1238, %v1238
      %v1243 = vmul.f32 %v1239, %v1239
      %v1244 = vsel %vm925, %v1240, 0.0
      %v1245 = vsel %vm925, %v1241, 0.0
      %v1246 = vadd.f32 %v1244, %v1245
      %v1247 = vsel %vm925, %v1242, 0.0
      %v1248 = vadd.f32 %v1246, %v1247
      %v1249 = vsel %vm925, %v1243, 0.0
      %v1250 = vadd.f32 %v1248, %v1249
      %v1251 = vrot.slane %v1250, 4
      %v1252 = vadd.f32 %v1250, %v1251
      %v1253 = vrot.slane %v1252, 2
      %v1254 = vadd.f32 %v1252, %v1253
      %v1255 = vrot.slane %v1254, 1
      %v1256 = vadd.f32 %v1254, %v1255
      %v1257 = vmul.f32 %v1256, 0.03125
      %v1258 = vadd.f32 %v1257, 1e-05
      %v1259 = vrsqrt.pop %v1258
      %v1260 = vmul.f32 %v1236, %v1259
      %v1261 = vmul.f32 %v1237, %v1259
      %v1262 = vmul.f32 %v1238, %v1259
      %v1263 = vmul.f32 %v1239, %v1259
      %v1265 = vlaneseq
      %v1266 = vshrl.u32 %v1265, 7
      %v1267 = vsub.s32 0, %v1266
      %v1268 = vrot.slane %v1220, %v1267
      %v1270 = vmul.f32 %v1260, %v1268
      %v1271 = vmul.f32 %v1261, %v1268
      %v1272 = vmul.f32 %v1262, %v1268
      %v1273 = vmul.f32 %v1263, %v1268
      %v1275 = vlaneseq
      %v1276 = vshrl.u32 %v1275, 7
      %v1277 = vsub.s32 0, %v1276
      %v1278 = vrot.slane %v1221, %v1277
      %v1280 = vadd.f32 %v1270, %v1278
      %v1281 = vadd.f32 %v1271, %v1278
      %v1282 = vadd.f32 %v1272, %v1278
      %v1283 = vadd.f32 %v1273, %v1278
      %v1284 = vmax.f32 %v1280, 0.0
      %v1285 = vmax.f32 %v1281, 0.0
      %v1286 = vmax.f32 %v1282, 0.0
      %v1287 = vmax.f32 %v1283, 0.0
      %v1288 = vpack.c.bf16 %v1285, %v1284
      %v1289 = vpack.c.bf16 %v1287, %v1286
      %s1290 = scalar_lea.vmem %s786, 16
      %v1291 = vld [vmem:[%s1290] sm:$0xf]
      %v1292 = vld [vmem:[%s1290 + $0x4] sm:$0xf]
      %v1293 = vld [vmem:[%s1290 + $0x8] sm:$0xf]
      %v1294 = vld [vmem:[%s1290 + $0xc] sm:$0xf]
      %s1295 = scalar_lea.vmem %s792, 1
      %v1296 = vld [vmem:[%s1295] sm:$0x1]
      %v1298 = vlaneseq
      %v1299 = vshrl.u32 %v1298, 7
      %v1300 = vsub.s32 0, %v1299
      %v1301 = vrot.slane %v1296, %v1300
      %v1307 = vunpack.c.l.b16 %v1291
      %v1308 = vunpack.c.l.b16 %v1292
      %v1309 = vunpack.c.l.b16 %v1293
      %v1310 = vunpack.c.l.b16 %v1294
      %v1311 = vpack.c.b16 %v1308, %v1307
      %v1312 = vpack.c.b16 %v1310, %v1309
      %v1316 = vsel %vm925, %v1288, 0
      %v1319 = vsel %vm925, %v1289, 0
      %1321 = vmatprep.subr.bf16.mxu0 0
      %1322 = vmatpush1.bf16.msra.mxu0 %v1311
      %1323 = vmatprep.subr.bf16.mxu0 0
      %1324 = vmatpush1.bf16.msra.mxu0 %v1312
      %1325 = vmatprep.subr.bf16.mxu0 0
      %1326 = vmatpush1.bf16.msra.mxu0 0
      %1327 = vmatprep.subr.bf16.mxu0 0
      %1328 = vmatpush1.bf16.msra.mxu0 0
      %1329 = vmatprep.subr.bf16.mxu0 0
      %1330 = vmatpush1.bf16.msra.mxu0 0
      %1331 = vmatprep.subr.bf16.mxu0 0
      %1332 = vmatpush1.bf16.msra.mxu0 0
      %1333 = vmatprep.subr.bf16.mxu0 0
      %1334 = vmatpush1.bf16.msra.mxu0 0
      %1335 = vmatprep.subr.bf16.mxu0 0
      %1336 = vmatpush1.bf16.msra.mxu0 0
      %1337 = vmatprep.subr.bf16.mxu0 0
      %1338 = vmatpush1.bf16.msra.mxu0 0
      %1339 = vmatprep.subr.bf16.mxu0 0
      %1340 = vmatpush1.bf16.msra.mxu0 0
      %1341 = vmatprep.subr.bf16.mxu0 0
      %1342 = vmatpush1.bf16.msra.mxu0 0
      %1343 = vmatprep.subr.bf16.mxu0 0
      %1344 = vmatpush1.bf16.msra.mxu0 0
      %1345 = vmatprep.subr.bf16.mxu0 0
      %1346 = vmatpush1.bf16.msra.mxu0 0
      %1347 = vmatprep.subr.bf16.mxu0 0
      %1348 = vmatpush1.bf16.msra.mxu0 0
      %1349 = vmatprep.subr.bf16.mxu0 0
      %1350 = vmatpush1.bf16.msra.mxu0 0
      %1351 = vmatprep.subr.bf16.mxu0 0
      %1352 = vmatpush1.bf16.msra.mxu0 0
      %1353 = vmatprep.mubr.bf16.mxu0 0
      %1354 = vmatmul.mubr.bf16.gmra.mrb[0].mxu0 %v1316
      %v1355 = vpop.f32.mrb[0].mxu0
      %v1356 = vadd.f32 %v1301, %v1355
      %v1357 = vpop.f32.mrb[0].mxu0
      %v1358 = vpop.f32.mrb[0].mxu0
      %v1359 = vadd.f32 %v1301, %v1358
      %v1360 = vpop.f32.mrb[0].mxu0
      %1361 = vmatprep.mubr.bf16.mxu0 0
      %1362 = vmatmul.mubr.bf16.gmra.mrb[0].mxu0 %v1319
      %v1363 = vpop.f32.mrb[0].mxu0
      %v1364 = vadd.f32 %v1301, %v1363
      %v1365 = vpop.f32.mrb[0].mxu0
      %v1366 = vpop.f32.mrb[0].mxu0
      %v1367 = vadd.f32 %v1301, %v1366
      %v1368 = vpop.f32.mrb[0].mxu0
      %1369 = vdwg.mxu0
      %s1370 = scalar_lea.vmem %s798, 1
      %v1371 = vld [vmem:[%s1370] sm:$0x1]
      %s1372 = scalar_lea.vmem %s804, 1
      %v1373 = vld [vmem:[%s1372] sm:$0x1]
      %v1374 = vsel %vm925, %v1356, 0.0
      %v1375 = vsel %vm925, %v1359, 0.0
      %v1376 = vadd.f32 %v1374, %v1375
      %v1377 = vsel %vm925, %v1364, 0.0
      %v1378 = vadd.f32 %v1376, %v1377
      %v1379 = vsel %vm925, %v1367, 0.0
      %v1380 = vadd.f32 %v1378, %v1379
      %v1381 = vrot.slane %v1380, 4
      %v1382 = vadd.f32 %v1380, %v1381
      %v1383 = vrot.slane %v1382, 2
      %v1384 = vadd.f32 %v1382, %v1383
      %v1385 = vrot.slane %v1384, 1
      %v1386 = vadd.f32 %v1384, %v1385
      %v1387 = vmul.f32 %v1386, 0.03125
      %v1388 = vsub.f32 %v1356, %v1387
      %v1389 = vsub.f32 %v1359, %v1387
      %v1390 = vsub.f32 %v1364, %v1387
      %v1391 = vsub.f32 %v1367, %v1387
      %v1392 = vmul.f32 %v1388, %v1388
      %v1393 = vmul.f32 %v1389, %v1389
      %v1394 = vmul.f32 %v1390, %v1390
      %v1395 = vmul.f32 %v1391, %v1391
      %v1396 = vsel %vm925, %v1392, 0.0
      %v1397 = vsel %vm925, %v1393, 0.0
      %v1398 = vadd.f32 %v1396, %v1397
      %v1399 = vsel %vm925, %v1394, 0.0
      %v1400 = vadd.f32 %v1398, %v1399
      %v1401 = vsel %vm925, %v1395, 0.0
      %v1402 = vadd.f32 %v1400, %v1401
      %v1403 = vrot.slane %v1402, 4
      %v1404 = vadd.f32 %v1402, %v1403
      %v1405 = vrot.slane %v1404, 2
      %v1406 = vadd.f32 %v1404, %v1405
      %v1407 = vrot.slane %v1406, 1
      %v1408 = vadd.f32 %v1406, %v1407
      %v1409 = vmul.f32 %v1408, 0.03125
      %v1410 = vadd.f32 %v1409, 1e-05
      %v1411 = vrsqrt.pop %v1410
      %v1412 = vmul.f32 %v1388, %v1411
      %v1413 = vmul.f32 %v1389, %v1411
      %v1414 = vmul.f32 %v1390, %v1411
      %v1415 = vmul.f32 %v1391, %v1411
      %v1417 = vlaneseq
      %v1418 = vshrl.u32 %v1417, 7
      %v1419 = vsub.s32 0, %v1418
      %v1420 = vrot.slane %v1371, %v1419
      %v1422 = vmul.f32 %v1412, %v1420
      %v1423 = vmul.f32 %v1413, %v1420
      %v1424 = vmul.f32 %v1414, %v1420
      %v1425 = vmul.f32 %v1415, %v1420
      %v1427 = vlaneseq
      %v1428 = vshrl.u32 %v1427, 7
      %v1429 = vsub.s32 0, %v1428
      %v1430 = vrot.slane %v1373, %v1429
      %v1432 = vadd.f32 %v1422, %v1430
      %v1433 = vadd.f32 %v1423, %v1430
      %v1434 = vadd.f32 %v1424, %v1430
      %v1435 = vadd.f32 %v1425, %v1430
      %v1436 = vmax.f32 %v1432, 0.0
      %v1437 = vmax.f32 %v1433, 0.0
      %v1438 = vmax.f32 %v1434, 0.0
      %v1439 = vmax.f32 %v1435, 0.0
      %v1440 = vpack.c.bf16 %v1437, %v1436
      %v1441 = vpack.c.bf16 %v1439, %v1438
      %v1442 = vld [vmem:[%s810] sm:$0xf]
      %v1443 = vld [vmem:[%s816] sm:$0xff]
      %1445 = vset.pattern.permute.xlu0 0
      %1446 = vperm.xlu0 %1445, %v1443
      %v1447 = vpop.permute.xlu0 %1446
      %v1450 = vsel %vm925, %v1442, 0
      %v1453 = vsel %vm925, %v1440, 0
      %v1456 = vsel %vm925, %v1441, 0
      %1458 = vmatprep.subr.bf16.mxu0 0
      %1459 = vmatpush1.bf16.xpose.msra.mxu0 %v1453
      %1460 = vmatprep.subr.bf16.mxu0 0
      %1461 = vmatpush1.bf16.xpose.msra.mxu0 %v1456
      %1462 = vmatprep.subr.bf16.mxu0 0
      %1463 = vmatpush1.bf16.xpose.msra.mxu0 0
      %1464 = vmatprep.subr.bf16.mxu0 0
      %1465 = vmatpush1.bf16.xpose.msra.mxu0 0
      %1466 = vmatprep.subr.bf16.mxu0 0
      %1467 = vmatpush1.bf16.xpose.msra.mxu0 0
      %1468 = vmatprep.subr.bf16.mxu0 0
      %1469 = vmatpush1.bf16.xpose.msra.mxu0 0
      %1470 = vmatprep.subr.bf16.mxu0 0
      %1471 = vmatpush1.bf16.xpose.msra.mxu0 0
      %1472 = vmatprep.subr.bf16.mxu0 0
      %1473 = vmatpush1.bf16.xpose.msra.mxu0 0
      %1474 = vmatprep.subr.bf16.mxu0 0
      %1475 = vmatpush1.bf16.xpose.msra.mxu0 0
      %1476 = vmatprep.subr.bf16.mxu0 0
      %1477 = vmatpush1.bf16.xpose.msra.mxu0 0
      %1478 = vmatprep.subr.bf16.mxu0 0
      %1479 = vmatpush1.bf16.xpose.msra.mxu0 0
      %1480 = vmatprep.subr.bf16.mxu0 0
      %1481 = vmatpush1.bf16.xpose.msra.mxu0 0
      %1482 = vmatprep.subr.bf16.mxu0 0
      %1483 = vmatpush1.bf16.xpose.msra.mxu0 0
      %1484 = vmatprep.subr.bf16.mxu0 0
      %1485 = vmatpush1.bf16.xpose.msra.mxu0 0
      %1486 = vmatprep.subr.bf16.mxu0 0
      %1487 = vmatpush1.bf16.xpose.msra.mxu0 0
      %1488 = vmatprep.subr.bf16.mxu0 0
      %1489 = vmatpush1.bf16.xpose.msra.mxu0 0
      %1490 = vmatprep.mubr.bf16.mxu0 0
      %1491 = vmatmul.mubr.bf16.gmra.mrb[0].mxu0 %v1450
      %v1492 = vpop.f32.mrb[0].mxu0
      %v1493 = vadd.f32 %v1447, %v1492
      %v1494 = vpop.f32.mrb[0].mxu0
      %v1495 = vpop.f32.mrb[0].mxu0
      %v1496 = vpop.f32.mrb[0].mxu0
      %1497 = vdwg.mxu0
      %1498 = vst.msk [vmem:[%s822] sm:$0xff] %vm925, %v1493
      %s1499 = scalar_lea.vmem %s736, 16
      %v1500 = vld [vmem:[%s1499] sm:$0xff]
      %v1501 = vld [vmem:[%s1499 + $0x8] sm:$0xff]
      %s1502 = scalar_lea.vmem %s742, 4
      %v1503 = vld [vmem:[%s1502] sm:$0xf]
      %s1504 = scalar_lea.vmem %s747, 1
      %v1505 = vld [vmem:[%s1504] sm:$0x1]
      %v1506 = vpack.c.bf16 %v1501, %v1500
      %v1508 = vlaneseq
      %v1509 = vshrl.u32 %v1508, 7
      %v1510 = vsub.s32 0, %v1509
      %v1511 = vrot.slane %v1505, %v1510
      %v1514 = vsel %vm837, %v1506, 0
      %v1517 = vsel %vm841, %v1503, 0
      %1519 = vmatprep.subr.bf16.mxu0 0
      %1520 = vmatpush1.bf16.msra.mxu0 %v1517
      %1521 = vmatprep.subr.bf16.mxu0 0
      %1522 = vmatpush1.bf16.msra.mxu0 0
      %1523 = vmatprep.subr.bf16.mxu0 0
      %1524 = vmatpush1.bf16.msra.mxu0 0
      %1525 = vmatprep.subr.bf16.mxu0 0
      %1526 = vmatpush1.bf16.msra.mxu0 0
      %1527 = vmatprep.subr.bf16.mxu0 0
      %1528 = vmatpush1.bf16.msra.mxu0 0
      %1529 = vmatprep.subr.bf16.mxu0 0
      %1530 = vmatpush1.bf16.msra.mxu0 0
      %1531 = vmatprep.subr.bf16.mxu0 0
      %1532 = vmatpush1.bf16.msra.mxu0 0
      %1533 = vmatprep.subr.bf16.mxu0 0
      %1534 = vmatpush1.bf16.msra.mxu0 0
      %1535 = vmatprep.subr.bf16.mxu0 0
      %1536 = vmatpush1.bf16.msra.mxu0 0
      %1537 = vmatprep.subr.bf16.mxu0 0
      %1538 = vmatpush1.bf16.msra.mxu0 0
      %1539 = vmatprep.subr.bf16.mxu0 0
      %1540 = vmatpush1.bf16.msra.mxu0 0
      %1541 = vmatprep.subr.bf16.mxu0 0
      %1542 = vmatpush1.bf16.msra.mxu0 0
      %1543 = vmatprep.subr.bf16.mxu0 0
      %1544 = vmatpush1.bf16.msra.mxu0 0
      %1545 = vmatprep.subr.bf16.mxu0 0
      %1546 = vmatpush1.bf16.msra.mxu0 0
      %1547 = vmatprep.subr.bf16.mxu0 0
      %1548 = vmatpush1.bf16.msra.mxu0 0
      %1549 = vmatprep.subr.bf16.mxu0 0
      %1550 = vmatpush1.bf16.msra.mxu0 0
      %1551 = vmatprep.mubr.bf16.mxu0 0
      %1552 = vmatmul.mubr.bf16.gmra.mrb[0].mxu0 %v1514
      %v1553 = vpop.f32.mrb[0].mxu0
      %v1554 = vadd.f32 %v1511, %v1553
      %v1555 = vpop.f32.mrb[0].mxu0
      %v1556 = vpop.f32.mrb[0].mxu0
      %v1557 = vadd.f32 %v1511, %v1556
      %v1558 = vpop.f32.mrb[0].mxu0
      %1559 = vdwg.mxu0
      %v1560 = vadd.f32 %v1554, %v912
      %v1561 = vadd.f32 %v1557, %v912
      %v1562 = vadd.f32 %v1554, %v916
      %v1563 = vadd.f32 %v1557, %v916
      %s1564 = scalar_lea.vmem %s752, 1
      %v1565 = vld [vmem:[%s1564] sm:$0x1]
      %s1566 = scalar_lea.vmem %s757, 1
      %v1567 = vld [vmem:[%s1566] sm:$0x1]
      %v1568 = vsel %vm925, %v1560, 0.0
      %v1569 = vsel %vm925, %v1561, 0.0
      %v1570 = vadd.f32 %v1568, %v1569
      %v1571 = vsel %vm925, %v1562, 0.0
      %v1572 = vadd.f32 %v1570, %v1571
      %v1573 = vsel %vm925, %v1563, 0.0
      %v1574 = vadd.f32 %v1572, %v1573
      %v1575 = vrot.slane %v1574, 4
      %v1576 = vadd.f32 %v1574, %v1575
      %v1577 = vrot.slane %v1576, 2
      %v1578 = vadd.f32 %v1576, %v1577
      %v1579 = vrot.slane %v1578, 1
      %v1580 = vadd.f32 %v1578, %v1579
      %v1581 = vmul.f32 %v1580, 0.03125
      %v1582 = vsub.f32 %v1560, %v1581
      %v1583 = vsub.f32 %v1561, %v1581
      %v1584 = vsub.f32 %v1562, %v1581
      %v1585 = vsub.f32 %v1563, %v1581
      %v1586 = vmul.f32 %v1582, %v1582
      %v1587 = vmul.f32 %v1583, %v1583
      %v1588 = vmul.f32 %v1584, %v1584
      %v1589 = vmul.f32 %v1585, %v1585
      %v1590 = vsel %vm925, %v1586, 0.0
      %v1591 = vsel %vm925, %v1587, 0.0
      %v1592 = vadd.f32 %v1590, %v1591
      %v1593 = vsel %vm925, %v1588, 0.0
      %v1594 = vadd.f32 %v1592, %v1593
      %v1595 = vsel %vm925, %v1589, 0.0
      %v1596 = vadd.f32 %v1594, %v1595
      %v1597 = vrot.slane %v1596, 4
      %v1598 = vadd.f32 %v1596, %v1597
      %v1599 = vrot.slane %v1598, 2
      %v1600 = vadd.f32 %v1598, %v1599
      %v1601 = vrot.slane %v1600, 1
      %v1602 = vadd.f32 %v1600, %v1601
      %v1603 = vmul.f32 %v1602, 0.03125
      %v1604 = vadd.f32 %v1603, 1e-05
      %v1605 = vrsqrt.pop %v1604
      %v1606 = vmul.f32 %v1582, %v1605
      %v1607 = vmul.f32 %v1583, %v1605
      %v1608 = vmul.f32 %v1584, %v1605
      %v1609 = vmul.f32 %v1585, %v1605
      %v1611 = vlaneseq
      %v1612 = vshrl.u32 %v1611, 7
      %v1613 = vsub.s32 0, %v1612
      %v1614 = vrot.slane %v1565, %v1613
      %v1616 = vmul.f32 %v1606, %v1614
      %v1617 = vmul.f32 %v1607, %v1614
      %v1618 = vmul.f32 %v1608, %v1614
      %v1619 = vmul.f32 %v1609, %v1614
      %v1621 = vlaneseq
      %v1622 = vshrl.u32 %v1621, 7
      %v1623 = vsub.s32 0, %v1622
      %v1624 = vrot.slane %v1567, %v1623
      %v1626 = vadd.f32 %v1616, %v1624
      %v1627 = vadd.f32 %v1617, %v1624
      %v1628 = vadd.f32 %v1618, %v1624
      %v1629 = vadd.f32 %v1619, %v1624
      %v1630 = vmax.f32 %v1626, 0.0
      %v1631 = vmax.f32 %v1627, 0.0
      %v1632 = vmax.f32 %v1628, 0.0
      %v1633 = vmax.f32 %v1629, 0.0
      %v1634 = vpack.c.bf16 %v1631, %v1630
      %v1635 = vpack.c.bf16 %v1633, %v1632
      %s1636 = scalar_lea.vmem %s764, 16
      %v1637 = vld [vmem:[%s1636] sm:$0xf]
      %v1638 = vld [vmem:[%s1636 + $0x4] sm:$0xf]
      %v1639 = vld [vmem:[%s1636 + $0x8] sm:$0xf]
      %v1640 = vld [vmem:[%s1636 + $0xc] sm:$0xf]
      %s1641 = scalar_lea.vmem %s769, 1
      %v1642 = vld [vmem:[%s1641] sm:$0x1]
      %v1644 = vlaneseq
      %v1645 = vshrl.u32 %v1644, 7
      %v1646 = vsub.s32 0, %v1645
      %v1647 = vrot.slane %v1642, %v1646
      %v1653 = vunpack.c.l.b16 %v1637
      %v1654 = vunpack.c.l.b16 %v1638
      %v1655 = vunpack.c.l.b16 %v1639
      %v1656 = vunpack.c.l.b16 %v1640
      %v1657 = vpack.c.b16 %v1654, %v1653
      %v1658 = vpack.c.b16 %v1656, %v1655
      %v1662 = vsel %vm925, %v1634, 0
      %v1665 = vsel %vm925, %v1635, 0
      %1667 = vmatprep.subr.bf16.mxu0 0
      %1668 = vmatpush1.bf16.msra.mxu0 %v1657
      %1669 = vmatprep.subr.bf16.mxu0 0
      %1670 = vmatpush1.bf16.msra.mxu0 %v1658
      %1671 = vmatprep.subr.bf16.mxu0 0
      %1672 = vmatpush1.bf16.msra.mxu0 0
      %1673 = vmatprep.subr.bf16.mxu0 0
      %1674 = vmatpush1.bf16.msra.mxu0 0
      %1675 = vmatprep.subr.bf16.mxu0 0
      %1676 = vmatpush1.bf16.msra.mxu0 0
      %1677 = vmatprep.subr.bf16.mxu0 0
      %1678 = vmatpush1.bf16.msra.mxu0 0
      %1679 = vmatprep.subr.bf16.mxu0 0
      %1680 = vmatpush1.bf16.msra.mxu0 0
      %1681 = vmatprep.subr.bf16.mxu0 0
      %1682 = vmatpush1.bf16.msra.mxu0 0
      %1683 = vmatprep.subr.bf16.mxu0 0
      %1684 = vmatpush1.bf16.msra.mxu0 0
      %1685 = vmatprep.subr.bf16.mxu0 0
      %1686 = vmatpush1.bf16.msra.mxu0 0
      %1687 = vmatprep.subr.bf16.mxu0 0
      %1688 = vmatpush1.bf16.msra.mxu0 0
      %1689 = vmatprep.subr.bf16.mxu0 0
      %1690 = vmatpush1.bf16.msra.mxu0 0
      %1691 = vmatprep.subr.bf16.mxu0 0
      %1692 = vmatpush1.bf16.msra.mxu0 0
      %1693 = vmatprep.subr.bf16.mxu0 0
      %1694 = vmatpush1.bf16.msra.mxu0 0
      %1695 = vmatprep.subr.bf16.mxu0 0
      %1696 = vmatpush1.bf16.msra.mxu0 0
      %1697 = vmatprep.subr.bf16.mxu0 0
      %1698 = vmatpush1.bf16.msra.mxu0 0
      %1699 = vmatprep.mubr.bf16.mxu0 0
      %1700 = vmatmul.mubr.bf16.gmra.mrb[0].mxu0 %v1662
      %v1701 = vpop.f32.mrb[0].mxu0
      %v1702 = vadd.f32 %v1647, %v1701
      %v1703 = vpop.f32.mrb[0].mxu0
      %v1704 = vpop.f32.mrb[0].mxu0
      %v1705 = vadd.f32 %v1647, %v1704
      %v1706 = vpop.f32.mrb[0].mxu0
      %1707 = vmatprep.mubr.bf16.mxu0 0
      %1708 = vmatmul.mubr.bf16.gmra.mrb[0].mxu0 %v1665
      %v1709 = vpop.f32.mrb[0].mxu0
      %v1710 = vadd.f32 %v1647, %v1709
      %v1711 = vpop.f32.mrb[0].mxu0
      %v1712 = vpop.f32.mrb[0].mxu0
      %v1713 = vadd.f32 %v1647, %v1712
      %v1714 = vpop.f32.mrb[0].mxu0
      %1715 = vdwg.mxu0
      %s1716 = scalar_lea.vmem %s774, 1
      %v1717 = vld [vmem:[%s1716] sm:$0x1]
      %s1718 = scalar_lea.vmem %s779, 1
      %v1719 = vld [vmem:[%s1718] sm:$0x1]
      %v1720 = vsel %vm925, %v1702, 0.0
      %v1721 = vsel %vm925, %v1705, 0.0
      %v1722 = vadd.f32 %v1720, %v1721
      %v1723 = vsel %vm925, %v1710, 0.0
      %v1724 = vadd.f32 %v1722, %v1723
      %v1725 = vsel %vm925, %v1713, 0.0
      %v1726 = vadd.f32 %v1724, %v1725
      %v1727 = vrot.slane %v1726, 4
      %v1728 = vadd.f32 %v1726, %v1727
      %v1729 = vrot.slane %v1728, 2
      %v1730 = vadd.f32 %v1728, %v1729
      %v1731 = vrot.slane %v1730, 1
      %v1732 = vadd.f32 %v1730, %v1731
      %v1733 = vmul.f32 %v1732, 0.03125
      %v1734 = vsub.f32 %v1702, %v1733
      %v1735 = vsub.f32 %v1705, %v1733
      %v1736 = vsub.f32 %v1710, %v1733
      %v1737 = vsub.f32 %v1713, %v1733
      %v1738 = vmul.f32 %v1734, %v1734
      %v1739 = vmul.f32 %v1735, %v1735
      %v1740 = vmul.f32 %v1736, %v1736
      %v1741 = vmul.f32 %v1737, %v1737
      %v1742 = vsel %vm925, %v1738, 0.0
      %v1743 = vsel %vm925, %v1739, 0.0
      %v1744 = vadd.f32 %v1742, %v1743
      %v1745 = vsel %vm925, %v1740, 0.0
      %v1746 = vadd.f32 %v1744, %v1745
      %v1747 = vsel %vm925, %v1741, 0.0
      %v1748 = vadd.f32 %v1746, %v1747
      %v1749 = vrot.slane %v1748, 4
      %v1750 = vadd.f32 %v1748, %v1749
      %v1751 = vrot.slane %v1750, 2
      %v1752 = vadd.f32 %v1750, %v1751
      %v1753 = vrot.slane %v1752, 1
      %v1754 = vadd.f32 %v1752, %v1753
      %v1755 = vmul.f32 %v1754, 0.03125
      %v1756 = vadd.f32 %v1755, 1e-05
      %v1757 = vrsqrt.pop %v1756
      %v1758 = vmul.f32 %v1734, %v1757
      %v1759 = vmul.f32 %v1735, %v1757
      %v1760 = vmul.f32 %v1736, %v1757
      %v1761 = vmul.f32 %v1737, %v1757
      %v1763 = vlaneseq
      %v1764 = vshrl.u32 %v1763, 7
      %v1765 = vsub.s32 0, %v1764
      %v1766 = vrot.slane %v1717, %v1765
      %v1768 = vmul.f32 %v1758, %v1766
      %v1769 = vmul.f32 %v1759, %v1766
      %v1770 = vmul.f32 %v1760, %v1766
      %v1771 = vmul.f32 %v1761, %v1766
      %v1773 = vlaneseq
      %v1774 = vshrl.u32 %v1773, 7
      %v1775 = vsub.s32 0, %v1774
      %v1776 = vrot.slane %v1719, %v1775
      %v1778 = vadd.f32 %v1768, %v1776
      %v1779 = vadd.f32 %v1769, %v1776
      %v1780 = vadd.f32 %v1770, %v1776
      %v1781 = vadd.f32 %v1771, %v1776
      %v1782 = vmax.f32 %v1778, 0.0
      %v1783 = vmax.f32 %v1779, 0.0
      %v1784 = vmax.f32 %v1780, 0.0
      %v1785 = vmax.f32 %v1781, 0.0
      %v1786 = vpack.c.bf16 %v1783, %v1782
      %v1787 = vpack.c.bf16 %v1785, %v1784
      %s1788 = scalar_lea.vmem %s786, 32
      %v1789 = vld [vmem:[%s1788] sm:$0xf]
      %v1790 = vld [vmem:[%s1788 + $0x4] sm:$0xf]
      %v1791 = vld [vmem:[%s1788 + $0x8] sm:$0xf]
      %v1792 = vld [vmem:[%s1788 + $0xc] sm:$0xf]
      %s1793 = scalar_lea.vmem %s792, 2
      %v1794 = vld [vmem:[%s1793] sm:$0x1]
      %v1796 = vlaneseq
      %v1797 = vshrl.u32 %v1796, 7
      %v1798 = vsub.s32 0, %v1797
      %v1799 = vrot.slane %v1794, %v1798
      %v1805 = vunpack.c.l.b16 %v1789
      %v1806 = vunpack.c.l.b16 %v1790
      %v1807 = vunpack.c.l.b16 %v1791
      %v1808 = vunpack.c.l.b16 %v1792
      %v1809 = vpack.c.b16 %v1806, %v1805
      %v1810 = vpack.c.b16 %v1808, %v1807
      %v1814 = vsel %vm925, %v1786, 0
      %v1817 = vsel %vm925, %v1787, 0
      %1819 = vmatprep.subr.bf16.mxu0 0
      %1820 = vmatpush1.bf16.msra.mxu0 %v1809
      %1821 = vmatprep.subr.bf16.mxu0 0
      %1822 = vmatpush1.bf16.msra.mxu0 %v1810
      %1823 = vmatprep.subr.bf16.mxu0 0
      %1824 = vmatpush1.bf16.msra.mxu0 0
      %1825 = vmatprep.subr.bf16.mxu0 0
      %1826 = vmatpush1.bf16.msra.mxu0 0
      %1827 = vmatprep.subr.bf16.mxu0 0
      %1828 = vmatpush1.bf16.msra.mxu0 0
      %1829 = vmatprep.subr.bf16.mxu0 0
      %1830 = vmatpush1.bf16.msra.mxu0 0
      %1831 = vmatprep.subr.bf16.mxu0 0
      %1832 = vmatpush1.bf16.msra.mxu0 0
      %1833 = vmatprep.subr.bf16.mxu0 0
      %1834 = vmatpush1.bf16.msra.mxu0 0
      %1835 = vmatprep.subr.bf16.mxu0 0
      %1836 = vmatpush1.bf16.msra.mxu0 0
      %1837 = vmatprep.subr.bf16.mxu0 0
      %1838 = vmatpush1.bf16.msra.mxu0 0
      %1839 = vmatprep.subr.bf16.mxu0 0
      %1840 = vmatpush1.bf16.msra.mxu0 0
      %1841 = vmatprep.subr.bf16.mxu0 0
      %1842 = vmatpush1.bf16.msra.mxu0 0
      %1843 = vmatprep.subr.bf16.mxu0 0
      %1844 = vmatpush1.bf16.msra.mxu0 0
      %1845 = vmatprep.subr.bf16.mxu0 0
      %1846 = vmatpush1.bf16.msra.mxu0 0
      %1847 = vmatprep.subr.bf16.mxu0 0
      %1848 = vmatpush1.bf16.msra.mxu0 0
      %1849 = vmatprep.subr.bf16.mxu0 0
      %1850 = vmatpush1.bf16.msra.mxu0 0
      %1851 = vmatprep.mubr.bf16.mxu0 0
      %1852 = vmatmul.mubr.bf16.gmra.mrb[0].mxu0 %v1814
      %v1853 = vpop.f32.mrb[0].mxu0
      %v1854 = vadd.f32 %v1799, %v1853
      %v1855 = vpop.f32.mrb[0].mxu0
      %v1856 = vpop.f32.mrb[0].mxu0
      %v1857 = vadd.f32 %v1799, %v1856
      %v1858 = vpop.f32.mrb[0].mxu0
      %1859 = vmatprep.mubr.bf16.mxu0 0
      %1860 = vmatmul.mubr.bf16.gmra.mrb[0].mxu0 %v1817
      %v1861 = vpop.f32.mrb[0].mxu0
      %v1862 = vadd.f32 %v1799, %v1861
      %v1863 = vpop.f32.mrb[0].mxu0
      %v1864 = vpop.f32.mrb[0].mxu0
      %v1865 = vadd.f32 %v1799, %v1864
      %v1866 = vpop.f32.mrb[0].mxu0
      %1867 = vdwg.mxu0
      %s1868 = scalar_lea.vmem %s798, 2
      %v1869 = vld [vmem:[%s1868] sm:$0x1]
      %s1870 = scalar_lea.vmem %s804, 2
      %v1871 = vld [vmem:[%s1870] sm:$0x1]
      %v1872 = vsel %vm925, %v1854, 0.0
      %v1873 = vsel %vm925, %v1857, 0.0
      %v1874 = vadd.f32 %v1872, %v1873
      %v1875 = vsel %vm925, %v1862, 0.0
      %v1876 = vadd.f32 %v1874, %v1875
      %v1877 = vsel %vm925, %v1865, 0.0
      %v1878 = vadd.f32 %v1876, %v1877
      %v1879 = vrot.slane %v1878, 4
      %v1880 = vadd.f32 %v1878, %v1879
      %v1881 = vrot.slane %v1880, 2
      %v1882 = vadd.f32 %v1880, %v1881
      %v1883 = vrot.slane %v1882, 1
      %v1884 = vadd.f32 %v1882, %v1883
      %v1885 = vmul.f32 %v1884, 0.03125
      %v1886 = vsub.f32 %v1854, %v1885
      %v1887 = vsub.f32 %v1857, %v1885
      %v1888 = vsub.f32 %v1862, %v1885
      %v1889 = vsub.f32 %v1865, %v1885
      %v1890 = vmul.f32 %v1886, %v1886
      %v1891 = vmul.f32 %v1887, %v1887
      %v1892 = vmul.f32 %v1888, %v1888
      %v1893 = vmul.f32 %v1889, %v1889
      %v1894 = vsel %vm925, %v1890, 0.0
      %v1895 = vsel %vm925, %v1891, 0.0
      %v1896 = vadd.f32 %v1894, %v1895
      %v1897 = vsel %vm925, %v1892, 0.0
      %v1898 = vadd.f32 %v1896, %v1897
      %v1899 = vsel %vm925, %v1893, 0.0
      %v1900 = vadd.f32 %v1898, %v1899
      %v1901 = vrot.slane %v1900, 4
      %v1902 = vadd.f32 %v1900, %v1901
      %v1903 = vrot.slane %v1902, 2
      %v1904 = vadd.f32 %v1902, %v1903
      %v1905 = vrot.slane %v1904, 1
      %v1906 = vadd.f32 %v1904, %v1905
      %v1907 = vmul.f32 %v1906, 0.03125
      %v1908 = vadd.f32 %v1907, 1e-05
      %v1909 = vrsqrt.pop %v1908
      %v1910 = vmul.f32 %v1886, %v1909
      %v1911 = vmul.f32 %v1887, %v1909
      %v1912 = vmul.f32 %v1888, %v1909
      %v1913 = vmul.f32 %v1889, %v1909
      %v1915 = vlaneseq
      %v1916 = vshrl.u32 %v1915, 7
      %v1917 = vsub.s32 0, %v1916
      %v1918 = vrot.slane %v1869, %v1917
      %v1920 = vmul.f32 %v1910, %v1918
      %v1921 = vmul.f32 %v1911, %v1918
      %v1922 = vmul.f32 %v1912, %v1918
      %v1923 = vmul.f32 %v1913, %v1918
      %v1925 = vlaneseq
      %v1926 = vshrl.u32 %v1925, 7
      %v1927 = vsub.s32 0, %v1926
      %v1928 = vrot.slane %v1871, %v1927
      %v1930 = vadd.f32 %v1920, %v1928
      %v1931 = vadd.f32 %v1921, %v1928
      %v1932 = vadd.f32 %v1922, %v1928
      %v1933 = vadd.f32 %v1923, %v1928
      %v1934 = vmax.f32 %v1930, 0.0
      %v1935 = vmax.f32 %v1931, 0.0
      %v1936 = vmax.f32 %v1932, 0.0
      %v1937 = vmax.f32 %v1933, 0.0
      %v1938 = vpack.c.bf16 %v1935, %v1934
      %v1939 = vpack.c.bf16 %v1937, %v1936
      %s1940 = scalar_lea.vmem %s786, 48
      %v1941 = vld [vmem:[%s1940] sm:$0xf]
      %v1942 = vld [vmem:[%s1940 + $0x4] sm:$0xf]
      %v1943 = vld [vmem:[%s1940 + $0x8] sm:$0xf]
      %v1944 = vld [vmem:[%s1940 + $0xc] sm:$0xf]
      %s1945 = scalar_lea.vmem %s792, 3
      %v1946 = vld [vmem:[%s1945] sm:$0x1]
      %v1948 = vlaneseq
      %v1949 = vshrl.u32 %v1948, 7
      %v1950 = vsub.s32 0, %v1949
      %v1951 = vrot.slane %v1946, %v1950
      %v1957 = vunpack.c.l.b16 %v1941
      %v1958 = vunpack.c.l.b16 %v1942
      %v1959 = vunpack.c.l.b16 %v1943
      %v1960 = vunpack.c.l.b16 %v1944
      %v1961 = vpack.c.b16 %v1958, %v1957
      %v1962 = vpack.c.b16 %v1960, %v1959
      %v1966 = vsel %vm925, %v1938, 0
      %v1969 = vsel %vm925, %v1939, 0
      %1971 = vmatprep.subr.bf16.mxu0 0
      %1972 = vmatpush1.bf16.msra.mxu0 %v1961
      %1973 = vmatprep.subr.bf16.mxu0 0
      %1974 = vmatpush1.bf16.msra.mxu0 %v1962
      %1975 = vmatprep.subr.bf16.mxu0 0
      %1976 = vmatpush1.bf16.msra.mxu0 0
      %1977 = vmatprep.subr.bf16.mxu0 0
      %1978 = vmatpush1.bf16.msra.mxu0 0
      %1979 = vmatprep.subr.bf16.mxu0 0
      %1980 = vmatpush1.bf16.msra.mxu0 0
      %1981 = vmatprep.subr.bf16.mxu0 0
      %1982 = vmatpush1.bf16.msra.mxu0 0
      %1983 = vmatprep.subr.bf16.mxu0 0
      %1984 = vmatpush1.bf16.msra.mxu0 0
      %1985 = vmatprep.subr.bf16.mxu0 0
      %1986 = vmatpush1.bf16.msra.mxu0 0
      %1987 = vmatprep.subr.bf16.mxu0 0
      %1988 = vmatpush1.bf16.msra.mxu0 0
      %1989 = vmatprep.subr.bf16.mxu0 0
      %1990 = vmatpush1.bf16.msra.mxu0 0
      %1991 = vmatprep.subr.bf16.mxu0 0
      %1992 = vmatpush1.bf16.msra.mxu0 0
      %1993 = vmatprep.subr.bf16.mxu0 0
      %1994 = vmatpush1.bf16.msra.mxu0 0
      %1995 = vmatprep.subr.bf16.mxu0 0
      %1996 = vmatpush1.bf16.msra.mxu0 0
      %1997 = vmatprep.subr.bf16.mxu0 0
      %1998 = vmatpush1.bf16.msra.mxu0 0
      %1999 = vmatprep.subr.bf16.mxu0 0
      %2000 = vmatpush1.bf16.msra.mxu0 0
      %2001 = vmatprep.subr.bf16.mxu0 0
      %2002 = vmatpush1.bf16.msra.mxu0 0
      %2003 = vmatprep.mubr.bf16.mxu0 0
      %2004 = vmatmul.mubr.bf16.gmra.mrb[0].mxu0 %v1966
      %v2005 = vpop.f32.mrb[0].mxu0
      %v2006 = vadd.f32 %v1951, %v2005
      %v2007 = vpop.f32.mrb[0].mxu0
      %v2008 = vpop.f32.mrb[0].mxu0
      %v2009 = vadd.f32 %v1951, %v2008
      %v2010 = vpop.f32.mrb[0].mxu0
      %2011 = vmatprep.mubr.bf16.mxu0 0
      %2012 = vmatmul.mubr.bf16.gmra.mrb[0].mxu0 %v1969
      %v2013 = vpop.f32.mrb[0].mxu0
      %v2014 = vadd.f32 %v1951, %v2013
      %v2015 = vpop.f32.mrb[0].mxu0
      %v2016 = vpop.f32.mrb[0].mxu0
      %v2017 = vadd.f32 %v1951, %v2016
      %v2018 = vpop.f32.mrb[0].mxu0
      %2019 = vdwg.mxu0
      %s2020 = scalar_lea.vmem %s798, 3
      %v2021 = vld [vmem:[%s2020] sm:$0x1]
      %s2022 = scalar_lea.vmem %s804, 3
      %v2023 = vld [vmem:[%s2022] sm:$0x1]
      %v2024 = vsel %vm925, %v2006, 0.0
      %v2025 = vsel %vm925, %v2009, 0.0
      %v2026 = vadd.f32 %v2024, %v2025
      %v2027 = vsel %vm925, %v2014, 0.0
      %v2028 = vadd.f32 %v2026, %v2027
      %v2029 = vsel %vm925, %v2017, 0.0
      %v2030 = vadd.f32 %v2028, %v2029
      %v2031 = vrot.slane %v2030, 4
      %v2032 = vadd.f32 %v2030, %v2031
      %v2033 = vrot.slane %v2032, 2
      %v2034 = vadd.f32 %v2032, %v2033
      %v2035 = vrot.slane %v2034, 1
      %v2036 = vadd.f32 %v2034, %v2035
      %v2037 = vmul.f32 %v2036, 0.03125
      %v2038 = vsub.f32 %v2006, %v2037
      %v2039 = vsub.f32 %v2009, %v2037
      %v2040 = vsub.f32 %v2014, %v2037
      %v2041 = vsub.f32 %v2017, %v2037
      %v2042 = vmul.f32 %v2038, %v2038
      %v2043 = vmul.f32 %v2039, %v2039
      %v2044 = vmul.f32 %v2040, %v2040
      %v2045 = vmul.f32 %v2041, %v2041
      %v2046 = vsel %vm925, %v2042, 0.0
      %v2047 = vsel %vm925, %v2043, 0.0
      %v2048 = vadd.f32 %v2046, %v2047
      %v2049 = vsel %vm925, %v2044, 0.0
      %v2050 = vadd.f32 %v2048, %v2049
      %v2051 = vsel %vm925, %v2045, 0.0
      %v2052 = vadd.f32 %v2050, %v2051
      %v2053 = vrot.slane %v2052, 4
      %v2054 = vadd.f32 %v2052, %v2053
      %v2055 = vrot.slane %v2054, 2
      %v2056 = vadd.f32 %v2054, %v2055
      %v2057 = vrot.slane %v2056, 1
      %v2058 = vadd.f32 %v2056, %v2057
      %v2059 = vmul.f32 %v2058, 0.03125
      %v2060 = vadd.f32 %v2059, 1e-05
      %v2061 = vrsqrt.pop %v2060
      %v2062 = vmul.f32 %v2038, %v2061
      %v2063 = vmul.f32 %v2039, %v2061
      %v2064 = vmul.f32 %v2040, %v2061
      %v2065 = vmul.f32 %v2041, %v2061
      %v2067 = vlaneseq
      %v2068 = vshrl.u32 %v2067, 7
      %v2069 = vsub.s32 0, %v2068
      %v2070 = vrot.slane %v2021, %v2069
      %v2072 = vmul.f32 %v2062, %v2070
      %v2073 = vmul.f32 %v2063, %v2070
      %v2074 = vmul.f32 %v2064, %v2070
      %v2075 = vmul.f32 %v2065, %v2070
      %v2077 = vlaneseq
      %v2078 = vshrl.u32 %v2077, 7
      %v2079 = vsub.s32 0, %v2078
      %v2080 = vrot.slane %v2023, %v2079
      %v2082 = vadd.f32 %v2072, %v2080
      %v2083 = vadd.f32 %v2073, %v2080
      %v2084 = vadd.f32 %v2074, %v2080
      %v2085 = vadd.f32 %v2075, %v2080
      %v2086 = vmax.f32 %v2082, 0.0
      %v2087 = vmax.f32 %v2083, 0.0
      %v2088 = vmax.f32 %v2084, 0.0
      %v2089 = vmax.f32 %v2085, 0.0
      %v2090 = vpack.c.bf16 %v2087, %v2086
      %v2091 = vpack.c.bf16 %v2089, %v2088
      %s2092 = scalar_lea.vmem %s810, 4
      %v2093 = vld [vmem:[%s2092] sm:$0xf]
      %s2094 = scalar_lea.vmem %s816, 8
      %v2095 = vld [vmem:[%s2094] sm:$0xff]
      %2097 = vset.pattern.permute.xlu0 0
      %2098 = vperm.xlu0 %2097, %v2095
      %v2099 = vpop.permute.xlu0 %2098
      %v2102 = vsel %vm925, %v2093, 0
      %v2105 = vsel %vm925, %v2090, 0
      %v2108 = vsel %vm925, %v2091, 0
      %2110 = vmatprep.subr.bf16.mxu0 0
      %2111 = vmatpush1.bf16.xpose.msra.mxu0 %v2105
      %2112 = vmatprep.subr.bf16.mxu0 0
      %2113 = vmatpush1.bf16.xpose.msra.mxu0 %v2108
      %2114 = vmatprep.subr.bf16.mxu0 0
      %2115 = vmatpush1.bf16.xpose.msra.mxu0 0
      %2116 = vmatprep.subr.bf16.mxu0 0
      %2117 = vmatpush1.bf16.xpose.msra.mxu0 0
      %2118 = vmatprep.subr.bf16.mxu0 0
      %2119 = vmatpush1.bf16.xpose.msra.mxu0 0
      %2120 = vmatprep.subr.bf16.mxu0 0
      %2121 = vmatpush1.bf16.xpose.msra.mxu0 0
      %2122 = vmatprep.subr.bf16.mxu0 0
      %2123 = vmatpush1.bf16.xpose.msra.mxu0 0
      %2124 = vmatprep.subr.bf16.mxu0 0
      %2125 = vmatpush1.bf16.xpose.msra.mxu0 0
      %2126 = vmatprep.subr.bf16.mxu0 0
      %2127 = vmatpush1.bf16.xpose.msra.mxu0 0
      %2128 = vmatprep.subr.bf16.mxu0 0
      %2129 = vmatpush1.bf16.xpose.msra.mxu0 0
      %2130 = vmatprep.subr.bf16.mxu0 0
      %2131 = vmatpush1.bf16.xpose.msra.mxu0 0
      %2132 = vmatprep.subr.bf16.mxu0 0
      %2133 = vmatpush1.bf16.xpose.msra.mxu0 0
      %2134 = vmatprep.subr.bf16.mxu0 0
      %2135 = vmatpush1.bf16.xpose.msra.mxu0 0
      %2136 = vmatprep.subr.bf16.mxu0 0
      %2137 = vmatpush1.bf16.xpose.msra.mxu0 0
      %2138 = vmatprep.subr.bf16.mxu0 0
      %2139 = vmatpush1.bf16.xpose.msra.mxu0 0
      %2140 = vmatprep.subr.bf16.mxu0 0
      %2141 = vmatpush1.bf16.xpose.msra.mxu0 0
      %2142 = vmatprep.mubr.bf16.mxu0 0
      %2143 = vmatmul.mubr.bf16.gmra.mrb[0].mxu0 %v2102
      %v2144 = vpop.f32.mrb[0].mxu0
      %v2145 = vadd.f32 %v2099, %v2144
      %v2146 = vpop.f32.mrb[0].mxu0
      %v2147 = vpop.f32.mrb[0].mxu0
      %v2148 = vpop.f32.mrb[0].mxu0
      %2149 = vdwg.mxu0
      %s2150 = scalar_lea.vmem %s822, 8
      %2151 = vst.msk [vmem:[%s2150] sm:$0xff] %vm925, %v2145
      %s2152 = smul.u32 2, %s27
      %p2153 = scmp.lt.s32.totalorder %s2152, 3
      %s2154 = scalar_select %p2153, %s2152, 3
      %s2155 = smul.addr %s2154, 8
      %s2156 = scalar_lea.vmem %s16, %s2155
      // Predicated region
      $region85: #{encoder_decoder_forward.3} parent=83 // pred_check
        %p2157 = pneg %p456
      $region86: #{encoder_decoder_forward.3} parent=83 // pred_check_branch
        %2159 = sbr.rel (%p2157) target = $region88
      $region87: #{encoder_decoder_forward.3} parent=83 // pred_region
        %s2160 = smul.u32 2, %s27
      $region88: #{encoder_decoder_forward.3} parent=83 // pred_fallthru
        _
    $region84: #{encoder_decoder_forward.3} parent=5 // pred_fallthru
      _
    %p2161 = scmp.le.s32.totalorder 2, %s22
    // Predicated region
    $region89: #{encoder_decoder_forward.3} parent=5 // pred_check
      %p2162 = pneg %p2161
    $region90: #{encoder_decoder_forward.3} parent=5 // pred_check_branch
      %2164 = sbr.rel (%p2162) target = $region92
    $region91: #{encoder_decoder_forward.3} parent=5 // pred_region
      %s2165 = ssub.s32 %s22, 2
      // Predicated region
      $region93: #{encoder_decoder_forward.3} parent=91 // pred_check
        %p2166 = pneg %p462
      $region94: #{encoder_decoder_forward.3} parent=91 // pred_check_branch
        %2168 = sbr.rel (%p2166) target = $region96
      $region95: #{encoder_decoder_forward.3} parent=91 // pred_region
        %s2169 = smul.u32 2, %s28
        %p2170 = scmp.lt.s32.totalorder %s2169, 3
        %s2171 = scalar_select %p2170, %s2169, 3
        %s2172 = smul.addr %s2171, 8
        %s2173 = scalar_lea.vmem %s16, %s2172
      $region96: #{encoder_decoder_forward.3} parent=91 // pred_fallthru
        _
    $region92: #{encoder_decoder_forward.3} parent=5 // pred_fallthru
      _
  $region6: #{encoder_decoder_forward.3} parent=0 // loop_footer
    %s26 = sadd.s32 1, %s22
  $region7: #{encoder_decoder_forward.3} parent=0 // loop_footer_branch
    %21 = sbr.rel target = $region3
  $region8: #{encoder_decoder_forward.3} parent=0 // loop_exit
    _

</llo_original>
